<compile_context>
chip_gen: v5e
topology: v5e:2x2
jax: 0.10.0
libtpu: 0.0.40
codegen_flags: <defaults>
</compile_context>

<pallas_src>
import functools

import jax
import jax.numpy as jnp
import numpy as np
from jax.experimental import pallas as pl
from jax.experimental.pallas import tpu as pltpu

N_NODES = 12                 # 12 AU nodes -> 12 * 16 = 192 = in_dim of conv stack
C_IN = 2                     # nfeat
GCN_HID = 16                 # nhid
FEAT = N_NODES * GCN_HID     # 192
HID = 64
N_OUT = 3 + 3 + 2 + 2        # 10
OUT_PAD = 128                # lane-padded output channels
BN_EPS = 1e-5


# -------------------------- Pallas kernel --------------------------

def auwgcn_kernel(x_ref,
                  wg_ref, bg_ref,
                  w1_ref, o1_ref,
                  w2_ref, o2_ref,
                  w3_ref, o3_ref,
                  wc_ref,
                  out_ref,
                  *, t_valid):
    B, T, F_in = x_ref.shape
    BT = B * T
    mm_dtype = wg_ref.dtype                      # matmul input dtype (bf16 or f32)

    x = x_ref[...].reshape(BT, F_in)             # (BT, 24)  -- T % 8 == 0 (wrapper pads)

    # Per-row time index within its own (padded) sequence.  Masks are hoisted
    # once: they both cut cross-batch leakage inside the packed tile and zero
    # taps that reach into time padding (t >= t_valid).  The two d=2 tap
    # builders (conv3 + head) share m_prev2 / m_next2.
    t_idx = jax.lax.broadcasted_iota(jnp.int32, (BT, 1), 0) % T
    m_prev1 = t_idx >= 1
    m_next1 = t_idx < (t_valid - 1)
    m_prev2 = t_idx >= 2
    m_next2 = t_idx < (t_valid - 2)

    def taps(h, d, m_prev, m_next):
        """[x[t-d] | x[t] | x[t+d]] per sequence ('same' zero padding) as (BT, 3C).

        pltpu.roll (XLU sublane rotate, free-ish slot) replaces the zero-pad +
        sublane-concatenate shifts; circular wrap rows are zeroed by the masks.
        """
        h_prev = jnp.where(m_prev, pltpu.roll(h, shift=d, axis=0), 0.0)
        h_next = jnp.where(m_next, pltpu.roll(h, shift=BT - d, axis=0), 0.0)
        return jnp.concatenate([h_prev, h, h_next], axis=-1)        # (BT, 3C)

    # --- GCN: per-node Linear(2,16) as block-diag matmul, BN folded, ReLU ---
    g = jnp.dot(x.astype(mm_dtype), wg_ref[...],
                preferred_element_type=jnp.float32) + bg_ref[...]
    g = jnp.maximum(g, 0.0)                                         # (BT, 192)

    # --- Conv1d(192 -> 64, k=1, bias=False) + folded BN + ReLU ---
    h = jnp.dot(g.astype(mm_dtype), w1_ref[...],
                preferred_element_type=jnp.float32) + o1_ref[...]
    h = jnp.maximum(h, 0.0)                                         # (BT, 64) f32

    # --- Conv1d(64 -> 64, k=3, pad=1) + BN + ReLU  (3 taps fused, K=192) ---
    h = jnp.dot(taps(h, 1, m_prev1, m_next1).astype(mm_dtype), w2_ref[...],
                preferred_element_type=jnp.float32) + o2_ref[...]
    h = jnp.maximum(h, 0.0)

    # --- Conv1d(64 -> 64, k=3, pad=2, dilation=2) + BN + ReLU ---
    h = jnp.dot(taps(h, 2, m_prev2, m_next2).astype(mm_dtype), w3_ref[...],
                preferred_element_type=jnp.float32) + o3_ref[...]
    h = jnp.maximum(h, 0.0)

    # --- classification Conv1d(64 -> 10, k=3, pad=2, dilation=2, bias=False) ---
    # Head weight is lane-padded to 128 output channels (extra lanes zero), so
    # the store below is a full-width unmasked vst; output dtype is bf16 to
    # halve HBM writeback of the padded slab.
    out = jnp.dot(taps(h, 2, m_prev2, m_next2).astype(mm_dtype), wc_ref[...],
                  preferred_element_type=jnp.float32)               # (BT, 128)

    out_ref[...] = out.reshape(B, T, out_ref.shape[-1]).astype(out_ref.dtype)


# -------------------------- wrapper --------------------------

def _tc_per_chip():
    """Best-effort TensorCores-per-device (megacore) detection."""
    try:
        kind = jax.devices()[0].device_kind.lower()
    except Exception:  # pragma: no cover - defensive
        return 1
    # v4 / v7x expose 2 TensorCores per JAX device; v5e / v6e expose 1.
    if "v4" in kind or "7" in kind:
        return 2
    return 1


def _pick_block_b(b, t_pad, n_cores=1, target_rows=256, max_rows=2048):
    """Largest divisor of b giving ~target_rows MXU rows per step.

    On single-TC chips this collapses the grid to as few (ideally one) steps
    as possible; on megacore chips it keeps >= n_cores grid steps so the
    "parallel" batch axis can shard across TensorCores.
    """
    best = 1
    for cand in range(1, b + 1):
        if b % cand:
            continue
        if cand > 1 and cand * t_pad > max_rows:
            break
        if n_cores > 1 and (b // cand) < n_cores:
            break
        best = cand
        if cand * t_pad >= target_rows:
            break
    return best


def fold_params(p, matmul_dtype=jnp.bfloat16):
    """Fold eval-mode BN into the matmul weights; return kernel operands."""
    def bn(c):
        # gamma=1, beta=0, running_mean=0, running_var=1 (fresh module)
        scale = jnp.full((c,), 1.0 / np.sqrt(1.0 + BN_EPS), jnp.float32)
        shift = jnp.zeros((c,), jnp.float32)
        return scale, shift

    s_g, o_g = bn(GCN_HID)
    s1, o1 = bn(HID)
    s2, o2 = bn(HID)
    s3, o3 = bn(HID)

    # GCN Linear(2,16) on node-major flattened (n*c) features as a
    # block-diagonal matmul; BN scale folded into the columns.
    wg = jnp.kron(jnp.eye(N_NODES, dtype=jnp.float32), p["gcn_w"])      # (24, 192)
    sg_full = jnp.tile(s_g, N_NODES)
    og_full = jnp.tile(o_g, N_NODES)
    wg_k = (wg * sg_full[None, :]).astype(matmul_dtype)
    bg_k = (jnp.tile(p["gcn_b"], N_NODES) * sg_full + og_full)[None, :]  # (1, 192) f32

    w1_k = (p["w1"] * s1[None, :]).astype(matmul_dtype)                  # (192, 64)
    o1_k = o1[None, :]
    # k=3 convs: (K, Cin, Cout) -> fused (3*Cin, Cout); tap k multiplies x[t+(k-1)d]
    w2_k = (p["w2"].reshape(3 * HID, HID) * s2[None, :]).astype(matmul_dtype)
    o2_k = o2[None, :]
    w3_k = (p["w3"].reshape(3 * HID, HID) * s3[None, :]).astype(matmul_dtype)
    o3_k = o3[None, :]

    # classification head: pad 10 output channels to 128 lanes with zeros
    wc_flat = p["wc"].reshape(3 * HID, N_OUT)
    wc_k = jnp.zeros((3 * HID, OUT_PAD), jnp.float32).at[:, :N_OUT].set(wc_flat)
    wc_k = wc_k.astype(matmul_dtype)

    return (wg_k, bg_k, w1_k, o1_k, w2_k, o2_k, w3_k, o3_k, wc_k)


def auwgcn_forward(x, params, *, block_b=None, matmul_dtype=jnp.bfloat16):
    """x: (b, t, 12, 2) float32  ->  (b, 10, t) float32 (PyTorch NCW output)."""
    b, t, n, c = x.shape
    assert (n, c) == (N_NODES, C_IN)

    # Pad T up to a multiple of 8 so batch packing and (8,128) tiling always
    # apply; padded rows are masked in-kernel and sliced off below.
    t_pad = -(-t // 8) * 8
    x_flat = x.reshape(b, t, n * c).astype(jnp.float32)
    if t_pad != t:
        x_flat = jnp.pad(x_flat, ((0, 0), (0, t_pad - t), (0, 0)))

    kparams = fold_params(params, matmul_dtype)

    n_cores = _tc_per_chip()
    if block_b is None:
        block_b = _pick_block_b(b, t_pad, n_cores)
    assert b % block_b == 0
    grid = (b // block_b,)

    def const_spec(arr):
        nd = arr.ndim
        return pl.BlockSpec(arr.shape, lambda i, nd=nd: (0,) * nd)

    # Advisory scheduling hint for XLA (5 chained matmuls per activation row).
    rows = b * t_pad
    flops = 2 * rows * (N_NODES * C_IN * FEAT        # GCN block-diag (upper bound)
                        + FEAT * HID                 # conv1 k=1
                        + 2 * (3 * HID) * HID        # conv2, conv3 (fused K=192)
                        + (3 * HID) * OUT_PAD)       # padded head
    weight_bytes = sum(int(a.size) * a.dtype.itemsize for a in kparams)
    bytes_accessed = (int(x_flat.size) * 4            # input f32
                      + rows * OUT_PAD * 2            # bf16 padded output
                      + weight_bytes)
    cost = pl.CostEstimate(flops=int(flops), transcendentals=0,
                           bytes_accessed=int(bytes_accessed))

    # VMEM per step: largest intermediate is (block_b*t_pad, 192) f32
    # (~1.5 MiB at the 2048-row cap) -> far under every generation's scoped
    # limit (incl. v7x 64 MiB physical / 32 MiB scoped); no override needed.
    out = pl.pallas_call(
        functools.partial(auwgcn_kernel, t_valid=t),
        out_shape=jax.ShapeDtypeStruct((b, t_pad, OUT_PAD), jnp.bfloat16),
        grid_spec=pltpu.PrefetchScalarGridSpec(
            num_scalar_prefetch=0,
            grid=grid,
            in_specs=[pl.BlockSpec((block_b, t_pad, n * c), lambda i: (i, 0, 0))]
                     + [const_spec(a) for a in kparams],
            out_specs=pl.BlockSpec((block_b, t_pad, OUT_PAD), lambda i: (i, 0, 0)),
        ),
        compiler_params=pltpu.CompilerParams(
            # "parallel" lets megacore chips shard batch grid steps; on
            # single-TC chips the block picker already collapsed to one step.
            dimension_semantics=("parallel",),
        ),
        cost_estimate=cost,
    )(x_flat, *kparams)

    # drop lane/time padding, upcast, convert to PyTorch NCW layout (b, 10, t)
    return jnp.transpose(out[:, :t, :N_OUT].astype(jnp.float32), (0, 2, 1))


# -------------------------- deterministic params --------------------------

def init_params(key):
    ks = jax.random.split(key, 6)

    # GCN Linear(2, 16): PyTorch default uniform(-1/sqrt(fan_in), 1/sqrt(fan_in))
    lim = 1.0 / np.sqrt(C_IN)
    gcn_w = jax.random.uniform(ks[0], (C_IN, GCN_HID), jnp.float32, -lim, lim)
    gcn_b = jax.random.uniform(ks[1], (GCN_HID,), jnp.float32, -lim, lim)

    def kaiming(k, shape, fan_in):    # kaiming_normal_, fan_in mode, relu gain
        return jax.random.normal(k, shape, jnp.float32) * np.sqrt(2.0 / fan_in)

    w1 = kaiming(ks[2], (FEAT, HID), FEAT)          # Conv1d(192,64,k=1): (Cin, Cout)
    w2 = kaiming(ks[3], (3, HID, HID), HID * 3)     # Conv1d(64,64,k=3):  (K, Cin, Cout)
    w3 = kaiming(ks[4], (3, HID, HID), HID * 3)     # dilated conv, same layout
    wc = kaiming(ks[5], (3, HID, N_OUT), HID * 3)   # classification head

    return dict(gcn_w=gcn_w, gcn_b=gcn_b, w1=w1, w2=w2, w3=w3, wc=wc)


# -------------------------- pure-JAX reference --------------------------

def reference_forward(x, p):
    b, t, n, c = x.shape
    bn_scale = 1.0 / np.sqrt(1.0 + BN_EPS)

    h = x.reshape(b * t, n, c) @ p["gcn_w"] + p["gcn_b"]           # (b*t, n, 16)
    h = jax.nn.relu(h * bn_scale)
    h = h.reshape(b, t, n * GCN_HID).transpose(0, 2, 1)            # (b, 192, t) NCW

    def conv1d(x_ncw, w_kio, dilation, pad):
        w_oik = jnp.transpose(w_kio, (2, 1, 0))                    # torch (Cout, Cin, K)
        return jax.lax.conv_general_dilated(
            x_ncw, w_oik, window_strides=(1,), padding=[(pad, pad)],
            rhs_dilation=(dilation,), dimension_numbers=("NCH", "OIH", "NCH"))

    h = jax.nn.relu(conv1d(h, p["w1"][None], 1, 0) * bn_scale)
    h = jax.nn.relu(conv1d(h, p["w2"], 1, 1) * bn_scale)
    h = jax.nn.relu(conv1d(h, p["w3"], 2, 2) * bn_scale)
    return conv1d(h, p["wc"], 2, 2)                                # (b, 10, t)


# -------------------------- main --------------------------

if __name__ == "__main__":
    b, t = 8, 32     # BT=256 -> one 256-row step on 1-TC chips, 2x128 on megacore
    x = jax.random.normal(jax.random.PRNGKey(0), (b, t, N_NODES, C_IN), jnp.float32)
    params = init_params(jax.random.PRNGKey(1))

    out = jax.block_until_ready(auwgcn_forward(x, params))
    assert out.shape == (b, N_OUT, t), out.shape

    ref = jax.block_until_ready(reference_forward(x, params))
    # bf16 MXU inputs + bf16 output writeback, f32 accumulation: 5e-2 tolerance.
    np.testing.assert_allclose(np.asarray(out), np.asarray(ref), rtol=5e-2, atol=5e-2)

    print("KERNEL_OK")
</pallas_src>

<mosaic_0001>
module attributes {stable_mosaic.version = 11 : i64} {
  func.func @auwgcn_kernel(%arg0: i32, %arg1: memref<8x32x24xf32, #tpu.memory_space<vmem>>, %arg2: memref<24x192xbf16, #tpu.memory_space<vmem>>, %arg3: memref<1x192xf32, #tpu.memory_space<vmem>>, %arg4: memref<192x64xbf16, #tpu.memory_space<vmem>>, %arg5: memref<1x64xf32, #tpu.memory_space<vmem>>, %arg6: memref<192x64xbf16, #tpu.memory_space<vmem>>, %arg7: memref<1x64xf32, #tpu.memory_space<vmem>>, %arg8: memref<192x64xbf16, #tpu.memory_space<vmem>>, %arg9: memref<1x64xf32, #tpu.memory_space<vmem>>, %arg10: memref<192x128xbf16, #tpu.memory_space<vmem>>, %arg11: memref<8x32x128xbf16, #tpu.memory_space<vmem>>) attributes {dimension_semantics = [#tpu.dimension_semantics<parallel>], iteration_bounds = array<i64: 1>, scalar_prefetch = 0 : i64, scratch_operands = 0 : i64, tpu.core_type = #tpu.core_type<tc>, window_params = [{transform_indices = @transform_0, window_bounds = array<i64: 8, 32, 24>}, {pipeline_mode = #tpu.pipeline_mode<synchronous>, transform_indices = @transform_1, window_bounds = array<i64: 24, 192>}, {pipeline_mode = #tpu.pipeline_mode<synchronous>, transform_indices = @transform_2, window_bounds = array<i64: 1, 192>}, {pipeline_mode = #tpu.pipeline_mode<synchronous>, transform_indices = @transform_3, window_bounds = array<i64: 192, 64>}, {pipeline_mode = #tpu.pipeline_mode<synchronous>, transform_indices = @transform_4, window_bounds = array<i64: 1, 64>}, {pipeline_mode = #tpu.pipeline_mode<synchronous>, transform_indices = @transform_5, window_bounds = array<i64: 192, 64>}, {pipeline_mode = #tpu.pipeline_mode<synchronous>, transform_indices = @transform_6, window_bounds = array<i64: 1, 64>}, {pipeline_mode = #tpu.pipeline_mode<synchronous>, transform_indices = @transform_7, window_bounds = array<i64: 192, 64>}, {pipeline_mode = #tpu.pipeline_mode<synchronous>, transform_indices = @transform_8, window_bounds = array<i64: 1, 64>}, {pipeline_mode = #tpu.pipeline_mode<synchronous>, transform_indices = @transform_9, window_bounds = array<i64: 192, 128>}, {transform_indices = @transform_10, window_bounds = array<i64: 8, 32, 128>}]} {
    %c0 = arith.constant 0 : index
    %c0_0 = arith.constant 0 : index
    %c0_1 = arith.constant 0 : index
    %0 = vector.load %arg1[%c0, %c0_0, %c0_1] : memref<8x32x24xf32, #tpu.memory_space<vmem>>, vector<8x32x24xf32>
    %1 = vector.shape_cast %0 : vector<8x32x24xf32> to vector<256x24xf32>
    %2 = tpu.iota {dimensions = array<i32: 0>} : vector<256x1xi32>
    %c32_i32 = arith.constant 32 : i32
    %c0_i32 = arith.constant 0 : i32
    %3 = arith.cmpi eq, %c32_i32, %c0_i32 : i32
    %c1_i32 = arith.constant 1 : i32
    %4 = arith.select %3, %c1_i32, %c32_i32 : i32
    %5 = vector.broadcast %4 : i32 to vector<256x1xi32>
    %6 = arith.remsi %2, %5 : vector<256x1xi32>
    %c0_i32_2 = arith.constant 0 : i32
    %7 = vector.broadcast %c0_i32_2 : i32 to vector<256x1xi32>
    %8 = arith.cmpi ne, %6, %7 : vector<256x1xi32>
    %c0_i32_3 = arith.constant 0 : i32
    %9 = vector.broadcast %c0_i32_3 : i32 to vector<256x1xi32>
    %10 = arith.cmpi slt, %6, %9 : vector<256x1xi32>
    %c0_i32_4 = arith.constant 0 : i32
    %11 = arith.cmpi slt, %4, %c0_i32_4 : i32
    %12 = vector.broadcast %11 : i1 to vector<256x1xi1>
    %13 = vector.broadcast %12 : vector<256x1xi1> to vector<256x1xi1>
    %14 = arith.xori %10, %13 : vector<256x1xi1>
    %15 = arith.andi %14, %8 : vector<256x1xi1>
    %16 = vector.broadcast %4 : i32 to vector<256x1xi32>
    %17 = arith.addi %6, %16 : vector<256x1xi32>
    %18 = arith.select %15, %17, %6 : vector<256x1xi1>, vector<256x1xi32>
    %c1_i32_5 = arith.constant 1 : i32
    %19 = vector.broadcast %c1_i32_5 : i32 to vector<256x1xi32>
    %20 = arith.cmpi sge, %18, %19 : vector<256x1xi32>
    %c31_i32 = arith.constant 31 : i32
    %21 = vector.broadcast %c31_i32 : i32 to vector<256x1xi32>
    %22 = arith.cmpi slt, %18, %21 : vector<256x1xi32>
    %c2_i32 = arith.constant 2 : i32
    %23 = vector.broadcast %c2_i32 : i32 to vector<256x1xi32>
    %24 = arith.cmpi sge, %18, %23 : vector<256x1xi32>
    %c30_i32 = arith.constant 30 : i32
    %25 = vector.broadcast %c30_i32 : i32 to vector<256x1xi32>
    %26 = arith.cmpi slt, %18, %25 : vector<256x1xi32>
    %27 = arith.truncf %1 : vector<256x24xf32> to vector<256x24xbf16>
    %c0_6 = arith.constant 0 : index
    %c0_7 = arith.constant 0 : index
    %28 = vector.load %arg2[%c0_6, %c0_7] : memref<24x192xbf16, #tpu.memory_space<vmem>>, vector<24x192xbf16>
    %cst = arith.constant dense<0.000000e+00> : vector<256x192xf32>
    %29 = tpu.matmul %27, %28, %cst {dimension_numbers = #tpu.dot_dimension_numbers<[1], [0], [0], [1], [0, 0, 1, 1], [], []>} : vector<256x24xbf16>, vector<24x192xbf16>, vector<256x192xf32> -> vector<256x192xf32>
    %c0_8 = arith.constant 0 : index
    %c0_9 = arith.constant 0 : index
    %30 = vector.load %arg3[%c0_8, %c0_9] : memref<1x192xf32, #tpu.memory_space<vmem>>, vector<1x192xf32>
    %31 = vector.broadcast %30 : vector<1x192xf32> to vector<256x192xf32>
    %32 = arith.addf %29, %31 : vector<256x192xf32>
    %cst_10 = arith.constant 0.000000e+00 : f32
    %33 = vector.broadcast %cst_10 : f32 to vector<256x192xf32>
    %34 = arith.maximumf %32, %33 : vector<256x192xf32>
    %35 = arith.truncf %34 : vector<256x192xf32> to vector<256x192xbf16>
    %c0_11 = arith.constant 0 : index
    %c0_12 = arith.constant 0 : index
    %36 = vector.load %arg4[%c0_11, %c0_12] : memref<192x64xbf16, #tpu.memory_space<vmem>>, vector<192x64xbf16>
    %cst_13 = arith.constant dense<0.000000e+00> : vector<256x64xf32>
    %37 = tpu.matmul %35, %36, %cst_13 {dimension_numbers = #tpu.dot_dimension_numbers<[1], [0], [0], [1], [0, 0, 1, 1], [], []>} : vector<256x192xbf16>, vector<192x64xbf16>, vector<256x64xf32> -> vector<256x64xf32>
    %c0_14 = arith.constant 0 : index
    %c0_15 = arith.constant 0 : index
    %38 = vector.load %arg5[%c0_14, %c0_15] : memref<1x64xf32, #tpu.memory_space<vmem>>, vector<1x64xf32>
    %39 = vector.broadcast %38 : vector<1x64xf32> to vector<256x64xf32>
    %40 = arith.addf %37, %39 : vector<256x64xf32>
    %cst_16 = arith.constant 0.000000e+00 : f32
    %41 = vector.broadcast %cst_16 : f32 to vector<256x64xf32>
    %42 = arith.maximumf %40, %41 : vector<256x64xf32>
    %c1_i32_17 = arith.constant 1 : i32
    %43 = tpu.dynamic_rotate %42 by %c1_i32_17 dim 0 : vector<256x64xf32>, i32 -> vector<256x64xf32>
    %cst_18 = arith.constant 0.000000e+00 : f32
    %44 = vector.shape_cast %20 : vector<256x1xi1> to vector<256x1xi1>
    %45 = vector.broadcast %44 : vector<256x1xi1> to vector<256x64xi1>
    %46 = vector.broadcast %cst_18 : f32 to vector<256x64xf32>
    %47 = arith.select %45, %43, %46 : vector<256x64xi1>, vector<256x64xf32>
    %c255_i32 = arith.constant 255 : i32
    %48 = tpu.dynamic_rotate %42 by %c255_i32 dim 0 : vector<256x64xf32>, i32 -> vector<256x64xf32>
    %cst_19 = arith.constant 0.000000e+00 : f32
    %49 = vector.shape_cast %22 : vector<256x1xi1> to vector<256x1xi1>
    %50 = vector.broadcast %49 : vector<256x1xi1> to vector<256x64xi1>
    %51 = vector.broadcast %cst_19 : f32 to vector<256x64xf32>
    %52 = arith.select %50, %48, %51 : vector<256x64xi1>, vector<256x64xf32>
    %53 = tpu.concatenate %47, %42, %52 in 1 : vector<256x64xf32>, vector<256x64xf32>, vector<256x64xf32> -> vector<256x192xf32>
    %54 = arith.truncf %53 : vector<256x192xf32> to vector<256x192xbf16>
    %c0_20 = arith.constant 0 : index
    %c0_21 = arith.constant 0 : index
    %55 = vector.load %arg6[%c0_20, %c0_21] : memref<192x64xbf16, #tpu.memory_space<vmem>>, vector<192x64xbf16>
    %cst_22 = arith.constant dense<0.000000e+00> : vector<256x64xf32>
    %56 = tpu.matmul %54, %55, %cst_22 {dimension_numbers = #tpu.dot_dimension_numbers<[1], [0], [0], [1], [0, 0, 1, 1], [], []>} : vector<256x192xbf16>, vector<192x64xbf16>, vector<256x64xf32> -> vector<256x64xf32>
    %c0_23 = arith.constant 0 : index
    %c0_24 = arith.constant 0 : index
    %57 = vector.load %arg7[%c0_23, %c0_24] : memref<1x64xf32, #tpu.memory_space<vmem>>, vector<1x64xf32>
    %58 = vector.broadcast %57 : vector<1x64xf32> to vector<256x64xf32>
    %59 = arith.addf %56, %58 : vector<256x64xf32>
    %cst_25 = arith.constant 0.000000e+00 : f32
    %60 = vector.broadcast %cst_25 : f32 to vector<256x64xf32>
    %61 = arith.maximumf %59, %60 : vector<256x64xf32>
    %c2_i32_26 = arith.constant 2 : i32
    %62 = tpu.dynamic_rotate %61 by %c2_i32_26 dim 0 : vector<256x64xf32>, i32 -> vector<256x64xf32>
    %cst_27 = arith.constant 0.000000e+00 : f32
    %63 = vector.shape_cast %24 : vector<256x1xi1> to vector<256x1xi1>
    %64 = vector.broadcast %63 : vector<256x1xi1> to vector<256x64xi1>
    %65 = vector.broadcast %cst_27 : f32 to vector<256x64xf32>
    %66 = arith.select %64, %62, %65 : vector<256x64xi1>, vector<256x64xf32>
    %c254_i32 = arith.constant 254 : i32
    %67 = tpu.dynamic_rotate %61 by %c254_i32 dim 0 : vector<256x64xf32>, i32 -> vector<256x64xf32>
    %cst_28 = arith.constant 0.000000e+00 : f32
    %68 = vector.shape_cast %26 : vector<256x1xi1> to vector<256x1xi1>
    %69 = vector.broadcast %68 : vector<256x1xi1> to vector<256x64xi1>
    %70 = vector.broadcast %cst_28 : f32 to vector<256x64xf32>
    %71 = arith.select %69, %67, %70 : vector<256x64xi1>, vector<256x64xf32>
    %72 = tpu.concatenate %66, %61, %71 in 1 : vector<256x64xf32>, vector<256x64xf32>, vector<256x64xf32> -> vector<256x192xf32>
    %73 = arith.truncf %72 : vector<256x192xf32> to vector<256x192xbf16>
    %c0_29 = arith.constant 0 : index
    %c0_30 = arith.constant 0 : index
    %74 = vector.load %arg8[%c0_29, %c0_30] : memref<192x64xbf16, #tpu.memory_space<vmem>>, vector<192x64xbf16>
    %cst_31 = arith.constant dense<0.000000e+00> : vector<256x64xf32>
    %75 = tpu.matmul %73, %74, %cst_31 {dimension_numbers = #tpu.dot_dimension_numbers<[1], [0], [0], [1], [0, 0, 1, 1], [], []>} : vector<256x192xbf16>, vector<192x64xbf16>, vector<256x64xf32> -> vector<256x64xf32>
    %c0_32 = arith.constant 0 : index
    %c0_33 = arith.constant 0 : index
    %76 = vector.load %arg9[%c0_32, %c0_33] : memref<1x64xf32, #tpu.memory_space<vmem>>, vector<1x64xf32>
    %77 = vector.broadcast %76 : vector<1x64xf32> to vector<256x64xf32>
    %78 = arith.addf %75, %77 : vector<256x64xf32>
    %cst_34 = arith.constant 0.000000e+00 : f32
    %79 = vector.broadcast %cst_34 : f32 to vector<256x64xf32>
    %80 = arith.maximumf %78, %79 : vector<256x64xf32>
    %c2_i32_35 = arith.constant 2 : i32
    %81 = tpu.dynamic_rotate %80 by %c2_i32_35 dim 0 : vector<256x64xf32>, i32 -> vector<256x64xf32>
    %cst_36 = arith.constant 0.000000e+00 : f32
    %82 = vector.shape_cast %24 : vector<256x1xi1> to vector<256x1xi1>
    %83 = vector.broadcast %82 : vector<256x1xi1> to vector<256x64xi1>
    %84 = vector.broadcast %cst_36 : f32 to vector<256x64xf32>
    %85 = arith.select %83, %81, %84 : vector<256x64xi1>, vector<256x64xf32>
    %c254_i32_37 = arith.constant 254 : i32
    %86 = tpu.dynamic_rotate %80 by %c254_i32_37 dim 0 : vector<256x64xf32>, i32 -> vector<256x64xf32>
    %cst_38 = arith.constant 0.000000e+00 : f32
    %87 = vector.shape_cast %26 : vector<256x1xi1> to vector<256x1xi1>
    %88 = vector.broadcast %87 : vector<256x1xi1> to vector<256x64xi1>
    %89 = vector.broadcast %cst_38 : f32 to vector<256x64xf32>
    %90 = arith.select %88, %86, %89 : vector<256x64xi1>, vector<256x64xf32>
    %91 = tpu.concatenate %85, %80, %90 in 1 : vector<256x64xf32>, vector<256x64xf32>, vector<256x64xf32> -> vector<256x192xf32>
    %92 = arith.truncf %91 : vector<256x192xf32> to vector<256x192xbf16>
    %c0_39 = arith.constant 0 : index
    %c0_40 = arith.constant 0 : index
    %93 = vector.load %arg10[%c0_39, %c0_40] : memref<192x128xbf16, #tpu.memory_space<vmem>>, vector<192x128xbf16>
    %cst_41 = arith.constant dense<0.000000e+00> : vector<256x128xf32>
    %94 = tpu.matmul %92, %93, %cst_41 {dimension_numbers = #tpu.dot_dimension_numbers<[1], [0], [0], [1], [0, 0, 1, 1], [], []>} : vector<256x192xbf16>, vector<192x128xbf16>, vector<256x128xf32> -> vector<256x128xf32>
    %95 = vector.shape_cast %94 : vector<256x128xf32> to vector<8x32x128xf32>
    %96 = arith.truncf %95 : vector<8x32x128xf32> to vector<8x32x128xbf16>
    %c0_42 = arith.constant 0 : index
    %c0_43 = arith.constant 0 : index
    %c0_44 = arith.constant 0 : index
    %97 = vector.load %arg11[%c0_42, %c0_43, %c0_44] : memref<8x32x128xbf16, #tpu.memory_space<vmem>>, vector<8x32x128xbf16>
    tpu.vector_store %arg11[%c0_42, %c0_43, %c0_44], %96 {strides = array<i32>} : memref<8x32x128xbf16, #tpu.memory_space<vmem>>, vector<8x32x128xbf16>,
    return
  }
  func.func @transform_0(%arg0: i32) -> (i32, i32, i32) {
    %c0_i32 = arith.constant 0 : i32
    %c0_i32_0 = arith.constant 0 : i32
    %c0_i32_1 = arith.constant 0 : i32
    return %arg0, %c0_i32, %c0_i32_0 : i32, i32, i32
  }
  func.func @transform_1(%arg0: i32) -> (i32, i32) {
    %c0_i32 = arith.constant 0 : i32
    %c0_i32_0 = arith.constant 0 : i32
    %c0_i32_1 = arith.constant 0 : i32
    return %c0_i32, %c0_i32_0 : i32, i32
  }
  func.func @transform_2(%arg0: i32) -> (i32, i32) {
    %c0_i32 = arith.constant 0 : i32
    %c0_i32_0 = arith.constant 0 : i32
    %c0_i32_1 = arith.constant 0 : i32
    return %c0_i32, %c0_i32_0 : i32, i32
  }
  func.func @transform_3(%arg0: i32) -> (i32, i32) {
    %c0_i32 = arith.constant 0 : i32
    %c0_i32_0 = arith.constant 0 : i32
    %c0_i32_1 = arith.constant 0 : i32
    return %c0_i32, %c0_i32_0 : i32, i32
  }
  func.func @transform_4(%arg0: i32) -> (i32, i32) {
    %c0_i32 = arith.constant 0 : i32
    %c0_i32_0 = arith.constant 0 : i32
    %c0_i32_1 = arith.constant 0 : i32
    return %c0_i32, %c0_i32_0 : i32, i32
  }
  func.func @transform_5(%arg0: i32) -> (i32, i32) {
    %c0_i32 = arith.constant 0 : i32
    %c0_i32_0 = arith.constant 0 : i32
    %c0_i32_1 = arith.constant 0 : i32
    return %c0_i32, %c0_i32_0 : i32, i32
  }
  func.func @transform_6(%arg0: i32) -> (i32, i32) {
    %c0_i32 = arith.constant 0 : i32
    %c0_i32_0 = arith.constant 0 : i32
    %c0_i32_1 = arith.constant 0 : i32
    return %c0_i32, %c0_i32_0 : i32, i32
  }
  func.func @transform_7(%arg0: i32) -> (i32, i32) {
    %c0_i32 = arith.constant 0 : i32
    %c0_i32_0 = arith.constant 0 : i32
    %c0_i32_1 = arith.constant 0 : i32
    return %c0_i32, %c0_i32_0 : i32, i32
  }
  func.func @transform_8(%arg0: i32) -> (i32, i32) {
    %c0_i32 = arith.constant 0 : i32
    %c0_i32_0 = arith.constant 0 : i32
    %c0_i32_1 = arith.constant 0 : i32
    return %c0_i32, %c0_i32_0 : i32, i32
  }
  func.func @transform_9(%arg0: i32) -> (i32, i32) {
    %c0_i32 = arith.constant 0 : i32
    %c0_i32_0 = arith.constant 0 : i32
    %c0_i32_1 = arith.constant 0 : i32
    return %c0_i32, %c0_i32_0 : i32, i32
  }
  func.func @transform_10(%arg0: i32) -> (i32, i32, i32) {
    %c0_i32 = arith.constant 0 : i32
    %c0_i32_0 = arith.constant 0 : i32
    %c0_i32_1 = arith.constant 0 : i32
    return %arg0, %c0_i32, %c0_i32_0 : i32, i32, i32
  }
}

</mosaic_0001>

<llo_original>
// kernel: tpu_custom_call.1
$region0: #{tpu_custom_call.1}
  #allocation0 [shape = 'u32[]', space=smem, size = 0x4, offset = 0x4, fixed_abs, tag = 'smem constant byte address 0x4 - core index']
  #allocation1 [shape = 'u32[72,128]{1,0:T(1,128)}', space=vmem, size = 0x9000, scoped, tag = 'internal scratch']
  %s0 = inlined_call_operand.vmem [shape: f32[8,32,24], index: 0, kind: input, shape index: {}]
  %s1 = inlined_call_operand.vmem [shape: bf16[24,192], index: 1, kind: input, shape index: {}]
  %s2 = inlined_call_operand.vmem [shape: f32[1,192], index: 2, kind: input, shape index: {}]
  %s3 = inlined_call_operand.vmem [shape: bf16[192,64], index: 3, kind: input, shape index: {}]
  %s4 = inlined_call_operand.vmem [shape: f32[1,64], index: 4, kind: input, shape index: {}]
  %s5 = inlined_call_operand.vmem [shape: bf16[192,64], index: 5, kind: input, shape index: {}]
  %s6 = inlined_call_operand.vmem [shape: f32[1,64], index: 6, kind: input, shape index: {}]
  %s7 = inlined_call_operand.vmem [shape: bf16[192,64], index: 7, kind: input, shape index: {}]
  %s8 = inlined_call_operand.vmem [shape: f32[1,64], index: 8, kind: input, shape index: {}]
  %s9 = inlined_call_operand.vmem [shape: bf16[192,128], index: 9, kind: input, shape index: {}]
  %s10 = inlined_call_operand.hbm [shape: bf16[8,32,128], index: 10, kind: output, shape index: {}]
  %s11 = sld [smem:[#allocation0]]
  $region50: #{tpu_custom_call.1} parent=0
    _
  %s13 = ssub.s32 1, %s11
  %s14 = scalar_select 0, %s13, %s11
  $region1: #{tpu_custom_call.1} parent=0
    #allocation2 [shape = 'u8[65536]{0}', space=vmem, size = 0x10000, scoped, tag = 'output window, operand 0, single buffered']
    #allocation3 [shape = 's32[1]{0}', space=sflag, size = 0x4, scoped, tag = 'scoped memory for tpu_custom_call.1']
    %15 = vsyncpa [#allocation3], 0
    // Predicated region
    $region2: #{tpu_custom_call.1} parent=1 // pred_check
      _
    $region3: #{tpu_custom_call.1} parent=1 // pred_check_branch
      %17 = sbr.rel (0) target = $region5
    $region4: #{tpu_custom_call.1} parent=1 // pred_region
      _
    $region5: #{tpu_custom_call.1} parent=1 // pred_fallthru
      _
    // Predicated region
    $region6: #{tpu_custom_call.1} parent=1 // pred_check
      _
    $region7: #{tpu_custom_call.1} parent=1 // pred_check_branch
      %19 = sbr.rel (0) target = $region9
    $region8: #{tpu_custom_call.1} parent=1 // pred_region
      _
    $region9: #{tpu_custom_call.1} parent=1 // pred_fallthru
      _
    // Predicated region
    $region10: #{tpu_custom_call.1} parent=1 // pred_check
      _
    $region11: #{tpu_custom_call.1} parent=1 // pred_check_branch
      %21 = sbr.rel (0) target = $region13
    $region12: #{tpu_custom_call.1} parent=1 // pred_region
      _
    $region13: #{tpu_custom_call.1} parent=1 // pred_fallthru
      _
    // Predicated region
    $region14: #{tpu_custom_call.1} parent=1 // pred_check
      _
    $region15: #{tpu_custom_call.1} parent=1 // pred_check_branch
      %23 = sbr.rel (0) target = $region17
    $region16: #{tpu_custom_call.1} parent=1 // pred_region
      _
    $region17: #{tpu_custom_call.1} parent=1 // pred_fallthru
      _
    // Predicated region
    $region18: #{tpu_custom_call.1} parent=1 // pred_check
      _
    $region19: #{tpu_custom_call.1} parent=1 // pred_check_branch
      %25 = sbr.rel (0) target = $region21
    $region20: #{tpu_custom_call.1} parent=1 // pred_region
      _
    $region21: #{tpu_custom_call.1} parent=1 // pred_fallthru
      _
    // Predicated region
    $region22: #{tpu_custom_call.1} parent=1 // pred_check
      _
    $region23: #{tpu_custom_call.1} parent=1 // pred_check_branch
      %27 = sbr.rel (0) target = $region25
    $region24: #{tpu_custom_call.1} parent=1 // pred_region
      _
    $region25: #{tpu_custom_call.1} parent=1 // pred_fallthru
      _
    // Predicated region
    $region26: #{tpu_custom_call.1} parent=1 // pred_check
      _
    $region27: #{tpu_custom_call.1} parent=1 // pred_check_branch
      %29 = sbr.rel (0) target = $region29
    $region28: #{tpu_custom_call.1} parent=1 // pred_region
      _
    $region29: #{tpu_custom_call.1} parent=1 // pred_fallthru
      _
    // Predicated region
    $region30: #{tpu_custom_call.1} parent=1 // pred_check
      _
    $region31: #{tpu_custom_call.1} parent=1 // pred_check_branch
      %31 = sbr.rel (0) target = $region33
    $region32: #{tpu_custom_call.1} parent=1 // pred_region
      _
    $region33: #{tpu_custom_call.1} parent=1 // pred_fallthru
      _
    // Predicated region
    $region34: #{tpu_custom_call.1} parent=1 // pred_check
      _
    $region35: #{tpu_custom_call.1} parent=1 // pred_check_branch
      %33 = sbr.rel (0) target = $region37
    $region36: #{tpu_custom_call.1} parent=1 // pred_region
      _
    $region37: #{tpu_custom_call.1} parent=1 // pred_fallthru
      _
    // Predicated region
    $region38: #{tpu_custom_call.1} parent=1 // pred_check
      _
    $region39: #{tpu_custom_call.1} parent=1 // pred_check_branch
      %35 = sbr.rel (0) target = $region41
    $region40: #{tpu_custom_call.1} parent=1 // pred_region
      _
    $region41: #{tpu_custom_call.1} parent=1 // pred_fallthru
      _
    %v37 = vld [vmem:[%s0] sm:$0xff]
    %v38 = vld [vmem:[%s0 + $0x8] sm:$0xff]
    %v39 = vld [vmem:[%s0 + $0x10] sm:$0xff]
    %v40 = vld [vmem:[%s0 + $0x18] sm:$0xff]
    %v41 = vld [vmem:[%s0 + $0x20] sm:$0xff]
    %v42 = vld [vmem:[%s0 + $0x28] sm:$0xff]
    %v43 = vld [vmem:[%s0 + $0x30] sm:$0xff]
    %v44 = vld [vmem:[%s0 + $0x38] sm:$0xff]
    %v45 = vld [vmem:[%s0 + $0x40] sm:$0xff]
    %v46 = vld [vmem:[%s0 + $0x48] sm:$0xff]
    %v47 = vld [vmem:[%s0 + $0x50] sm:$0xff]
    %v48 = vld [vmem:[%s0 + $0x58] sm:$0xff]
    %v49 = vld [vmem:[%s0 + $0x60] sm:$0xff]
    %v50 = vld [vmem:[%s0 + $0x68] sm:$0xff]
    %v51 = vld [vmem:[%s0 + $0x70] sm:$0xff]
    %v52 = vld [vmem:[%s0 + $0x78] sm:$0xff]
    %v53 = vld [vmem:[%s0 + $0x80] sm:$0xff]
    %v54 = vld [vmem:[%s0 + $0x88] sm:$0xff]
    %v55 = vld [vmem:[%s0 + $0x90] sm:$0xff]
    %v56 = vld [vmem:[%s0 + $0x98] sm:$0xff]
    %v57 = vld [vmem:[%s0 + $0xa0] sm:$0xff]
    %v58 = vld [vmem:[%s0 + $0xa8] sm:$0xff]
    %v59 = vld [vmem:[%s0 + $0xb0] sm:$0xff]
    %v60 = vld [vmem:[%s0 + $0xb8] sm:$0xff]
    %v61 = vld [vmem:[%s0 + $0xc0] sm:$0xff]
    %v62 = vld [vmem:[%s0 + $0xc8] sm:$0xff]
    %v63 = vld [vmem:[%s0 + $0xd0] sm:$0xff]
    %v64 = vld [vmem:[%s0 + $0xd8] sm:$0xff]
    %v65 = vld [vmem:[%s0 + $0xe0] sm:$0xff]
    %v66 = vld [vmem:[%s0 + $0xe8] sm:$0xff]
    %v67 = vld [vmem:[%s0 + $0xf0] sm:$0xff]
    %v68 = vld [vmem:[%s0 + $0xf8] sm:$0xff]
    %v69 = vlaneseq
    %v70 = vshrl.u32 %v69, 7
    %v71 = vadd.s32 %v70, 8
    %v72 = vadd.s32 %v70, 16
    %v73 = vadd.s32 %v70, 24
    %v74 = vadd.s32 %v70, 32
    %v75 = vadd.s32 %v70, 40
    %v76 = vadd.s32 %v70, 48
    %v77 = vadd.s32 %v70, 56
    %v78 = vadd.s32 %v70, 64
    %v79 = vadd.s32 %v70, 72
    %v80 = vadd.s32 %v70, 80
    %v81 = vadd.s32 %v70, 88
    %v82 = vadd.s32 %v70, 96
    %v83 = vadd.s32 %v70, 104
    %v84 = vadd.s32 %v70, 112
    %v85 = vadd.s32 %v70, 120
    %v86 = vadd.s32 %v70, 128
    %v87 = vadd.s32 %v70, 136
    %v88 = vadd.s32 %v70, 144
    %v89 = vadd.s32 %v70, 152
    %v90 = vadd.s32 %v70, 160
    %v91 = vadd.s32 %v70, 168
    %v92 = vadd.s32 %v70, 176
    %v93 = vadd.s32 %v70, 184
    %v94 = vadd.s32 %v70, 192
    %v95 = vadd.s32 %v70, 200
    %v96 = vadd.s32 %v70, 208
    %v97 = vadd.s32 %v70, 216
    %v98 = vadd.s32 %v70, 224
    %v99 = vadd.s32 %v70, 232
    %v100 = vadd.s32 %v70, 240
    %v101 = vadd.s32 %v70, 248
    %vm102 = vcmp.lt.s32.totalorder %v70, 0
    %v103 = vsub.s32 0, %v70
    %v104 = vsel %vm102, %v103, %v70
    %v105 = vshrl.u32 %v104, 5
    %v106 = vand.u32 %v104, 31
    %v107 = vsub.s32 0, %v106
    %v108 = vsel %vm102, %v107, %v106
    %vm109 = vcmp.lt.s32.totalorder %v71, 0
    %v110 = vsub.s32 0, %v71
    %v111 = vsel %vm109, %v110, %v71
    %v112 = vshrl.u32 %v111, 5
    %v113 = vand.u32 %v111, 31
    %v114 = vsub.s32 0, %v113
    %v115 = vsel %vm109, %v114, %v113
    %vm116 = vcmp.lt.s32.totalorder %v72, 0
    %v117 = vsub.s32 0, %v72
    %v118 = vsel %vm116, %v117, %v72
    %v119 = vshrl.u32 %v118, 5
    %v120 = vand.u32 %v118, 31
    %v121 = vsub.s32 0, %v120
    %v122 = vsel %vm116, %v121, %v120
    %vm123 = vcmp.lt.s32.totalorder %v73, 0
    %v124 = vsub.s32 0, %v73
    %v125 = vsel %vm123, %v124, %v73
    %v126 = vshrl.u32 %v125, 5
    %v127 = vand.u32 %v125, 31
    %v128 = vsub.s32 0, %v127
    %v129 = vsel %vm123, %v128, %v127
    %vm130 = vcmp.lt.s32.totalorder %v74, 0
    %v131 = vsub.s32 0, %v74
    %v132 = vsel %vm130, %v131, %v74
    %v133 = vshrl.u32 %v132, 5
    %v134 = vand.u32 %v132, 31
    %v135 = vsub.s32 0, %v134
    %v136 = vsel %vm130, %v135, %v134
    %vm137 = vcmp.lt.s32.totalorder %v75, 0
    %v138 = vsub.s32 0, %v75
    %v139 = vsel %vm137, %v138, %v75
    %v140 = vshrl.u32 %v139, 5
    %v141 = vand.u32 %v139, 31
    %v142 = vsub.s32 0, %v141
    %v143 = vsel %vm137, %v142, %v141
    %vm144 = vcmp.lt.s32.totalorder %v76, 0
    %v145 = vsub.s32 0, %v76
    %v146 = vsel %vm144, %v145, %v76
    %v147 = vshrl.u32 %v146, 5
    %v148 = vand.u32 %v146, 31
    %v149 = vsub.s32 0, %v148
    %v150 = vsel %vm144, %v149, %v148
    %vm151 = vcmp.lt.s32.totalorder %v77, 0
    %v152 = vsub.s32 0, %v77
    %v153 = vsel %vm151, %v152, %v77
    %v154 = vshrl.u32 %v153, 5
    %v155 = vand.u32 %v153, 31
    %v156 = vsub.s32 0, %v155
    %v157 = vsel %vm151, %v156, %v155
    %vm158 = vcmp.lt.s32.totalorder %v78, 0
    %v159 = vsub.s32 0, %v78
    %v160 = vsel %vm158, %v159, %v78
    %v161 = vshrl.u32 %v160, 5
    %v162 = vand.u32 %v160, 31
    %v163 = vsub.s32 0, %v162
    %v164 = vsel %vm158, %v163, %v162
    %vm165 = vcmp.lt.s32.totalorder %v79, 0
    %v166 = vsub.s32 0, %v79
    %v167 = vsel %vm165, %v166, %v79
    %v168 = vshrl.u32 %v167, 5
    %v169 = vand.u32 %v167, 31
    %v170 = vsub.s32 0, %v169
    %v171 = vsel %vm165, %v170, %v169
    %vm172 = vcmp.lt.s32.totalorder %v80, 0
    %v173 = vsub.s32 0, %v80
    %v174 = vsel %vm172, %v173, %v80
    %v175 = vshrl.u32 %v174, 5
    %v176 = vand.u32 %v174, 31
    %v177 = vsub.s32 0, %v176
    %v178 = vsel %vm172, %v177, %v176
    %vm179 = vcmp.lt.s32.totalorder %v81, 0
    %v180 = vsub.s32 0, %v81
    %v181 = vsel %vm179, %v180, %v81
    %v182 = vshrl.u32 %v181, 5
    %v183 = vand.u32 %v181, 31
    %v184 = vsub.s32 0, %v183
    %v185 = vsel %vm179, %v184, %v183
    %vm186 = vcmp.lt.s32.totalorder %v82, 0
    %v187 = vsub.s32 0, %v82
    %v188 = vsel %vm186, %v187, %v82
    %v189 = vshrl.u32 %v188, 5
    %v190 = vand.u32 %v188, 31
    %v191 = vsub.s32 0, %v190
    %v192 = vsel %vm186, %v191, %v190
    %vm193 = vcmp.lt.s32.totalorder %v83, 0
    %v194 = vsub.s32 0, %v83
    %v195 = vsel %vm193, %v194, %v83
    %v196 = vshrl.u32 %v195, 5
    %v197 = vand.u32 %v195, 31
    %v198 = vsub.s32 0, %v197
    %v199 = vsel %vm193, %v198, %v197
    %vm200 = vcmp.lt.s32.totalorder %v84, 0
    %v201 = vsub.s32 0, %v84
    %v202 = vsel %vm200, %v201, %v84
    %v203 = vshrl.u32 %v202, 5
    %v204 = vand.u32 %v202, 31
    %v205 = vsub.s32 0, %v204
    %v206 = vsel %vm200, %v205, %v204
    %vm207 = vcmp.lt.s32.totalorder %v85, 0
    %v208 = vsub.s32 0, %v85
    %v209 = vsel %vm207, %v208, %v85
    %v210 = vshrl.u32 %v209, 5
    %v211 = vand.u32 %v209, 31
    %v212 = vsub.s32 0, %v211
    %v213 = vsel %vm207, %v212, %v211
    %vm214 = vcmp.lt.s32.totalorder %v86, 0
    %v215 = vsub.s32 0, %v86
    %v216 = vsel %vm214, %v215, %v86
    %v217 = vshrl.u32 %v216, 5
    %v218 = vand.u32 %v216, 31
    %v219 = vsub.s32 0, %v218
    %v220 = vsel %vm214, %v219, %v218
    %vm221 = vcmp.lt.s32.totalorder %v87, 0
    %v222 = vsub.s32 0, %v87
    %v223 = vsel %vm221, %v222, %v87
    %v224 = vshrl.u32 %v223, 5
    %v225 = vand.u32 %v223, 31
    %v226 = vsub.s32 0, %v225
    %v227 = vsel %vm221, %v226, %v225
    %vm228 = vcmp.lt.s32.totalorder %v88, 0
    %v229 = vsub.s32 0, %v88
    %v230 = vsel %vm228, %v229, %v88
    %v231 = vshrl.u32 %v230, 5
    %v232 = vand.u32 %v230, 31
    %v233 = vsub.s32 0, %v232
    %v234 = vsel %vm228, %v233, %v232
    %vm235 = vcmp.lt.s32.totalorder %v89, 0
    %v236 = vsub.s32 0, %v89
    %v237 = vsel %vm235, %v236, %v89
    %v238 = vshrl.u32 %v237, 5
    %v239 = vand.u32 %v237, 31
    %v240 = vsub.s32 0, %v239
    %v241 = vsel %vm235, %v240, %v239
    %vm242 = vcmp.lt.s32.totalorder %v90, 0
    %v243 = vsub.s32 0, %v90
    %v244 = vsel %vm242, %v243, %v90
    %v245 = vshrl.u32 %v244, 5
    %v246 = vand.u32 %v244, 31
    %v247 = vsub.s32 0, %v246
    %v248 = vsel %vm242, %v247, %v246
    %vm249 = vcmp.lt.s32.totalorder %v91, 0
    %v250 = vsub.s32 0, %v91
    %v251 = vsel %vm249, %v250, %v91
    %v252 = vshrl.u32 %v251, 5
    %v253 = vand.u32 %v251, 31
    %v254 = vsub.s32 0, %v253
    %v255 = vsel %vm249, %v254, %v253
    %vm256 = vcmp.lt.s32.totalorder %v92, 0
    %v257 = vsub.s32 0, %v92
    %v258 = vsel %vm256, %v257, %v92
    %v259 = vshrl.u32 %v258, 5
    %v260 = vand.u32 %v258, 31
    %v261 = vsub.s32 0, %v260
    %v262 = vsel %vm256, %v261, %v260
    %vm263 = vcmp.lt.s32.totalorder %v93, 0
    %v264 = vsub.s32 0, %v93
    %v265 = vsel %vm263, %v264, %v93
    %v266 = vshrl.u32 %v265, 5
    %v267 = vand.u32 %v265, 31
    %v268 = vsub.s32 0, %v267
    %v269 = vsel %vm263, %v268, %v267
    %vm270 = vcmp.lt.s32.totalorder %v94, 0
    %v271 = vsub.s32 0, %v94
    %v272 = vsel %vm270, %v271, %v94
    %v273 = vshrl.u32 %v272, 5
    %v274 = vand.u32 %v272, 31
    %v275 = vsub.s32 0, %v274
    %v276 = vsel %vm270, %v275, %v274
    %vm277 = vcmp.lt.s32.totalorder %v95, 0
    %v278 = vsub.s32 0, %v95
    %v279 = vsel %vm277, %v278, %v95
    %v280 = vshrl.u32 %v279, 5
    %v281 = vand.u32 %v279, 31
    %v282 = vsub.s32 0, %v281
    %v283 = vsel %vm277, %v282, %v281
    %vm284 = vcmp.lt.s32.totalorder %v96, 0
    %v285 = vsub.s32 0, %v96
    %v286 = vsel %vm284, %v285, %v96
    %v287 = vshrl.u32 %v286, 5
    %v288 = vand.u32 %v286, 31
    %v289 = vsub.s32 0, %v288
    %v290 = vsel %vm284, %v289, %v288
    %vm291 = vcmp.lt.s32.totalorder %v97, 0
    %v292 = vsub.s32 0, %v97
    %v293 = vsel %vm291, %v292, %v97
    %v294 = vshrl.u32 %v293, 5
    %v295 = vand.u32 %v293, 31
    %v296 = vsub.s32 0, %v295
    %v297 = vsel %vm291, %v296, %v295
    %vm298 = vcmp.lt.s32.totalorder %v98, 0
    %v299 = vsub.s32 0, %v98
    %v300 = vsel %vm298, %v299, %v98
    %v301 = vshrl.u32 %v300, 5
    %v302 = vand.u32 %v300, 31
    %v303 = vsub.s32 0, %v302
    %v304 = vsel %vm298, %v303, %v302
    %vm305 = vcmp.lt.s32.totalorder %v99, 0
    %v306 = vsub.s32 0, %v99
    %v307 = vsel %vm305, %v306, %v99
    %v308 = vshrl.u32 %v307, 5
    %v309 = vand.u32 %v307, 31
    %v310 = vsub.s32 0, %v309
    %v311 = vsel %vm305, %v310, %v309
    %vm312 = vcmp.lt.s32.totalorder %v100, 0
    %v313 = vsub.s32 0, %v100
    %v314 = vsel %vm312, %v313, %v100
    %v315 = vshrl.u32 %v314, 5
    %v316 = vand.u32 %v314, 31
    %v317 = vsub.s32 0, %v316
    %v318 = vsel %vm312, %v317, %v316
    %vm319 = vcmp.lt.s32.totalorder %v101, 0
    %v320 = vsub.s32 0, %v101
    %v321 = vsel %vm319, %v320, %v101
    %v322 = vshrl.u32 %v321, 5
    %v323 = vand.u32 %v321, 31
    %v324 = vsub.s32 0, %v323
    %v325 = vsel %vm319, %v324, %v323
    %vm326 = vcmp.ne.s32.totalorder %v108, 0
    %vm327 = vcmp.ne.s32.totalorder %v115, 0
    %vm328 = vcmp.ne.s32.totalorder %v122, 0
    %vm329 = vcmp.ne.s32.totalorder %v129, 0
    %vm330 = vcmp.ne.s32.totalorder %v136, 0
    %vm331 = vcmp.ne.s32.totalorder %v143, 0
    %vm332 = vcmp.ne.s32.totalorder %v150, 0
    %vm333 = vcmp.ne.s32.totalorder %v157, 0
    %vm334 = vcmp.ne.s32.totalorder %v164, 0
    %vm335 = vcmp.ne.s32.totalorder %v171, 0
    %vm336 = vcmp.ne.s32.totalorder %v178, 0
    %vm337 = vcmp.ne.s32.totalorder %v185, 0
    %vm338 = vcmp.ne.s32.totalorder %v192, 0
    %vm339 = vcmp.ne.s32.totalorder %v199, 0
    %vm340 = vcmp.ne.s32.totalorder %v206, 0
    %vm341 = vcmp.ne.s32.totalorder %v213, 0
    %vm342 = vcmp.ne.s32.totalorder %v220, 0
    %vm343 = vcmp.ne.s32.totalorder %v227, 0
    %vm344 = vcmp.ne.s32.totalorder %v234, 0
    %vm345 = vcmp.ne.s32.totalorder %v241, 0
    %vm346 = vcmp.ne.s32.totalorder %v248, 0
    %vm347 = vcmp.ne.s32.totalorder %v255, 0
    %vm348 = vcmp.ne.s32.totalorder %v262, 0
    %vm349 = vcmp.ne.s32.totalorder %v269, 0
    %vm350 = vcmp.ne.s32.totalorder %v276, 0
    %vm351 = vcmp.ne.s32.totalorder %v283, 0
    %vm352 = vcmp.ne.s32.totalorder %v290, 0
    %vm353 = vcmp.ne.s32.totalorder %v297, 0
    %vm354 = vcmp.ne.s32.totalorder %v304, 0
    %vm355 = vcmp.ne.s32.totalorder %v311, 0
    %vm356 = vcmp.ne.s32.totalorder %v318, 0
    %vm357 = vcmp.ne.s32.totalorder %v325, 0
    %vm358 = vcmp.lt.s32.totalorder %v108, 0
    %vm359 = vcmp.lt.s32.totalorder %v115, 0
    %vm360 = vcmp.lt.s32.totalorder %v122, 0
    %vm361 = vcmp.lt.s32.totalorder %v129, 0
    %vm362 = vcmp.lt.s32.totalorder %v136, 0
    %vm363 = vcmp.lt.s32.totalorder %v143, 0
    %vm364 = vcmp.lt.s32.totalorder %v150, 0
    %vm365 = vcmp.lt.s32.totalorder %v157, 0
    %vm366 = vcmp.lt.s32.totalorder %v164, 0
    %vm367 = vcmp.lt.s32.totalorder %v171, 0
    %vm368 = vcmp.lt.s32.totalorder %v178, 0
    %vm369 = vcmp.lt.s32.totalorder %v185, 0
    %vm370 = vcmp.lt.s32.totalorder %v192, 0
    %vm371 = vcmp.lt.s32.totalorder %v199, 0
    %vm372 = vcmp.lt.s32.totalorder %v206, 0
    %vm373 = vcmp.lt.s32.totalorder %v213, 0
    %vm374 = vcmp.lt.s32.totalorder %v220, 0
    %vm375 = vcmp.lt.s32.totalorder %v227, 0
    %vm376 = vcmp.lt.s32.totalorder %v234, 0
    %vm377 = vcmp.lt.s32.totalorder %v241, 0
    %vm378 = vcmp.lt.s32.totalorder %v248, 0
    %vm379 = vcmp.lt.s32.totalorder %v255, 0
    %vm380 = vcmp.lt.s32.totalorder %v262, 0
    %vm381 = vcmp.lt.s32.totalorder %v269, 0
    %vm382 = vcmp.lt.s32.totalorder %v276, 0
    %vm383 = vcmp.lt.s32.totalorder %v283, 0
    %vm384 = vcmp.lt.s32.totalorder %v290, 0
    %vm385 = vcmp.lt.s32.totalorder %v297, 0
    %vm386 = vcmp.lt.s32.totalorder %v304, 0
    %vm387 = vcmp.lt.s32.totalorder %v311, 0
    %vm388 = vcmp.lt.s32.totalorder %v318, 0
    %vm389 = vcmp.lt.s32.totalorder %v325, 0
    %vm390 = vmand %vm358, %vm326
    %vm391 = vmand %vm359, %vm327
    %vm392 = vmand %vm360, %vm328
    %vm393 = vmand %vm361, %vm329
    %vm394 = vmand %vm362, %vm330
    %vm395 = vmand %vm363, %vm331
    %vm396 = vmand %vm364, %vm332
    %vm397 = vmand %vm365, %vm333
    %vm398 = vmand %vm366, %vm334
    %vm399 = vmand %vm367, %vm335
    %vm400 = vmand %vm368, %vm336
    %vm401 = vmand %vm369, %vm337
    %vm402 = vmand %vm370, %vm338
    %vm403 = vmand %vm371, %vm339
    %vm404 = vmand %vm372, %vm340
    %vm405 = vmand %vm373, %vm341
    %vm406 = vmand %vm374, %vm342
    %vm407 = vmand %vm375, %vm343
    %vm408 = vmand %vm376, %vm344
    %vm409 = vmand %vm377, %vm345
    %vm410 = vmand %vm378, %vm346
    %vm411 = vmand %vm379, %vm347
    %vm412 = vmand %vm380, %vm348
    %vm413 = vmand %vm381, %vm349
    %vm414 = vmand %vm382, %vm350
    %vm415 = vmand %vm383, %vm351
    %vm416 = vmand %vm384, %vm352
    %vm417 = vmand %vm385, %vm353
    %vm418 = vmand %vm386, %vm354
    %vm419 = vmand %vm387, %vm355
    %vm420 = vmand %vm388, %vm356
    %vm421 = vmand %vm389, %vm357
    %v422 = vadd.s32 %v108, 32
    %v423 = vadd.s32 %v115, 32
    %v424 = vadd.s32 %v122, 32
    %v425 = vadd.s32 %v129, 32
    %v426 = vadd.s32 %v136, 32
    %v427 = vadd.s32 %v143, 32
    %v428 = vadd.s32 %v150, 32
    %v429 = vadd.s32 %v157, 32
    %v430 = vadd.s32 %v164, 32
    %v431 = vadd.s32 %v171, 32
    %v432 = vadd.s32 %v178, 32
    %v433 = vadd.s32 %v185, 32
    %v434 = vadd.s32 %v192, 32
    %v435 = vadd.s32 %v199, 32
    %v436 = vadd.s32 %v206, 32
    %v437 = vadd.s32 %v213, 32
    %v438 = vadd.s32 %v220, 32
    %v439 = vadd.s32 %v227, 32
    %v440 = vadd.s32 %v234, 32
    %v441 = vadd.s32 %v241, 32
    %v442 = vadd.s32 %v248, 32
    %v443 = vadd.s32 %v255, 32
    %v444 = vadd.s32 %v262, 32
    %v445 = vadd.s32 %v269, 32
    %v446 = vadd.s32 %v276, 32
    %v447 = vadd.s32 %v283, 32
    %v448 = vadd.s32 %v290, 32
    %v449 = vadd.s32 %v297, 32
    %v450 = vadd.s32 %v304, 32
    %v451 = vadd.s32 %v311, 32
    %v452 = vadd.s32 %v318, 32
    %v453 = vadd.s32 %v325, 32
    %v454 = vsel %vm390, %v422, %v108
    %v455 = vsel %vm391, %v423, %v115
    %v456 = vsel %vm392, %v424, %v122
    %v457 = vsel %vm393, %v425, %v129
    %v458 = vsel %vm394, %v426, %v136
    %v459 = vsel %vm395, %v427, %v143
    %v460 = vsel %vm396, %v428, %v150
    %v461 = vsel %vm397, %v429, %v157
    %v462 = vsel %vm398, %v430, %v164
    %v463 = vsel %vm399, %v431, %v171
    %v464 = vsel %vm400, %v432, %v178
    %v465 = vsel %vm401, %v433, %v185
    %v466 = vsel %vm402, %v434, %v192
    %v467 = vsel %vm403, %v435, %v199
    %v468 = vsel %vm404, %v436, %v206
    %v469 = vsel %vm405, %v437, %v213
    %v470 = vsel %vm406, %v438, %v220
    %v471 = vsel %vm407, %v439, %v227
    %v472 = vsel %vm408, %v440, %v234
    %v473 = vsel %vm409, %v441, %v241
    %v474 = vsel %vm410, %v442, %v248
    %v475 = vsel %vm411, %v443, %v255
    %v476 = vsel %vm412, %v444, %v262
    %v477 = vsel %vm413, %v445, %v269
    %v478 = vsel %vm414, %v446, %v276
    %v479 = vsel %vm415, %v447, %v283
    %v480 = vsel %vm416, %v448, %v290
    %v481 = vsel %vm417, %v449, %v297
    %v482 = vsel %vm418, %v450, %v304
    %v483 = vsel %vm419, %v451, %v311
    %v484 = vsel %vm420, %v452, %v318
    %v485 = vsel %vm421, %v453, %v325
    %vm486 = vcmp.ge.s32.totalorder %v454, 1
    %vm487 = vcmp.ge.s32.totalorder %v455, 1
    %vm488 = vcmp.ge.s32.totalorder %v456, 1
    %vm489 = vcmp.ge.s32.totalorder %v457, 1
    %vm490 = vcmp.ge.s32.totalorder %v458, 1
    %vm491 = vcmp.ge.s32.totalorder %v459, 1
    %vm492 = vcmp.ge.s32.totalorder %v460, 1
    %vm493 = vcmp.ge.s32.totalorder %v461, 1
    %vm494 = vcmp.ge.s32.totalorder %v462, 1
    %vm495 = vcmp.ge.s32.totalorder %v463, 1
    %vm496 = vcmp.ge.s32.totalorder %v464, 1
    %vm497 = vcmp.ge.s32.totalorder %v465, 1
    %vm498 = vcmp.ge.s32.totalorder %v466, 1
    %vm499 = vcmp.ge.s32.totalorder %v467, 1
    %vm500 = vcmp.ge.s32.totalorder %v468, 1
    %vm501 = vcmp.ge.s32.totalorder %v469, 1
    %vm502 = vcmp.ge.s32.totalorder %v470, 1
    %vm503 = vcmp.ge.s32.totalorder %v471, 1
    %vm504 = vcmp.ge.s32.totalorder %v472, 1
    %vm505 = vcmp.ge.s32.totalorder %v473, 1
    %vm506 = vcmp.ge.s32.totalorder %v474, 1
    %vm507 = vcmp.ge.s32.totalorder %v475, 1
    %vm508 = vcmp.ge.s32.totalorder %v476, 1
    %vm509 = vcmp.ge.s32.totalorder %v477, 1
    %vm510 = vcmp.ge.s32.totalorder %v478, 1
    %vm511 = vcmp.ge.s32.totalorder %v479, 1
    %vm512 = vcmp.ge.s32.totalorder %v480, 1
    %vm513 = vcmp.ge.s32.totalorder %v481, 1
    %vm514 = vcmp.ge.s32.totalorder %v482, 1
    %vm515 = vcmp.ge.s32.totalorder %v483, 1
    %vm516 = vcmp.ge.s32.totalorder %v484, 1
    %vm517 = vcmp.ge.s32.totalorder %v485, 1
    %vm518 = vcmp.lt.s32.totalorder %v454, 31
    %vm519 = vcmp.lt.s32.totalorder %v455, 31
    %vm520 = vcmp.lt.s32.totalorder %v456, 31
    %vm521 = vcmp.lt.s32.totalorder %v457, 31
    %vm522 = vcmp.lt.s32.totalorder %v458, 31
    %vm523 = vcmp.lt.s32.totalorder %v459, 31
    %vm524 = vcmp.lt.s32.totalorder %v460, 31
    %vm525 = vcmp.lt.s32.totalorder %v461, 31
    %vm526 = vcmp.lt.s32.totalorder %v462, 31
    %vm527 = vcmp.lt.s32.totalorder %v463, 31
    %vm528 = vcmp.lt.s32.totalorder %v464, 31
    %vm529 = vcmp.lt.s32.totalorder %v465, 31
    %vm530 = vcmp.lt.s32.totalorder %v466, 31
    %vm531 = vcmp.lt.s32.totalorder %v467, 31
    %vm532 = vcmp.lt.s32.totalorder %v468, 31
    %vm533 = vcmp.lt.s32.totalorder %v469, 31
    %vm534 = vcmp.lt.s32.totalorder %v470, 31
    %vm535 = vcmp.lt.s32.totalorder %v471, 31
    %vm536 = vcmp.lt.s32.totalorder %v472, 31
    %vm537 = vcmp.lt.s32.totalorder %v473, 31
    %vm538 = vcmp.lt.s32.totalorder %v474, 31
    %vm539 = vcmp.lt.s32.totalorder %v475, 31
    %vm540 = vcmp.lt.s32.totalorder %v476, 31
    %vm541 = vcmp.lt.s32.totalorder %v477, 31
    %vm542 = vcmp.lt.s32.totalorder %v478, 31
    %vm543 = vcmp.lt.s32.totalorder %v479, 31
    %vm544 = vcmp.lt.s32.totalorder %v480, 31
    %vm545 = vcmp.lt.s32.totalorder %v481, 31
    %vm546 = vcmp.lt.s32.totalorder %v482, 31
    %vm547 = vcmp.lt.s32.totalorder %v483, 31
    %vm548 = vcmp.lt.s32.totalorder %v484, 31
    %vm549 = vcmp.lt.s32.totalorder %v485, 31
    %vm550 = vcmp.ge.s32.totalorder %v454, 2
    %vm551 = vcmp.ge.s32.totalorder %v455, 2
    %vm552 = vcmp.ge.s32.totalorder %v456, 2
    %vm553 = vcmp.ge.s32.totalorder %v457, 2
    %vm554 = vcmp.ge.s32.totalorder %v458, 2
    %vm555 = vcmp.ge.s32.totalorder %v459, 2
    %vm556 = vcmp.ge.s32.totalorder %v460, 2
    %vm557 = vcmp.ge.s32.totalorder %v461, 2
    %vm558 = vcmp.ge.s32.totalorder %v462, 2
    %vm559 = vcmp.ge.s32.totalorder %v463, 2
    %vm560 = vcmp.ge.s32.totalorder %v464, 2
    %vm561 = vcmp.ge.s32.totalorder %v465, 2
    %vm562 = vcmp.ge.s32.totalorder %v466, 2
    %vm563 = vcmp.ge.s32.totalorder %v467, 2
    %vm564 = vcmp.ge.s32.totalorder %v468, 2
    %vm565 = vcmp.ge.s32.totalorder %v469, 2
    %vm566 = vcmp.ge.s32.totalorder %v470, 2
    %vm567 = vcmp.ge.s32.totalorder %v471, 2
    %vm568 = vcmp.ge.s32.totalorder %v472, 2
    %vm569 = vcmp.ge.s32.totalorder %v473, 2
    %vm570 = vcmp.ge.s32.totalorder %v474, 2
    %vm571 = vcmp.ge.s32.totalorder %v475, 2
    %vm572 = vcmp.ge.s32.totalorder %v476, 2
    %vm573 = vcmp.ge.s32.totalorder %v477, 2
    %vm574 = vcmp.ge.s32.totalorder %v478, 2
    %vm575 = vcmp.ge.s32.totalorder %v479, 2
    %vm576 = vcmp.ge.s32.totalorder %v480, 2
    %vm577 = vcmp.ge.s32.totalorder %v481, 2
    %vm578 = vcmp.ge.s32.totalorder %v482, 2
    %vm579 = vcmp.ge.s32.totalorder %v483, 2
    %vm580 = vcmp.ge.s32.totalorder %v484, 2
    %vm581 = vcmp.ge.s32.totalorder %v485, 2
    %vm582 = vcmp.lt.s32.totalorder %v454, 30
    %vm583 = vcmp.lt.s32.totalorder %v455, 30
    %vm584 = vcmp.lt.s32.totalorder %v456, 30
    %vm585 = vcmp.lt.s32.totalorder %v457, 30
    %vm586 = vcmp.lt.s32.totalorder %v458, 30
    %vm587 = vcmp.lt.s32.totalorder %v459, 30
    %vm588 = vcmp.lt.s32.totalorder %v460, 30
    %vm589 = vcmp.lt.s32.totalorder %v461, 30
    %vm590 = vcmp.lt.s32.totalorder %v462, 30
    %vm591 = vcmp.lt.s32.totalorder %v463, 30
    %vm592 = vcmp.lt.s32.totalorder %v464, 30
    %vm593 = vcmp.lt.s32.totalorder %v465, 30
    %vm594 = vcmp.lt.s32.totalorder %v466, 30
    %vm595 = vcmp.lt.s32.totalorder %v467, 30
    %vm596 = vcmp.lt.s32.totalorder %v468, 30
    %vm597 = vcmp.lt.s32.totalorder %v469, 30
    %vm598 = vcmp.lt.s32.totalorder %v470, 30
    %vm599 = vcmp.lt.s32.totalorder %v471, 30
    %vm600 = vcmp.lt.s32.totalorder %v472, 30
    %vm601 = vcmp.lt.s32.totalorder %v473, 30
    %vm602 = vcmp.lt.s32.totalorder %v474, 30
    %vm603 = vcmp.lt.s32.totalorder %v475, 30
    %vm604 = vcmp.lt.s32.totalorder %v476, 30
    %vm605 = vcmp.lt.s32.totalorder %v477, 30
    %vm606 = vcmp.lt.s32.totalorder %v478, 30
    %vm607 = vcmp.lt.s32.totalorder %v479, 30
    %vm608 = vcmp.lt.s32.totalorder %v480, 30
    %vm609 = vcmp.lt.s32.totalorder %v481, 30
    %vm610 = vcmp.lt.s32.totalorder %v482, 30
    %vm611 = vcmp.lt.s32.totalorder %v483, 30
    %vm612 = vcmp.lt.s32.totalorder %v484, 30
    %vm613 = vcmp.lt.s32.totalorder %v485, 30
    %v614 = vpack.c.bf16 %v38, %v37
    %v615 = vpack.c.bf16 %v40, %v39
    %v616 = vpack.c.bf16 %v42, %v41
    %v617 = vpack.c.bf16 %v44, %v43
    %v618 = vpack.c.bf16 %v46, %v45
    %v619 = vpack.c.bf16 %v48, %v47
    %v620 = vpack.c.bf16 %v50, %v49
    %v621 = vpack.c.bf16 %v52, %v51
    %v622 = vpack.c.bf16 %v54, %v53
    %v623 = vpack.c.bf16 %v56, %v55
    %v624 = vpack.c.bf16 %v58, %v57
    %v625 = vpack.c.bf16 %v60, %v59
    %v626 = vpack.c.bf16 %v62, %v61
    %v627 = vpack.c.bf16 %v64, %v63
    %v628 = vpack.c.bf16 %v66, %v65
    %v629 = vpack.c.bf16 %v68, %v67
    %v630 = vld [vmem:[%s1] sm:$0xff]
    %v631 = vld [vmem:[%s1 + $0x8] sm:$0xff]
    %v632 = vld [vmem:[%s1 + $0x10] sm:$0xff]
    %v633 = vld [vmem:[%s2] sm:$0x3]
    %v635 = vperm.slane %v633, 0
    %v636 = vperm.slane %v633, 1
    %v642 = vunpack.c.l.b16 %v630
    %v643 = vunpack.c.h.b16 %v630
    %v644 = vunpack.c.l.b16 %v631
    %v645 = vunpack.c.h.b16 %v631
    %v646 = vunpack.c.l.b16 %v632
    %v647 = vunpack.c.h.b16 %v632
    %v648 = vpack.c.b16 %v644, %v642
    %v649 = vpack.c.b16 %v645, %v643
    %v650 = vpack.c.b16 %v646, %v646
    %v651 = vpack.c.b16 %v647, %v647
    %vm654 = vcmask 195584
    %v656 = vsel %vm654, %v614, 0
    %v659 = vsel %vm654, %v615, 0
    %v662 = vsel %vm654, %v616, 0
    %v665 = vsel %vm654, %v617, 0
    %v668 = vsel %vm654, %v618, 0
    %v671 = vsel %vm654, %v619, 0
    %v674 = vsel %vm654, %v620, 0
    %v677 = vsel %vm654, %v621, 0
    %v680 = vsel %vm654, %v622, 0
    %v683 = vsel %vm654, %v623, 0
    %v686 = vsel %vm654, %v624, 0
    %v689 = vsel %vm654, %v625, 0
    %v692 = vsel %vm654, %v626, 0
    %v695 = vsel %vm654, %v627, 0
    %v698 = vsel %vm654, %v628, 0
    %v701 = vsel %vm654, %v629, 0
    %vm703 = vcmask 1043456
    %v705 = vsel %vm703, %v650, 0
    %v708 = vsel %vm703, %v651, 0
    %710 = vmatpush.bf16.msra.mxu0 0
    %711 = vmatpush.bf16.msra.mxu0 0
    %712 = vmatpush.bf16.msra.mxu0 0
    %713 = vmatpush.bf16.msra.mxu0 0
    %714 = vmatpush.bf16.msra.mxu0 0
    %715 = vmatpush.bf16.msra.mxu0 0
    %716 = vmatpush.bf16.msra.mxu0 %v705
    %717 = vmatpush.bf16.msra.mxu0 %v648
    %718 = vmatmul.bf16.gmra.mxu0 %v656
    %v719 = vpop.f32.mrf.mxu0
    %v720 = vadd.f32 %v635, %v719
    %v721 = vpop.f32.mrf.mxu0
    %v722 = vadd.f32 %v635, %v721
    %723 = vmatmul.bf16.gmra.mxu0 %v659
    %v724 = vpop.f32.mrf.mxu0
    %v725 = vadd.f32 %v635, %v724
    %v726 = vpop.f32.mrf.mxu0
    %v727 = vadd.f32 %v635, %v726
    %728 = vmatmul.bf16.gmra.mxu0 %v662
    %v729 = vpop.f32.mrf.mxu0
    %v730 = vadd.f32 %v635, %v729
    %v731 = vpop.f32.mrf.mxu0
    %v732 = vadd.f32 %v635, %v731
    %733 = vmatmul.bf16.gmra.mxu0 %v665
    %v734 = vpop.f32.mrf.mxu0
    %v735 = vadd.f32 %v635, %v734
    %v736 = vpop.f32.mrf.mxu0
    %v737 = vadd.f32 %v635, %v736
    %738 = vmatmul.bf16.gmra.mxu0 %v668
    %v739 = vpop.f32.mrf.mxu0
    %v740 = vadd.f32 %v635, %v739
    %v741 = vpop.f32.mrf.mxu0
    %v742 = vadd.f32 %v635, %v741
    %743 = vmatmul.bf16.gmra.mxu0 %v671
    %v744 = vpop.f32.mrf.mxu0
    %v745 = vadd.f32 %v635, %v744
    %v746 = vpop.f32.mrf.mxu0
    %v747 = vadd.f32 %v635, %v746
    %748 = vmatmul.bf16.gmra.mxu0 %v674
    %v749 = vpop.f32.mrf.mxu0
    %v750 = vadd.f32 %v635, %v749
    %v751 = vpop.f32.mrf.mxu0
    %v752 = vadd.f32 %v635, %v751
    %753 = vmatmul.bf16.gmra.mxu0 %v677
    %v754 = vpop.f32.mrf.mxu0
    %v755 = vadd.f32 %v635, %v754
    %v756 = vpop.f32.mrf.mxu0
    %v757 = vadd.f32 %v635, %v756
    %758 = vmatmul.bf16.gmra.mxu0 %v680
    %v759 = vpop.f32.mrf.mxu0
    %v760 = vadd.f32 %v635, %v759
    %v761 = vpop.f32.mrf.mxu0
    %v762 = vadd.f32 %v635, %v761
    %763 = vmatmul.bf16.gmra.mxu0 %v683
    %v764 = vpop.f32.mrf.mxu0
    %v765 = vadd.f32 %v635, %v764
    %v766 = vpop.f32.mrf.mxu0
    %v767 = vadd.f32 %v635, %v766
    %768 = vmatmul.bf16.gmra.mxu0 %v686
    %v769 = vpop.f32.mrf.mxu0
    %v770 = vadd.f32 %v635, %v769
    %v771 = vpop.f32.mrf.mxu0
    %v772 = vadd.f32 %v635, %v771
    %773 = vmatmul.bf16.gmra.mxu0 %v689
    %v774 = vpop.f32.mrf.mxu0
    %v775 = vadd.f32 %v635, %v774
    %v776 = vpop.f32.mrf.mxu0
    %v777 = vadd.f32 %v635, %v776
    %778 = vmatmul.bf16.gmra.mxu0 %v692
    %v779 = vpop.f32.mrf.mxu0
    %v780 = vadd.f32 %v635, %v779
    %v781 = vpop.f32.mrf.mxu0
    %v782 = vadd.f32 %v635, %v781
    %783 = vmatmul.bf16.gmra.mxu0 %v695
    %v784 = vpop.f32.mrf.mxu0
    %v785 = vadd.f32 %v635, %v784
    %v786 = vpop.f32.mrf.mxu0
    %v787 = vadd.f32 %v635, %v786
    %788 = vmatmul.bf16.gmra.mxu0 %v698
    %v789 = vpop.f32.mrf.mxu0
    %v790 = vadd.f32 %v635, %v789
    %v791 = vpop.f32.mrf.mxu0
    %v792 = vadd.f32 %v635, %v791
    %793 = vmatmul.bf16.gmra.mxu0 %v701
    %v794 = vpop.f32.mrf.mxu0
    %v795 = vadd.f32 %v635, %v794
    %v796 = vpop.f32.mrf.mxu0
    %v797 = vadd.f32 %v635, %v796
    %798 = vdwg.mxu0
    %799 = vmatpush.bf16.msra.mxu0 0
    %800 = vmatpush.bf16.msra.mxu0 0
    %801 = vmatpush.bf16.msra.mxu0 0
    %802 = vmatpush.bf16.msra.mxu0 0
    %803 = vmatpush.bf16.msra.mxu0 0
    %804 = vmatpush.bf16.msra.mxu0 0
    %805 = vmatpush.bf16.msra.mxu0 %v708
    %806 = vmatpush.bf16.msra.mxu0 %v649
    %807 = vmatmul.bf16.gmra.mxu0 %v656
    %v808 = vpop.f32.mrf.mxu0
    %v809 = vadd.f32 %v636, %v808
    %v810 = vpop.f32.mrf.mxu0
    %v811 = vadd.f32 %v636, %v810
    %812 = vmatmul.bf16.gmra.mxu0 %v659
    %v813 = vpop.f32.mrf.mxu0
    %v814 = vadd.f32 %v636, %v813
    %v815 = vpop.f32.mrf.mxu0
    %v816 = vadd.f32 %v636, %v815
    %817 = vmatmul.bf16.gmra.mxu0 %v662
    %v818 = vpop.f32.mrf.mxu0
    %v819 = vadd.f32 %v636, %v818
    %v820 = vpop.f32.mrf.mxu0
    %v821 = vadd.f32 %v636, %v820
    %822 = vmatmul.bf16.gmra.mxu0 %v665
    %v823 = vpop.f32.mrf.mxu0
    %v824 = vadd.f32 %v636, %v823
    %v825 = vpop.f32.mrf.mxu0
    %v826 = vadd.f32 %v636, %v825
    %827 = vmatmul.bf16.gmra.mxu0 %v668
    %v828 = vpop.f32.mrf.mxu0
    %v829 = vadd.f32 %v636, %v828
    %v830 = vpop.f32.mrf.mxu0
    %v831 = vadd.f32 %v636, %v830
    %832 = vmatmul.bf16.gmra.mxu0 %v671
    %v833 = vpop.f32.mrf.mxu0
    %v834 = vadd.f32 %v636, %v833
    %v835 = vpop.f32.mrf.mxu0
    %v836 = vadd.f32 %v636, %v835
    %837 = vmatmul.bf16.gmra.mxu0 %v674
    %v838 = vpop.f32.mrf.mxu0
    %v839 = vadd.f32 %v636, %v838
    %v840 = vpop.f32.mrf.mxu0
    %v841 = vadd.f32 %v636, %v840
    %842 = vmatmul.bf16.gmra.mxu0 %v677
    %v843 = vpop.f32.mrf.mxu0
    %v844 = vadd.f32 %v636, %v843
    %v845 = vpop.f32.mrf.mxu0
    %v846 = vadd.f32 %v636, %v845
    %847 = vmatmul.bf16.gmra.mxu0 %v680
    %v848 = vpop.f32.mrf.mxu0
    %v849 = vadd.f32 %v636, %v848
    %v850 = vpop.f32.mrf.mxu0
    %v851 = vadd.f32 %v636, %v850
    %852 = vmatmul.bf16.gmra.mxu0 %v683
    %v853 = vpop.f32.mrf.mxu0
    %v854 = vadd.f32 %v636, %v853
    %v855 = vpop.f32.mrf.mxu0
    %v856 = vadd.f32 %v636, %v855
    %857 = vmatmul.bf16.gmra.mxu0 %v686
    %v858 = vpop.f32.mrf.mxu0
    %v859 = vadd.f32 %v636, %v858
    %v860 = vpop.f32.mrf.mxu0
    %v861 = vadd.f32 %v636, %v860
    %862 = vmatmul.bf16.gmra.mxu0 %v689
    %v863 = vpop.f32.mrf.mxu0
    %v864 = vadd.f32 %v636, %v863
    %v865 = vpop.f32.mrf.mxu0
    %v866 = vadd.f32 %v636, %v865
    %867 = vmatmul.bf16.gmra.mxu0 %v692
    %v868 = vpop.f32.mrf.mxu0
    %v869 = vadd.f32 %v636, %v868
    %v870 = vpop.f32.mrf.mxu0
    %v871 = vadd.f32 %v636, %v870
    %872 = vmatmul.bf16.gmra.mxu0 %v695
    %v873 = vpop.f32.mrf.mxu0
    %v874 = vadd.f32 %v636, %v873
    %v875 = vpop.f32.mrf.mxu0
    %v876 = vadd.f32 %v636, %v875
    %877 = vmatmul.bf16.gmra.mxu0 %v698
    %v878 = vpop.f32.mrf.mxu0
    %v879 = vadd.f32 %v636, %v878
    %v880 = vpop.f32.mrf.mxu0
    %v881 = vadd.f32 %v636, %v880
    %882 = vmatmul.bf16.gmra.mxu0 %v701
    %v883 = vpop.f32.mrf.mxu0
    %v884 = vadd.f32 %v636, %v883
    %v885 = vpop.f32.mrf.mxu0
    %v886 = vadd.f32 %v636, %v885
    %887 = vdwg.mxu0
    %v888 = vmax.f32 %v720, 0.0
    %v889 = vmax.f32 %v809, 0.0
    %v890 = vmax.f32 %v722, 0.0
    %v891 = vmax.f32 %v811, 0.0
    %v892 = vmax.f32 %v725, 0.0
    %v893 = vmax.f32 %v814, 0.0
    %v894 = vmax.f32 %v727, 0.0
    %v895 = vmax.f32 %v816, 0.0
    %v896 = vmax.f32 %v730, 0.0
    %v897 = vmax.f32 %v819, 0.0
    %v898 = vmax.f32 %v732, 0.0
    %v899 = vmax.f32 %v821, 0.0
    %v900 = vmax.f32 %v735, 0.0
    %v901 = vmax.f32 %v824, 0.0
    %v902 = vmax.f32 %v737, 0.0
    %v903 = vmax.f32 %v826, 0.0
    %v904 = vmax.f32 %v740, 0.0
    %v905 = vmax.f32 %v829, 0.0
    %v906 = vmax.f32 %v742, 0.0
    %v907 = vmax.f32 %v831, 0.0
    %v908 = vmax.f32 %v745, 0.0
    %v909 = vmax.f32 %v834, 0.0
    %v910 = vmax.f32 %v747, 0.0
    %v911 = vmax.f32 %v836, 0.0
    %v912 = vmax.f32 %v750, 0.0
    %v913 = vmax.f32 %v839, 0.0
    %v914 = vmax.f32 %v752, 0.0
    %v915 = vmax.f32 %v841, 0.0
    %v916 = vmax.f32 %v755, 0.0
    %v917 = vmax.f32 %v844, 0.0
    %v918 = vmax.f32 %v757, 0.0
    %v919 = vmax.f32 %v846, 0.0
    %v920 = vmax.f32 %v760, 0.0
    %v921 = vmax.f32 %v849, 0.0
    %v922 = vmax.f32 %v762, 0.0
    %v923 = vmax.f32 %v851, 0.0
    %v924 = vmax.f32 %v765, 0.0
    %v925 = vmax.f32 %v854, 0.0
    %v926 = vmax.f32 %v767, 0.0
    %v927 = vmax.f32 %v856, 0.0
    %v928 = vmax.f32 %v770, 0.0
    %v929 = vmax.f32 %v859, 0.0
    %v930 = vmax.f32 %v772, 0.0
    %v931 = vmax.f32 %v861, 0.0
    %v932 = vmax.f32 %v775, 0.0
    %v933 = vmax.f32 %v864, 0.0
    %v934 = vmax.f32 %v777, 0.0
    %v935 = vmax.f32 %v866, 0.0
    %v936 = vmax.f32 %v780, 0.0
    %v937 = vmax.f32 %v869, 0.0
    %v938 = vmax.f32 %v782, 0.0
    %v939 = vmax.f32 %v871, 0.0
    %v940 = vmax.f32 %v785, 0.0
    %v941 = vmax.f32 %v874, 0.0
    %v942 = vmax.f32 %v787, 0.0
    %v943 = vmax.f32 %v876, 0.0
    %v944 = vmax.f32 %v790, 0.0
    %v945 = vmax.f32 %v879, 0.0
    %v946 = vmax.f32 %v792, 0.0
    %v947 = vmax.f32 %v881, 0.0
    %v948 = vmax.f32 %v795, 0.0
    %v949 = vmax.f32 %v884, 0.0
    %v950 = vmax.f32 %v797, 0.0
    %v951 = vmax.f32 %v886, 0.0
    %v952 = vpack.c.bf16 %v890, %v888
    %v953 = vpack.c.bf16 %v891, %v889
    %v954 = vpack.c.bf16 %v894, %v892
    %v955 = vpack.c.bf16 %v895, %v893
    %v956 = vpack.c.bf16 %v898, %v896
    %v957 = vpack.c.bf16 %v899, %v897
    %v958 = vpack.c.bf16 %v902, %v900
    %v959 = vpack.c.bf16 %v903, %v901
    %v960 = vpack.c.bf16 %v906, %v904
    %v961 = vpack.c.bf16 %v907, %v905
    %v962 = vpack.c.bf16 %v910, %v908
    %v963 = vpack.c.bf16 %v911, %v909
    %v964 = vpack.c.bf16 %v914, %v912
    %v965 = vpack.c.bf16 %v915, %v913
    %v966 = vpack.c.bf16 %v918, %v916
    %v967 = vpack.c.bf16 %v919, %v917
    %v968 = vpack.c.bf16 %v922, %v920
    %v969 = vpack.c.bf16 %v923, %v921
    %v970 = vpack.c.bf16 %v926, %v924
    %v971 = vpack.c.bf16 %v927, %v925
    %v972 = vpack.c.bf16 %v930, %v928
    %v973 = vpack.c.bf16 %v931, %v929
    %v974 = vpack.c.bf16 %v934, %v932
    %v975 = vpack.c.bf16 %v935, %v933
    %v976 = vpack.c.bf16 %v938, %v936
    %v977 = vpack.c.bf16 %v939, %v937
    %v978 = vpack.c.bf16 %v942, %v940
    %v979 = vpack.c.bf16 %v943, %v941
    %v980 = vpack.c.bf16 %v946, %v944
    %v981 = vpack.c.bf16 %v947, %v945
    %v982 = vpack.c.bf16 %v950, %v948
    %v983 = vpack.c.bf16 %v951, %v949
    %v984 = vld [vmem:[%s3] sm:$0xf]
    %v985 = vld [vmem:[%s3 + $0x4] sm:$0xf]
    %v986 = vld [vmem:[%s3 + $0x8] sm:$0xf]
    %v987 = vld [vmem:[%s3 + $0xc] sm:$0xf]
    %v988 = vld [vmem:[%s3 + $0x10] sm:$0xf]
    %v989 = vld [vmem:[%s3 + $0x14] sm:$0xf]
    %v990 = vld [vmem:[%s3 + $0x18] sm:$0xf]
    %v991 = vld [vmem:[%s3 + $0x1c] sm:$0xf]
    %v992 = vld [vmem:[%s3 + $0x20] sm:$0xf]
    %v993 = vld [vmem:[%s3 + $0x24] sm:$0xf]
    %v994 = vld [vmem:[%s3 + $0x28] sm:$0xf]
    %v995 = vld [vmem:[%s3 + $0x2c] sm:$0xf]
    %v996 = vld [vmem:[%s3 + $0x30] sm:$0xf]
    %v997 = vld [vmem:[%s3 + $0x34] sm:$0xf]
    %v998 = vld [vmem:[%s3 + $0x38] sm:$0xf]
    %v999 = vld [vmem:[%s3 + $0x3c] sm:$0xf]
    %v1000 = vld [vmem:[%s3 + $0x40] sm:$0xf]
    %v1001 = vld [vmem:[%s3 + $0x44] sm:$0xf]
    %v1002 = vld [vmem:[%s3 + $0x48] sm:$0xf]
    %v1003 = vld [vmem:[%s3 + $0x4c] sm:$0xf]
    %v1004 = vld [vmem:[%s3 + $0x50] sm:$0xf]
    %v1005 = vld [vmem:[%s3 + $0x54] sm:$0xf]
    %v1006 = vld [vmem:[%s3 + $0x58] sm:$0xf]
    %v1007 = vld [vmem:[%s3 + $0x5c] sm:$0xf]
    %v1008 = vld [vmem:[%s4] sm:$0x1]
    %v1010 = vperm.slane %v1008, 0
    %v1036 = vunpack.c.l.b16 %v984
    %v1037 = vunpack.c.l.b16 %v985
    %v1038 = vunpack.c.l.b16 %v986
    %v1039 = vunpack.c.l.b16 %v987
    %v1040 = vunpack.c.l.b16 %v988
    %v1041 = vunpack.c.l.b16 %v989
    %v1042 = vunpack.c.l.b16 %v990
    %v1043 = vunpack.c.l.b16 %v991
    %v1044 = vunpack.c.l.b16 %v992
    %v1045 = vunpack.c.l.b16 %v993
    %v1046 = vunpack.c.l.b16 %v994
    %v1047 = vunpack.c.l.b16 %v995
    %v1048 = vunpack.c.l.b16 %v996
    %v1049 = vunpack.c.l.b16 %v997
    %v1050 = vunpack.c.l.b16 %v998
    %v1051 = vunpack.c.l.b16 %v999
    %v1052 = vunpack.c.l.b16 %v1000
    %v1053 = vunpack.c.l.b16 %v1001
    %v1054 = vunpack.c.l.b16 %v1002
    %v1055 = vunpack.c.l.b16 %v1003
    %v1056 = vunpack.c.l.b16 %v1004
    %v1057 = vunpack.c.l.b16 %v1005
    %v1058 = vunpack.c.l.b16 %v1006
    %v1059 = vunpack.c.l.b16 %v1007
    %v1060 = vpack.c.b16 %v1037, %v1036
    %v1061 = vpack.c.b16 %v1039, %v1038
    %v1062 = vpack.c.b16 %v1041, %v1040
    %v1063 = vpack.c.b16 %v1043, %v1042
    %v1064 = vpack.c.b16 %v1045, %v1044
    %v1065 = vpack.c.b16 %v1047, %v1046
    %v1066 = vpack.c.b16 %v1049, %v1048
    %v1067 = vpack.c.b16 %v1051, %v1050
    %v1068 = vpack.c.b16 %v1053, %v1052
    %v1069 = vpack.c.b16 %v1055, %v1054
    %v1070 = vpack.c.b16 %v1057, %v1056
    %v1071 = vpack.c.b16 %v1059, %v1058
    %vm1084 = vcmask 523264
    %v1086 = vsel %vm1084, %v953, 0
    %v1089 = vsel %vm1084, %v955, 0
    %v1092 = vsel %vm1084, %v957, 0
    %v1095 = vsel %vm1084, %v959, 0
    %v1098 = vsel %vm1084, %v961, 0
    %v1101 = vsel %vm1084, %v963, 0
    %v1104 = vsel %vm1084, %v965, 0
    %v1107 = vsel %vm1084, %v967, 0
    %v1110 = vsel %vm1084, %v969, 0
    %v1113 = vsel %vm1084, %v971, 0
    %v1116 = vsel %vm1084, %v973, 0
    %v1119 = vsel %vm1084, %v975, 0
    %v1122 = vsel %vm1084, %v977, 0
    %v1125 = vsel %vm1084, %v979, 0
    %v1128 = vsel %vm1084, %v981, 0
    %v1131 = vsel %vm1084, %v983, 0
    %1133 = vmatpush.bf16.msra.mxu0 %v1067
    %1134 = vmatpush.bf16.msra.mxu0 %v1066
    %1135 = vmatpush.bf16.msra.mxu0 %v1065
    %1136 = vmatpush.bf16.msra.mxu0 %v1064
    %1137 = vmatpush.bf16.msra.mxu0 %v1063
    %1138 = vmatpush.bf16.msra.mxu0 %v1062
    %1139 = vmatpush.bf16.msra.mxu0 %v1061
    %1140 = vmatpush.bf16.msra.mxu0 %v1060
    %1141 = vmatmul.bf16.gmra.mxu0 %v952
    %v1142 = vpop.f32.mrf.mxu0
    %v1143 = vadd.f32 %v1010, %v1142
    %v1144 = vpop.f32.mrf.mxu0
    %v1145 = vadd.f32 %v1010, %v1144
    %1146 = vmatmul.bf16.gmra.mxu0 %v954
    %v1147 = vpop.f32.mrf.mxu0
    %v1148 = vadd.f32 %v1010, %v1147
    %v1149 = vpop.f32.mrf.mxu0
    %v1150 = vadd.f32 %v1010, %v1149
    %1151 = vmatmul.bf16.gmra.mxu0 %v956
    %v1152 = vpop.f32.mrf.mxu0
    %v1153 = vadd.f32 %v1010, %v1152
    %v1154 = vpop.f32.mrf.mxu0
    %v1155 = vadd.f32 %v1010, %v1154
    %1156 = vmatmul.bf16.gmra.mxu0 %v958
    %v1157 = vpop.f32.mrf.mxu0
    %v1158 = vadd.f32 %v1010, %v1157
    %v1159 = vpop.f32.mrf.mxu0
    %v1160 = vadd.f32 %v1010, %v1159
    %1161 = vmatmul.bf16.gmra.mxu0 %v960
    %v1162 = vpop.f32.mrf.mxu0
    %v1163 = vadd.f32 %v1010, %v1162
    %v1164 = vpop.f32.mrf.mxu0
    %v1165 = vadd.f32 %v1010, %v1164
    %1166 = vmatmul.bf16.gmra.mxu0 %v962
    %v1167 = vpop.f32.mrf.mxu0
    %v1168 = vadd.f32 %v1010, %v1167
    %v1169 = vpop.f32.mrf.mxu0
    %v1170 = vadd.f32 %v1010, %v1169
    %1171 = vmatmul.bf16.gmra.mxu0 %v964
    %v1172 = vpop.f32.mrf.mxu0
    %v1173 = vadd.f32 %v1010, %v1172
    %v1174 = vpop.f32.mrf.mxu0
    %v1175 = vadd.f32 %v1010, %v1174
    %1176 = vmatmul.bf16.gmra.mxu0 %v966
    %v1177 = vpop.f32.mrf.mxu0
    %v1178 = vadd.f32 %v1010, %v1177
    %v1179 = vpop.f32.mrf.mxu0
    %v1180 = vadd.f32 %v1010, %v1179
    %1181 = vmatmul.bf16.gmra.mxu0 %v968
    %v1182 = vpop.f32.mrf.mxu0
    %v1183 = vadd.f32 %v1010, %v1182
    %v1184 = vpop.f32.mrf.mxu0
    %v1185 = vadd.f32 %v1010, %v1184
    %1186 = vmatmul.bf16.gmra.mxu0 %v970
    %v1187 = vpop.f32.mrf.mxu0
    %v1188 = vadd.f32 %v1010, %v1187
    %v1189 = vpop.f32.mrf.mxu0
    %v1190 = vadd.f32 %v1010, %v1189
    %1191 = vmatmul.bf16.gmra.mxu0 %v972
    %v1192 = vpop.f32.mrf.mxu0
    %v1193 = vadd.f32 %v1010, %v1192
    %v1194 = vpop.f32.mrf.mxu0
    %v1195 = vadd.f32 %v1010, %v1194
    %1196 = vmatmul.bf16.gmra.mxu0 %v974
    %v1197 = vpop.f32.mrf.mxu0
    %v1198 = vadd.f32 %v1010, %v1197
    %v1199 = vpop.f32.mrf.mxu0
    %v1200 = vadd.f32 %v1010, %v1199
    %1201 = vmatmul.bf16.gmra.mxu0 %v976
    %v1202 = vpop.f32.mrf.mxu0
    %v1203 = vadd.f32 %v1010, %v1202
    %v1204 = vpop.f32.mrf.mxu0
    %v1205 = vadd.f32 %v1010, %v1204
    %1206 = vmatmul.bf16.gmra.mxu0 %v978
    %v1207 = vpop.f32.mrf.mxu0
    %v1208 = vadd.f32 %v1010, %v1207
    %v1209 = vpop.f32.mrf.mxu0
    %v1210 = vadd.f32 %v1010, %v1209
    %1211 = vmatmul.bf16.gmra.mxu0 %v980
    %v1212 = vpop.f32.mrf.mxu0
    %v1213 = vadd.f32 %v1010, %v1212
    %v1214 = vpop.f32.mrf.mxu0
    %v1215 = vadd.f32 %v1010, %v1214
    %1216 = vmatmul.bf16.gmra.mxu0 %v982
    %v1217 = vpop.f32.mrf.mxu0
    %v1218 = vadd.f32 %v1010, %v1217
    %v1219 = vpop.f32.mrf.mxu0
    %v1220 = vadd.f32 %v1010, %v1219
    %1221 = vdwg.mxu0
    %1222 = vmatpush.bf16.msra.mxu0 0
    %1223 = vmatpush.bf16.msra.mxu0 0
    %1224 = vmatpush.bf16.msra.mxu0 0
    %1225 = vmatpush.bf16.msra.mxu0 0
    %1226 = vmatpush.bf16.msra.mxu0 %v1071
    %1227 = vmatpush.bf16.msra.mxu0 %v1070
    %1228 = vmatpush.bf16.msra.mxu0 %v1069
    %1229 = vmatpush.bf16.msra.mxu0 %v1068
    %1230 = vmatmul.bf16.gmra.mxu0 %v1086
    %v1231 = vpop.f32.mrf.mxu0
    %v1232 = vadd.f32 %v1143, %v1231
    %v1233 = vpop.f32.mrf.mxu0
    %v1234 = vadd.f32 %v1145, %v1233
    %1235 = vmatmul.bf16.gmra.mxu0 %v1089
    %v1236 = vpop.f32.mrf.mxu0
    %v1237 = vadd.f32 %v1148, %v1236
    %v1238 = vpop.f32.mrf.mxu0
    %v1239 = vadd.f32 %v1150, %v1238
    %1240 = vmatmul.bf16.gmra.mxu0 %v1092
    %v1241 = vpop.f32.mrf.mxu0
    %v1242 = vadd.f32 %v1153, %v1241
    %v1243 = vpop.f32.mrf.mxu0
    %v1244 = vadd.f32 %v1155, %v1243
    %1245 = vmatmul.bf16.gmra.mxu0 %v1095
    %v1246 = vpop.f32.mrf.mxu0
    %v1247 = vadd.f32 %v1158, %v1246
    %v1248 = vpop.f32.mrf.mxu0
    %v1249 = vadd.f32 %v1160, %v1248
    %1250 = vmatmul.bf16.gmra.mxu0 %v1098
    %v1251 = vpop.f32.mrf.mxu0
    %v1252 = vadd.f32 %v1163, %v1251
    %v1253 = vpop.f32.mrf.mxu0
    %v1254 = vadd.f32 %v1165, %v1253
    %1255 = vmatmul.bf16.gmra.mxu0 %v1101
    %v1256 = vpop.f32.mrf.mxu0
    %v1257 = vadd.f32 %v1168, %v1256
    %v1258 = vpop.f32.mrf.mxu0
    %v1259 = vadd.f32 %v1170, %v1258
    %1260 = vmatmul.bf16.gmra.mxu0 %v1104
    %v1261 = vpop.f32.mrf.mxu0
    %v1262 = vadd.f32 %v1173, %v1261
    %v1263 = vpop.f32.mrf.mxu0
    %v1264 = vadd.f32 %v1175, %v1263
    %1265 = vmatmul.bf16.gmra.mxu0 %v1107
    %v1266 = vpop.f32.mrf.mxu0
    %v1267 = vadd.f32 %v1178, %v1266
    %v1268 = vpop.f32.mrf.mxu0
    %v1269 = vadd.f32 %v1180, %v1268
    %1270 = vmatmul.bf16.gmra.mxu0 %v1110
    %v1271 = vpop.f32.mrf.mxu0
    %v1272 = vadd.f32 %v1183, %v1271
    %v1273 = vpop.f32.mrf.mxu0
    %v1274 = vadd.f32 %v1185, %v1273
    %1275 = vmatmul.bf16.gmra.mxu0 %v1113
    %v1276 = vpop.f32.mrf.mxu0
    %v1277 = vadd.f32 %v1188, %v1276
    %v1278 = vpop.f32.mrf.mxu0
    %v1279 = vadd.f32 %v1190, %v1278
    %1280 = vmatmul.bf16.gmra.mxu0 %v1116
    %v1281 = vpop.f32.mrf.mxu0
    %v1282 = vadd.f32 %v1193, %v1281
    %v1283 = vpop.f32.mrf.mxu0
    %v1284 = vadd.f32 %v1195, %v1283
    %1285 = vmatmul.bf16.gmra.mxu0 %v1119
    %v1286 = vpop.f32.mrf.mxu0
    %v1287 = vadd.f32 %v1198, %v1286
    %v1288 = vpop.f32.mrf.mxu0
    %v1289 = vadd.f32 %v1200, %v1288
    %1290 = vmatmul.bf16.gmra.mxu0 %v1122
    %v1291 = vpop.f32.mrf.mxu0
    %v1292 = vadd.f32 %v1203, %v1291
    %v1293 = vpop.f32.mrf.mxu0
    %v1294 = vadd.f32 %v1205, %v1293
    %1295 = vmatmul.bf16.gmra.mxu0 %v1125
    %v1296 = vpop.f32.mrf.mxu0
    %v1297 = vadd.f32 %v1208, %v1296
    %v1298 = vpop.f32.mrf.mxu0
    %v1299 = vadd.f32 %v1210, %v1298
    %1300 = vmatmul.bf16.gmra.mxu0 %v1128
    %v1301 = vpop.f32.mrf.mxu0
    %v1302 = vadd.f32 %v1213, %v1301
    %v1303 = vpop.f32.mrf.mxu0
    %v1304 = vadd.f32 %v1215, %v1303
    %1305 = vmatmul.bf16.gmra.mxu0 %v1131
    %v1306 = vpop.f32.mrf.mxu0
    %v1307 = vadd.f32 %v1218, %v1306
    %v1308 = vpop.f32.mrf.mxu0
    %v1309 = vadd.f32 %v1220, %v1308
    %1310 = vdwg.mxu0
    %v1311 = vmax.f32 %v1232, 0.0
    %v1312 = vmax.f32 %v1234, 0.0
    %v1313 = vmax.f32 %v1237, 0.0
    %v1314 = vmax.f32 %v1239, 0.0
    %v1315 = vmax.f32 %v1242, 0.0
    %v1316 = vmax.f32 %v1244, 0.0
    %v1317 = vmax.f32 %v1247, 0.0
    %v1318 = vmax.f32 %v1249, 0.0
    %v1319 = vmax.f32 %v1252, 0.0
    %v1320 = vmax.f32 %v1254, 0.0
    %v1321 = vmax.f32 %v1257, 0.0
    %v1322 = vmax.f32 %v1259, 0.0
    %v1323 = vmax.f32 %v1262, 0.0
    %v1324 = vmax.f32 %v1264, 0.0
    %v1325 = vmax.f32 %v1267, 0.0
    %v1326 = vmax.f32 %v1269, 0.0
    %v1327 = vmax.f32 %v1272, 0.0
    %v1328 = vmax.f32 %v1274, 0.0
    %v1329 = vmax.f32 %v1277, 0.0
    %v1330 = vmax.f32 %v1279, 0.0
    %v1331 = vmax.f32 %v1282, 0.0
    %v1332 = vmax.f32 %v1284, 0.0
    %v1333 = vmax.f32 %v1287, 0.0
    %v1334 = vmax.f32 %v1289, 0.0
    %v1335 = vmax.f32 %v1292, 0.0
    %v1336 = vmax.f32 %v1294, 0.0
    %v1337 = vmax.f32 %v1297, 0.0
    %v1338 = vmax.f32 %v1299, 0.0
    %v1339 = vmax.f32 %v1302, 0.0
    %v1340 = vmax.f32 %v1304, 0.0
    %v1341 = vmax.f32 %v1307, 0.0
    %v1342 = vmax.f32 %v1309, 0.0
    %v1343 = vrot.slane %v1311, 7
    %v1344 = vrot.slane %v1312, 7
    %v1345 = vrot.slane %v1313, 7
    %v1346 = vrot.slane %v1314, 7
    %v1347 = vrot.slane %v1315, 7
    %v1348 = vrot.slane %v1316, 7
    %v1349 = vrot.slane %v1317, 7
    %v1350 = vrot.slane %v1318, 7
    %v1351 = vrot.slane %v1319, 7
    %v1352 = vrot.slane %v1320, 7
    %v1353 = vrot.slane %v1321, 7
    %v1354 = vrot.slane %v1322, 7
    %v1355 = vrot.slane %v1323, 7
    %v1356 = vrot.slane %v1324, 7
    %v1357 = vrot.slane %v1325, 7
    %v1358 = vrot.slane %v1326, 7
    %v1359 = vrot.slane %v1327, 7
    %v1360 = vrot.slane %v1328, 7
    %v1361 = vrot.slane %v1329, 7
    %v1362 = vrot.slane %v1330, 7
    %v1363 = vrot.slane %v1331, 7
    %v1364 = vrot.slane %v1332, 7
    %v1365 = vrot.slane %v1333, 7
    %v1366 = vrot.slane %v1334, 7
    %v1367 = vrot.slane %v1335, 7
    %v1368 = vrot.slane %v1336, 7
    %v1369 = vrot.slane %v1337, 7
    %v1370 = vrot.slane %v1338, 7
    %v1371 = vrot.slane %v1339, 7
    %v1372 = vrot.slane %v1340, 7
    %v1373 = vrot.slane %v1341, 7
    %v1374 = vrot.slane %v1342, 7
    %vm1375 = vcmp.lt.s32.totalorder %v70, 1
    %v1376 = vsel %vm1375, %v1373, %v1374
    %v1377 = vsel %vm1375, %v1372, %v1373
    %v1378 = vsel %vm1375, %v1371, %v1372
    %v1379 = vsel %vm1375, %v1370, %v1371
    %v1380 = vsel %vm1375, %v1369, %v1370
    %v1381 = vsel %vm1375, %v1368, %v1369
    %v1382 = vsel %vm1375, %v1367, %v1368
    %v1383 = vsel %vm1375, %v1366, %v1367
    %v1384 = vsel %vm1375, %v1365, %v1366
    %v1385 = vsel %vm1375, %v1364, %v1365
    %v1386 = vsel %vm1375, %v1363, %v1364
    %v1387 = vsel %vm1375, %v1362, %v1363
    %v1388 = vsel %vm1375, %v1361, %v1362
    %v1389 = vsel %vm1375, %v1360, %v1361
    %v1390 = vsel %vm1375, %v1359, %v1360
    %v1391 = vsel %vm1375, %v1358, %v1359
    %v1392 = vsel %vm1375, %v1357, %v1358
    %v1393 = vsel %vm1375, %v1356, %v1357
    %v1394 = vsel %vm1375, %v1355, %v1356
    %v1395 = vsel %vm1375, %v1354, %v1355
    %v1396 = vsel %vm1375, %v1353, %v1354
    %v1397 = vsel %vm1375, %v1352, %v1353
    %v1398 = vsel %vm1375, %v1351, %v1352
    %v1399 = vsel %vm1375, %v1350, %v1351
    %v1400 = vsel %vm1375, %v1349, %v1350
    %v1401 = vsel %vm1375, %v1348, %v1349
    %v1402 = vsel %vm1375, %v1347, %v1348
    %v1403 = vsel %vm1375, %v1346, %v1347
    %v1404 = vsel %vm1375, %v1345, %v1346
    %v1405 = vsel %vm1375, %v1344, %v1345
    %v1406 = vsel %vm1375, %v1343, %v1344
    %v1407 = vsel %vm1375, %v1374, %v1343
    %v1408 = vsel %vm486, 1, 0
    %v1409 = vsel %vm487, 1, 0
    %v1410 = vsel %vm488, 1, 0
    %v1411 = vsel %vm489, 1, 0
    %v1412 = vsel %vm490, 1, 0
    %v1413 = vsel %vm491, 1, 0
    %v1414 = vsel %vm492, 1, 0
    %v1415 = vsel %vm493, 1, 0
    %v1416 = vsel %vm494, 1, 0
    %v1417 = vsel %vm495, 1, 0
    %v1418 = vsel %vm496, 1, 0
    %v1419 = vsel %vm497, 1, 0
    %v1420 = vsel %vm498, 1, 0
    %v1421 = vsel %vm499, 1, 0
    %v1422 = vsel %vm500, 1, 0
    %v1423 = vsel %vm501, 1, 0
    %v1424 = vsel %vm502, 1, 0
    %v1425 = vsel %vm503, 1, 0
    %v1426 = vsel %vm504, 1, 0
    %v1427 = vsel %vm505, 1, 0
    %v1428 = vsel %vm506, 1, 0
    %v1429 = vsel %vm507, 1, 0
    %v1430 = vsel %vm508, 1, 0
    %v1431 = vsel %vm509, 1, 0
    %v1432 = vsel %vm510, 1, 0
    %v1433 = vsel %vm511, 1, 0
    %v1434 = vsel %vm512, 1, 0
    %v1435 = vsel %vm513, 1, 0
    %v1436 = vsel %vm514, 1, 0
    %v1437 = vsel %vm515, 1, 0
    %v1438 = vsel %vm516, 1, 0
    %v1439 = vsel %vm517, 1, 0
    %vm1440 = vcmp.eq.s32.totalorder %v1408, 1
    %vm1441 = vcmp.eq.s32.totalorder %v1409, 1
    %vm1442 = vcmp.eq.s32.totalorder %v1410, 1
    %vm1443 = vcmp.eq.s32.totalorder %v1411, 1
    %vm1444 = vcmp.eq.s32.totalorder %v1412, 1
    %vm1445 = vcmp.eq.s32.totalorder %v1413, 1
    %vm1446 = vcmp.eq.s32.totalorder %v1414, 1
    %vm1447 = vcmp.eq.s32.totalorder %v1415, 1
    %vm1448 = vcmp.eq.s32.totalorder %v1416, 1
    %vm1449 = vcmp.eq.s32.totalorder %v1417, 1
    %vm1450 = vcmp.eq.s32.totalorder %v1418, 1
    %vm1451 = vcmp.eq.s32.totalorder %v1419, 1
    %vm1452 = vcmp.eq.s32.totalorder %v1420, 1
    %vm1453 = vcmp.eq.s32.totalorder %v1421, 1
    %vm1454 = vcmp.eq.s32.totalorder %v1422, 1
    %vm1455 = vcmp.eq.s32.totalorder %v1423, 1
    %vm1456 = vcmp.eq.s32.totalorder %v1424, 1
    %vm1457 = vcmp.eq.s32.totalorder %v1425, 1
    %vm1458 = vcmp.eq.s32.totalorder %v1426, 1
    %vm1459 = vcmp.eq.s32.totalorder %v1427, 1
    %vm1460 = vcmp.eq.s32.totalorder %v1428, 1
    %vm1461 = vcmp.eq.s32.totalorder %v1429, 1
    %vm1462 = vcmp.eq.s32.totalorder %v1430, 1
    %vm1463 = vcmp.eq.s32.totalorder %v1431, 1
    %vm1464 = vcmp.eq.s32.totalorder %v1432, 1
    %vm1465 = vcmp.eq.s32.totalorder %v1433, 1
    %vm1466 = vcmp.eq.s32.totalorder %v1434, 1
    %vm1467 = vcmp.eq.s32.totalorder %v1435, 1
    %vm1468 = vcmp.eq.s32.totalorder %v1436, 1
    %vm1469 = vcmp.eq.s32.totalorder %v1437, 1
    %vm1470 = vcmp.eq.s32.totalorder %v1438, 1
    %vm1471 = vcmp.eq.s32.totalorder %v1439, 1
    %v1472 = vsel %vm1440, %v1407, 0.0
    %v1473 = vsel %vm1441, %v1406, 0.0
    %v1474 = vsel %vm1442, %v1405, 0.0
    %v1475 = vsel %vm1443, %v1404, 0.0
    %v1476 = vsel %vm1444, %v1403, 0.0
    %v1477 = vsel %vm1445, %v1402, 0.0
    %v1478 = vsel %vm1446, %v1401, 0.0
    %v1479 = vsel %vm1447, %v1400, 0.0
    %v1480 = vsel %vm1448, %v1399, 0.0
    %v1481 = vsel %vm1449, %v1398, 0.0
    %v1482 = vsel %vm1450, %v1397, 0.0
    %v1483 = vsel %vm1451, %v1396, 0.0
    %v1484 = vsel %vm1452, %v1395, 0.0
    %v1485 = vsel %vm1453, %v1394, 0.0
    %v1486 = vsel %vm1454, %v1393, 0.0
    %v1487 = vsel %vm1455, %v1392, 0.0
    %v1488 = vsel %vm1456, %v1391, 0.0
    %v1489 = vsel %vm1457, %v1390, 0.0
    %v1490 = vsel %vm1458, %v1389, 0.0
    %v1491 = vsel %vm1459, %v1388, 0.0
    %v1492 = vsel %vm1460, %v1387, 0.0
    %v1493 = vsel %vm1461, %v1386, 0.0
    %v1494 = vsel %vm1462, %v1385, 0.0
    %v1495 = vsel %vm1463, %v1384, 0.0
    %v1496 = vsel %vm1464, %v1383, 0.0
    %v1497 = vsel %vm1465, %v1382, 0.0
    %v1498 = vsel %vm1466, %v1381, 0.0
    %v1499 = vsel %vm1467, %v1380, 0.0
    %v1500 = vsel %vm1468, %v1379, 0.0
    %v1501 = vsel %vm1469, %v1378, 0.0
    %v1502 = vsel %vm1470, %v1377, 0.0
    %v1503 = vsel %vm1471, %v1376, 0.0
    %v1504 = vrot.slane %v1311, 1
    %v1505 = vrot.slane %v1312, 1
    %v1506 = vrot.slane %v1313, 1
    %v1507 = vrot.slane %v1314, 1
    %v1508 = vrot.slane %v1315, 1
    %v1509 = vrot.slane %v1316, 1
    %v1510 = vrot.slane %v1317, 1
    %v1511 = vrot.slane %v1318, 1
    %v1512 = vrot.slane %v1319, 1
    %v1513 = vrot.slane %v1320, 1
    %v1514 = vrot.slane %v1321, 1
    %v1515 = vrot.slane %v1322, 1
    %v1516 = vrot.slane %v1323, 1
    %v1517 = vrot.slane %v1324, 1
    %v1518 = vrot.slane %v1325, 1
    %v1519 = vrot.slane %v1326, 1
    %v1520 = vrot.slane %v1327, 1
    %v1521 = vrot.slane %v1328, 1
    %v1522 = vrot.slane %v1329, 1
    %v1523 = vrot.slane %v1330, 1
    %v1524 = vrot.slane %v1331, 1
    %v1525 = vrot.slane %v1332, 1
    %v1526 = vrot.slane %v1333, 1
    %v1527 = vrot.slane %v1334, 1
    %v1528 = vrot.slane %v1335, 1
    %v1529 = vrot.slane %v1336, 1
    %v1530 = vrot.slane %v1337, 1
    %v1531 = vrot.slane %v1338, 1
    %v1532 = vrot.slane %v1339, 1
    %v1533 = vrot.slane %v1340, 1
    %v1534 = vrot.slane %v1341, 1
    %v1535 = vrot.slane %v1342, 1
    %vm1536 = vcmp.lt.s32.totalorder %v70, 7
    %v1537 = vsel %vm1536, %v1534, %v1535
    %v1538 = vsel %vm1536, %v1533, %v1534
    %v1539 = vsel %vm1536, %v1532, %v1533
    %v1540 = vsel %vm1536, %v1531, %v1532
    %v1541 = vsel %vm1536, %v1530, %v1531
    %v1542 = vsel %vm1536, %v1529, %v1530
    %v1543 = vsel %vm1536, %v1528, %v1529
    %v1544 = vsel %vm1536, %v1527, %v1528
    %v1545 = vsel %vm1536, %v1526, %v1527
    %v1546 = vsel %vm1536, %v1525, %v1526
    %v1547 = vsel %vm1536, %v1524, %v1525
    %v1548 = vsel %vm1536, %v1523, %v1524
    %v1549 = vsel %vm1536, %v1522, %v1523
    %v1550 = vsel %vm1536, %v1521, %v1522
    %v1551 = vsel %vm1536, %v1520, %v1521
    %v1552 = vsel %vm1536, %v1519, %v1520
    %v1553 = vsel %vm1536, %v1518, %v1519
    %v1554 = vsel %vm1536, %v1517, %v1518
    %v1555 = vsel %vm1536, %v1516, %v1517
    %v1556 = vsel %vm1536, %v1515, %v1516
    %v1557 = vsel %vm1536, %v1514, %v1515
    %v1558 = vsel %vm1536, %v1513, %v1514
    %v1559 = vsel %vm1536, %v1512, %v1513
    %v1560 = vsel %vm1536, %v1511, %v1512
    %v1561 = vsel %vm1536, %v1510, %v1511
    %v1562 = vsel %vm1536, %v1509, %v1510
    %v1563 = vsel %vm1536, %v1508, %v1509
    %v1564 = vsel %vm1536, %v1507, %v1508
    %v1565 = vsel %vm1536, %v1506, %v1507
    %v1566 = vsel %vm1536, %v1505, %v1506
    %v1567 = vsel %vm1536, %v1504, %v1505
    %v1568 = vsel %vm1536, %v1535, %v1504
    %v1569 = vsel %vm518, 1, 0
    %v1570 = vsel %vm519, 1, 0
    %v1571 = vsel %vm520, 1, 0
    %v1572 = vsel %vm521, 1, 0
    %v1573 = vsel %vm522, 1, 0
    %v1574 = vsel %vm523, 1, 0
    %v1575 = vsel %vm524, 1, 0
    %v1576 = vsel %vm525, 1, 0
    %v1577 = vsel %vm526, 1, 0
    %v1578 = vsel %vm527, 1, 0
    %v1579 = vsel %vm528, 1, 0
    %v1580 = vsel %vm529, 1, 0
    %v1581 = vsel %vm530, 1, 0
    %v1582 = vsel %vm531, 1, 0
    %v1583 = vsel %vm532, 1, 0
    %v1584 = vsel %vm533, 1, 0
    %v1585 = vsel %vm534, 1, 0
    %v1586 = vsel %vm535, 1, 0
    %v1587 = vsel %vm536, 1, 0
    %v1588 = vsel %vm537, 1, 0
    %v1589 = vsel %vm538, 1, 0
    %v1590 = vsel %vm539, 1, 0
    %v1591 = vsel %vm540, 1, 0
    %v1592 = vsel %vm541, 1, 0
    %v1593 = vsel %vm542, 1, 0
    %v1594 = vsel %vm543, 1, 0
    %v1595 = vsel %vm544, 1, 0
    %v1596 = vsel %vm545, 1, 0
    %v1597 = vsel %vm546, 1, 0
    %v1598 = vsel %vm547, 1, 0
    %v1599 = vsel %vm548, 1, 0
    %v1600 = vsel %vm549, 1, 0
    %vm1601 = vcmp.eq.s32.totalorder %v1569, 1
    %vm1602 = vcmp.eq.s32.totalorder %v1570, 1
    %vm1603 = vcmp.eq.s32.totalorder %v1571, 1
    %vm1604 = vcmp.eq.s32.totalorder %v1572, 1
    %vm1605 = vcmp.eq.s32.totalorder %v1573, 1
    %vm1606 = vcmp.eq.s32.totalorder %v1574, 1
    %vm1607 = vcmp.eq.s32.totalorder %v1575, 1
    %vm1608 = vcmp.eq.s32.totalorder %v1576, 1
    %vm1609 = vcmp.eq.s32.totalorder %v1577, 1
    %vm1610 = vcmp.eq.s32.totalorder %v1578, 1
    %vm1611 = vcmp.eq.s32.totalorder %v1579, 1
    %vm1612 = vcmp.eq.s32.totalorder %v1580, 1
    %vm1613 = vcmp.eq.s32.totalorder %v1581, 1
    %vm1614 = vcmp.eq.s32.totalorder %v1582, 1
    %vm1615 = vcmp.eq.s32.totalorder %v1583, 1
    %vm1616 = vcmp.eq.s32.totalorder %v1584, 1
    %vm1617 = vcmp.eq.s32.totalorder %v1585, 1
    %vm1618 = vcmp.eq.s32.totalorder %v1586, 1
    %vm1619 = vcmp.eq.s32.totalorder %v1587, 1
    %vm1620 = vcmp.eq.s32.totalorder %v1588, 1
    %vm1621 = vcmp.eq.s32.totalorder %v1589, 1
    %vm1622 = vcmp.eq.s32.totalorder %v1590, 1
    %vm1623 = vcmp.eq.s32.totalorder %v1591, 1
    %vm1624 = vcmp.eq.s32.totalorder %v1592, 1
    %vm1625 = vcmp.eq.s32.totalorder %v1593, 1
    %vm1626 = vcmp.eq.s32.totalorder %v1594, 1
    %vm1627 = vcmp.eq.s32.totalorder %v1595, 1
    %vm1628 = vcmp.eq.s32.totalorder %v1596, 1
    %vm1629 = vcmp.eq.s32.totalorder %v1597, 1
    %vm1630 = vcmp.eq.s32.totalorder %v1598, 1
    %vm1631 = vcmp.eq.s32.totalorder %v1599, 1
    %vm1632 = vcmp.eq.s32.totalorder %v1600, 1
    %v1633 = vsel %vm1601, %v1567, 0.0
    %v1634 = vsel %vm1602, %v1566, 0.0
    %v1635 = vsel %vm1603, %v1565, 0.0
    %v1636 = vsel %vm1604, %v1564, 0.0
    %v1637 = vsel %vm1605, %v1563, 0.0
    %v1638 = vsel %vm1606, %v1562, 0.0
    %v1639 = vsel %vm1607, %v1561, 0.0
    %v1640 = vsel %vm1608, %v1560, 0.0
    %v1641 = vsel %vm1609, %v1559, 0.0
    %v1642 = vsel %vm1610, %v1558, 0.0
    %v1643 = vsel %vm1611, %v1557, 0.0
    %v1644 = vsel %vm1612, %v1556, 0.0
    %v1645 = vsel %vm1613, %v1555, 0.0
    %v1646 = vsel %vm1614, %v1554, 0.0
    %v1647 = vsel %vm1615, %v1553, 0.0
    %v1648 = vsel %vm1616, %v1552, 0.0
    %v1649 = vsel %vm1617, %v1551, 0.0
    %v1650 = vsel %vm1618, %v1550, 0.0
    %v1651 = vsel %vm1619, %v1549, 0.0
    %v1652 = vsel %vm1620, %v1548, 0.0
    %v1653 = vsel %vm1621, %v1547, 0.0
    %v1654 = vsel %vm1622, %v1546, 0.0
    %v1655 = vsel %vm1623, %v1545, 0.0
    %v1656 = vsel %vm1624, %v1544, 0.0
    %v1657 = vsel %vm1625, %v1543, 0.0
    %v1658 = vsel %vm1626, %v1542, 0.0
    %v1659 = vsel %vm1627, %v1541, 0.0
    %v1660 = vsel %vm1628, %v1540, 0.0
    %v1661 = vsel %vm1629, %v1539, 0.0
    %v1662 = vsel %vm1630, %v1538, 0.0
    %v1663 = vsel %vm1631, %v1537, 0.0
    %v1664 = vsel %vm1632, %v1568, 0.0
    %1697 = vrot.lane.b32.xlu0 %v1311, 64
    %v1698 = vpop.permute.xlu0 %1697
    %1699 = vrot.lane.b32.xlu0 %v1312, 64
    %v1700 = vpop.permute.xlu0 %1699
    %1701 = vrot.lane.b32.xlu0 %v1313, 64
    %v1702 = vpop.permute.xlu0 %1701
    %1703 = vrot.lane.b32.xlu0 %v1314, 64
    %v1704 = vpop.permute.xlu0 %1703
    %1705 = vrot.lane.b32.xlu0 %v1315, 64
    %v1706 = vpop.permute.xlu0 %1705
    %1707 = vrot.lane.b32.xlu0 %v1316, 64
    %v1708 = vpop.permute.xlu0 %1707
    %1709 = vrot.lane.b32.xlu0 %v1317, 64
    %v1710 = vpop.permute.xlu0 %1709
    %1711 = vrot.lane.b32.xlu0 %v1318, 64
    %v1712 = vpop.permute.xlu0 %1711
    %1713 = vrot.lane.b32.xlu0 %v1319, 64
    %v1714 = vpop.permute.xlu0 %1713
    %1715 = vrot.lane.b32.xlu0 %v1320, 64
    %v1716 = vpop.permute.xlu0 %1715
    %1717 = vrot.lane.b32.xlu0 %v1321, 64
    %v1718 = vpop.permute.xlu0 %1717
    %1719 = vrot.lane.b32.xlu0 %v1322, 64
    %v1720 = vpop.permute.xlu0 %1719
    %1721 = vrot.lane.b32.xlu0 %v1323, 64
    %v1722 = vpop.permute.xlu0 %1721
    %1723 = vrot.lane.b32.xlu0 %v1324, 64
    %v1724 = vpop.permute.xlu0 %1723
    %1725 = vrot.lane.b32.xlu0 %v1325, 64
    %v1726 = vpop.permute.xlu0 %1725
    %1727 = vrot.lane.b32.xlu0 %v1326, 64
    %v1728 = vpop.permute.xlu0 %1727
    %1729 = vrot.lane.b32.xlu0 %v1327, 64
    %v1730 = vpop.permute.xlu0 %1729
    %1731 = vrot.lane.b32.xlu0 %v1328, 64
    %v1732 = vpop.permute.xlu0 %1731
    %1733 = vrot.lane.b32.xlu0 %v1329, 64
    %v1734 = vpop.permute.xlu0 %1733
    %1735 = vrot.lane.b32.xlu0 %v1330, 64
    %v1736 = vpop.permute.xlu0 %1735
    %1737 = vrot.lane.b32.xlu0 %v1331, 64
    %v1738 = vpop.permute.xlu0 %1737
    %1739 = vrot.lane.b32.xlu0 %v1332, 64
    %v1740 = vpop.permute.xlu0 %1739
    %1741 = vrot.lane.b32.xlu0 %v1333, 64
    %v1742 = vpop.permute.xlu0 %1741
    %1743 = vrot.lane.b32.xlu0 %v1334, 64
    %v1744 = vpop.permute.xlu0 %1743
    %1745 = vrot.lane.b32.xlu0 %v1335, 64
    %v1746 = vpop.permute.xlu0 %1745
    %1747 = vrot.lane.b32.xlu0 %v1336, 64
    %v1748 = vpop.permute.xlu0 %1747
    %1749 = vrot.lane.b32.xlu0 %v1337, 64
    %v1750 = vpop.permute.xlu0 %1749
    %1751 = vrot.lane.b32.xlu0 %v1338, 64
    %v1752 = vpop.permute.xlu0 %1751
    %1753 = vrot.lane.b32.xlu0 %v1339, 64
    %v1754 = vpop.permute.xlu0 %1753
    %1755 = vrot.lane.b32.xlu0 %v1340, 64
    %v1756 = vpop.permute.xlu0 %1755
    %1757 = vrot.lane.b32.xlu0 %v1341, 64
    %v1758 = vpop.permute.xlu0 %1757
    %1759 = vrot.lane.b32.xlu0 %v1342, 64
    %v1760 = vpop.permute.xlu0 %1759
    %v1793 = vsel %vm1084, %v1472, %v1698
    %v1794 = vsel %vm1084, %v1473, %v1700
    %v1795 = vsel %vm1084, %v1474, %v1702
    %v1796 = vsel %vm1084, %v1475, %v1704
    %v1797 = vsel %vm1084, %v1476, %v1706
    %v1798 = vsel %vm1084, %v1477, %v1708
    %v1799 = vsel %vm1084, %v1478, %v1710
    %v1800 = vsel %vm1084, %v1479, %v1712
    %v1801 = vsel %vm1084, %v1480, %v1714
    %v1802 = vsel %vm1084, %v1481, %v1716
    %v1803 = vsel %vm1084, %v1482, %v1718
    %v1804 = vsel %vm1084, %v1483, %v1720
    %v1805 = vsel %vm1084, %v1484, %v1722
    %v1806 = vsel %vm1084, %v1485, %v1724
    %v1807 = vsel %vm1084, %v1486, %v1726
    %v1808 = vsel %vm1084, %v1487, %v1728
    %v1809 = vsel %vm1084, %v1488, %v1730
    %v1810 = vsel %vm1084, %v1489, %v1732
    %v1811 = vsel %vm1084, %v1490, %v1734
    %v1812 = vsel %vm1084, %v1491, %v1736
    %v1813 = vsel %vm1084, %v1492, %v1738
    %v1814 = vsel %vm1084, %v1493, %v1740
    %v1815 = vsel %vm1084, %v1494, %v1742
    %v1816 = vsel %vm1084, %v1495, %v1744
    %v1817 = vsel %vm1084, %v1496, %v1746
    %v1818 = vsel %vm1084, %v1497, %v1748
    %v1819 = vsel %vm1084, %v1498, %v1750
    %v1820 = vsel %vm1084, %v1499, %v1752
    %v1821 = vsel %vm1084, %v1500, %v1754
    %v1822 = vsel %vm1084, %v1501, %v1756
    %v1823 = vsel %vm1084, %v1502, %v1758
    %v1824 = vsel %vm1084, %v1503, %v1760
    %v1825 = vpack.c.bf16 %v1794, %v1793
    %v1826 = vpack.c.bf16 %v1634, %v1633
    %v1827 = vpack.c.bf16 %v1796, %v1795
    %v1828 = vpack.c.bf16 %v1636, %v1635
    %v1829 = vpack.c.bf16 %v1798, %v1797
    %v1830 = vpack.c.bf16 %v1638, %v1637
    %v1831 = vpack.c.bf16 %v1800, %v1799
    %v1832 = vpack.c.bf16 %v1640, %v1639
    %v1833 = vpack.c.bf16 %v1802, %v1801
    %v1834 = vpack.c.bf16 %v1642, %v1641
    %v1835 = vpack.c.bf16 %v1804, %v1803
    %v1836 = vpack.c.bf16 %v1644, %v1643
    %v1837 = vpack.c.bf16 %v1806, %v1805
    %v1838 = vpack.c.bf16 %v1646, %v1645
    %v1839 = vpack.c.bf16 %v1808, %v1807
    %v1840 = vpack.c.bf16 %v1648, %v1647
    %v1841 = vpack.c.bf16 %v1810, %v1809
    %v1842 = vpack.c.bf16 %v1650, %v1649
    %v1843 = vpack.c.bf16 %v1812, %v1811
    %v1844 = vpack.c.bf16 %v1652, %v1651
    %v1845 = vpack.c.bf16 %v1814, %v1813
    %v1846 = vpack.c.bf16 %v1654, %v1653
    %v1847 = vpack.c.bf16 %v1816, %v1815
    %v1848 = vpack.c.bf16 %v1656, %v1655
    %v1849 = vpack.c.bf16 %v1818, %v1817
    %v1850 = vpack.c.bf16 %v1658, %v1657
    %v1851 = vpack.c.bf16 %v1820, %v1819
    %v1852 = vpack.c.bf16 %v1660, %v1659
    %v1853 = vpack.c.bf16 %v1822, %v1821
    %v1854 = vpack.c.bf16 %v1662, %v1661
    %v1855 = vpack.c.bf16 %v1824, %v1823
    %v1856 = vpack.c.bf16 %v1664, %v1663
    %v1857 = vld [vmem:[%s5] sm:$0xf]
    %v1858 = vld [vmem:[%s5 + $0x4] sm:$0xf]
    %v1859 = vld [vmem:[%s5 + $0x8] sm:$0xf]
    %v1860 = vld [vmem:[%s5 + $0xc] sm:$0xf]
    %v1861 = vld [vmem:[%s5 + $0x10] sm:$0xf]
    %v1862 = vld [vmem:[%s5 + $0x14] sm:$0xf]
    %v1863 = vld [vmem:[%s5 + $0x18] sm:$0xf]
    %v1864 = vld [vmem:[%s5 + $0x1c] sm:$0xf]
    %v1865 = vld [vmem:[%s5 + $0x20] sm:$0xf]
    %v1866 = vld [vmem:[%s5 + $0x24] sm:$0xf]
    %v1867 = vld [vmem:[%s5 + $0x28] sm:$0xf]
    %v1868 = vld [vmem:[%s5 + $0x2c] sm:$0xf]
    %v1869 = vld [vmem:[%s5 + $0x30] sm:$0xf]
    %v1870 = vld [vmem:[%s5 + $0x34] sm:$0xf]
    %v1871 = vld [vmem:[%s5 + $0x38] sm:$0xf]
    %v1872 = vld [vmem:[%s5 + $0x3c] sm:$0xf]
    %v1873 = vld [vmem:[%s5 + $0x40] sm:$0xf]
    %v1874 = vld [vmem:[%s5 + $0x44] sm:$0xf]
    %v1875 = vld [vmem:[%s5 + $0x48] sm:$0xf]
    %v1876 = vld [vmem:[%s5 + $0x4c] sm:$0xf]
    %v1877 = vld [vmem:[%s5 + $0x50] sm:$0xf]
    %v1878 = vld [vmem:[%s5 + $0x54] sm:$0xf]
    %v1879 = vld [vmem:[%s5 + $0x58] sm:$0xf]
    %v1880 = vld [vmem:[%s5 + $0x5c] sm:$0xf]
    %v1881 = vld [vmem:[%s6] sm:$0x1]
    %v1883 = vperm.slane %v1881, 0
    %v1909 = vunpack.c.l.b16 %v1857
    %v1910 = vunpack.c.l.b16 %v1858
    %v1911 = vunpack.c.l.b16 %v1859
    %v1912 = vunpack.c.l.b16 %v1860
    %v1913 = vunpack.c.l.b16 %v1861
    %v1914 = vunpack.c.l.b16 %v1862
    %v1915 = vunpack.c.l.b16 %v1863
    %v1916 = vunpack.c.l.b16 %v1864
    %v1917 = vunpack.c.l.b16 %v1865
    %v1918 = vunpack.c.l.b16 %v1866
    %v1919 = vunpack.c.l.b16 %v1867
    %v1920 = vunpack.c.l.b16 %v1868
    %v1921 = vunpack.c.l.b16 %v1869
    %v1922 = vunpack.c.l.b16 %v1870
    %v1923 = vunpack.c.l.b16 %v1871
    %v1924 = vunpack.c.l.b16 %v1872
    %v1925 = vunpack.c.l.b16 %v1873
    %v1926 = vunpack.c.l.b16 %v1874
    %v1927 = vunpack.c.l.b16 %v1875
    %v1928 = vunpack.c.l.b16 %v1876
    %v1929 = vunpack.c.l.b16 %v1877
    %v1930 = vunpack.c.l.b16 %v1878
    %v1931 = vunpack.c.l.b16 %v1879
    %v1932 = vunpack.c.l.b16 %v1880
    %v1933 = vpack.c.b16 %v1910, %v1909
    %v1934 = vpack.c.b16 %v1912, %v1911
    %v1935 = vpack.c.b16 %v1914, %v1913
    %v1936 = vpack.c.b16 %v1916, %v1915
    %v1937 = vpack.c.b16 %v1918, %v1917
    %v1938 = vpack.c.b16 %v1920, %v1919
    %v1939 = vpack.c.b16 %v1922, %v1921
    %v1940 = vpack.c.b16 %v1924, %v1923
    %v1941 = vpack.c.b16 %v1926, %v1925
    %v1942 = vpack.c.b16 %v1928, %v1927
    %v1943 = vpack.c.b16 %v1930, %v1929
    %v1944 = vpack.c.b16 %v1932, %v1931
    %v1958 = vsel %vm1084, %v1826, 0
    %v1961 = vsel %vm1084, %v1828, 0
    %v1964 = vsel %vm1084, %v1830, 0
    %v1967 = vsel %vm1084, %v1832, 0
    %v1970 = vsel %vm1084, %v1834, 0
    %v1973 = vsel %vm1084, %v1836, 0
    %v1976 = vsel %vm1084, %v1838, 0
    %v1979 = vsel %vm1084, %v1840, 0
    %v1982 = vsel %vm1084, %v1842, 0
    %v1985 = vsel %vm1084, %v1844, 0
    %v1988 = vsel %vm1084, %v1846, 0
    %v1991 = vsel %vm1084, %v1848, 0
    %v1994 = vsel %vm1084, %v1850, 0
    %v1997 = vsel %vm1084, %v1852, 0
    %v2000 = vsel %vm1084, %v1854, 0
    %v2003 = vsel %vm1084, %v1856, 0
    %2005 = vmatpush.bf16.msra.mxu0 %v1940
    %2006 = vmatpush.bf16.msra.mxu0 %v1939
    %2007 = vmatpush.bf16.msra.mxu0 %v1938
    %2008 = vmatpush.bf16.msra.mxu0 %v1937
    %2009 = vmatpush.bf16.msra.mxu0 %v1936
    %2010 = vmatpush.bf16.msra.mxu0 %v1935
    %2011 = vmatpush.bf16.msra.mxu0 %v1934
    %2012 = vmatpush.bf16.msra.mxu0 %v1933
    %2013 = vmatmul.bf16.gmra.mxu0 %v1825
    %v2014 = vpop.f32.mrf.mxu0
    %v2015 = vadd.f32 %v1883, %v2014
    %v2016 = vpop.f32.mrf.mxu0
    %v2017 = vadd.f32 %v1883, %v2016
    %2018 = vmatmul.bf16.gmra.mxu0 %v1827
    %v2019 = vpop.f32.mrf.mxu0
    %v2020 = vadd.f32 %v1883, %v2019
    %v2021 = vpop.f32.mrf.mxu0
    %v2022 = vadd.f32 %v1883, %v2021
    %2023 = vmatmul.bf16.gmra.mxu0 %v1829
    %v2024 = vpop.f32.mrf.mxu0
    %v2025 = vadd.f32 %v1883, %v2024
    %v2026 = vpop.f32.mrf.mxu0
    %v2027 = vadd.f32 %v1883, %v2026
    %2028 = vmatmul.bf16.gmra.mxu0 %v1831
    %v2029 = vpop.f32.mrf.mxu0
    %v2030 = vadd.f32 %v1883, %v2029
    %v2031 = vpop.f32.mrf.mxu0
    %v2032 = vadd.f32 %v1883, %v2031
    %2033 = vmatmul.bf16.gmra.mxu0 %v1833
    %v2034 = vpop.f32.mrf.mxu0
    %v2035 = vadd.f32 %v1883, %v2034
    %v2036 = vpop.f32.mrf.mxu0
    %v2037 = vadd.f32 %v1883, %v2036
    %2038 = vmatmul.bf16.gmra.mxu0 %v1835
    %v2039 = vpop.f32.mrf.mxu0
    %v2040 = vadd.f32 %v1883, %v2039
    %v2041 = vpop.f32.mrf.mxu0
    %v2042 = vadd.f32 %v1883, %v2041
    %2043 = vmatmul.bf16.gmra.mxu0 %v1837
    %v2044 = vpop.f32.mrf.mxu0
    %v2045 = vadd.f32 %v1883, %v2044
    %v2046 = vpop.f32.mrf.mxu0
    %v2047 = vadd.f32 %v1883, %v2046
    %2048 = vmatmul.bf16.gmra.mxu0 %v1839
    %v2049 = vpop.f32.mrf.mxu0
    %v2050 = vadd.f32 %v1883, %v2049
    %v2051 = vpop.f32.mrf.mxu0
    %v2052 = vadd.f32 %v1883, %v2051
    %2053 = vmatmul.bf16.gmra.mxu0 %v1841
    %v2054 = vpop.f32.mrf.mxu0
    %v2055 = vadd.f32 %v1883, %v2054
    %v2056 = vpop.f32.mrf.mxu0
    %v2057 = vadd.f32 %v1883, %v2056
    %2058 = vmatmul.bf16.gmra.mxu0 %v1843
    %v2059 = vpop.f32.mrf.mxu0
    %v2060 = vadd.f32 %v1883, %v2059
    %v2061 = vpop.f32.mrf.mxu0
    %v2062 = vadd.f32 %v1883, %v2061
    %2063 = vmatmul.bf16.gmra.mxu0 %v1845
    %v2064 = vpop.f32.mrf.mxu0
    %v2065 = vadd.f32 %v1883, %v2064
    %v2066 = vpop.f32.mrf.mxu0
    %v2067 = vadd.f32 %v1883, %v2066
    %2068 = vmatmul.bf16.gmra.mxu0 %v1847
    %v2069 = vpop.f32.mrf.mxu0
    %v2070 = vadd.f32 %v1883, %v2069
    %v2071 = vpop.f32.mrf.mxu0
    %v2072 = vadd.f32 %v1883, %v2071
    %2073 = vmatmul.bf16.gmra.mxu0 %v1849
    %v2074 = vpop.f32.mrf.mxu0
    %v2075 = vadd.f32 %v1883, %v2074
    %v2076 = vpop.f32.mrf.mxu0
    %v2077 = vadd.f32 %v1883, %v2076
    %2078 = vmatmul.bf16.gmra.mxu0 %v1851
    %v2079 = vpop.f32.mrf.mxu0
    %v2080 = vadd.f32 %v1883, %v2079
    %v2081 = vpop.f32.mrf.mxu0
    %v2082 = vadd.f32 %v1883, %v2081
    %2083 = vmatmul.bf16.gmra.mxu0 %v1853
    %v2084 = vpop.f32.mrf.mxu0
    %v2085 = vadd.f32 %v1883, %v2084
    %v2086 = vpop.f32.mrf.mxu0
    %v2087 = vadd.f32 %v1883, %v2086
    %2088 = vmatmul.bf16.gmra.mxu0 %v1855
    %v2089 = vpop.f32.mrf.mxu0
    %v2090 = vadd.f32 %v1883, %v2089
    %v2091 = vpop.f32.mrf.mxu0
    %v2092 = vadd.f32 %v1883, %v2091
    %2093 = vdwg.mxu0
    %2094 = vmatpush.bf16.msra.mxu0 0
    %2095 = vmatpush.bf16.msra.mxu0 0
    %2096 = vmatpush.bf16.msra.mxu0 0
    %2097 = vmatpush.bf16.msra.mxu0 0
    %2098 = vmatpush.bf16.msra.mxu0 %v1944
    %2099 = vmatpush.bf16.msra.mxu0 %v1943
    %2100 = vmatpush.bf16.msra.mxu0 %v1942
    %2101 = vmatpush.bf16.msra.mxu0 %v1941
    %2102 = vmatmul.bf16.gmra.mxu0 %v1958
    %v2103 = vpop.f32.mrf.mxu0
    %v2104 = vadd.f32 %v2015, %v2103
    %v2105 = vpop.f32.mrf.mxu0
    %v2106 = vadd.f32 %v2017, %v2105
    %2107 = vmatmul.bf16.gmra.mxu0 %v1961
    %v2108 = vpop.f32.mrf.mxu0
    %v2109 = vadd.f32 %v2020, %v2108
    %v2110 = vpop.f32.mrf.mxu0
    %v2111 = vadd.f32 %v2022, %v2110
    %2112 = vmatmul.bf16.gmra.mxu0 %v1964
    %v2113 = vpop.f32.mrf.mxu0
    %v2114 = vadd.f32 %v2025, %v2113
    %v2115 = vpop.f32.mrf.mxu0
    %v2116 = vadd.f32 %v2027, %v2115
    %2117 = vmatmul.bf16.gmra.mxu0 %v1967
    %v2118 = vpop.f32.mrf.mxu0
    %v2119 = vadd.f32 %v2030, %v2118
    %v2120 = vpop.f32.mrf.mxu0
    %v2121 = vadd.f32 %v2032, %v2120
    %2122 = vmatmul.bf16.gmra.mxu0 %v1970
    %v2123 = vpop.f32.mrf.mxu0
    %v2124 = vadd.f32 %v2035, %v2123
    %v2125 = vpop.f32.mrf.mxu0
    %v2126 = vadd.f32 %v2037, %v2125
    %2127 = vmatmul.bf16.gmra.mxu0 %v1973
    %v2128 = vpop.f32.mrf.mxu0
    %v2129 = vadd.f32 %v2040, %v2128
    %v2130 = vpop.f32.mrf.mxu0
    %v2131 = vadd.f32 %v2042, %v2130
    %2132 = vmatmul.bf16.gmra.mxu0 %v1976
    %v2133 = vpop.f32.mrf.mxu0
    %v2134 = vadd.f32 %v2045, %v2133
    %v2135 = vpop.f32.mrf.mxu0
    %v2136 = vadd.f32 %v2047, %v2135
    %2137 = vmatmul.bf16.gmra.mxu0 %v1979
    %v2138 = vpop.f32.mrf.mxu0
    %v2139 = vadd.f32 %v2050, %v2138
    %v2140 = vpop.f32.mrf.mxu0
    %v2141 = vadd.f32 %v2052, %v2140
    %2142 = vmatmul.bf16.gmra.mxu0 %v1982
    %v2143 = vpop.f32.mrf.mxu0
    %v2144 = vadd.f32 %v2055, %v2143
    %v2145 = vpop.f32.mrf.mxu0
    %v2146 = vadd.f32 %v2057, %v2145
    %2147 = vmatmul.bf16.gmra.mxu0 %v1985
    %v2148 = vpop.f32.mrf.mxu0
    %v2149 = vadd.f32 %v2060, %v2148
    %v2150 = vpop.f32.mrf.mxu0
    %v2151 = vadd.f32 %v2062, %v2150
    %2152 = vmatmul.bf16.gmra.mxu0 %v1988
    %v2153 = vpop.f32.mrf.mxu0
    %v2154 = vadd.f32 %v2065, %v2153
    %v2155 = vpop.f32.mrf.mxu0
    %v2156 = vadd.f32 %v2067, %v2155
    %2157 = vmatmul.bf16.gmra.mxu0 %v1991
    %v2158 = vpop.f32.mrf.mxu0
    %v2159 = vadd.f32 %v2070, %v2158
    %v2160 = vpop.f32.mrf.mxu0
    %v2161 = vadd.f32 %v2072, %v2160
    %2162 = vmatmul.bf16.gmra.mxu0 %v1994
    %v2163 = vpop.f32.mrf.mxu0
    %v2164 = vadd.f32 %v2075, %v2163
    %v2165 = vpop.f32.mrf.mxu0
    %v2166 = vadd.f32 %v2077, %v2165
    %2167 = vmatmul.bf16.gmra.mxu0 %v1997
    %v2168 = vpop.f32.mrf.mxu0
    %v2169 = vadd.f32 %v2080, %v2168
    %v2170 = vpop.f32.mrf.mxu0
    %v2171 = vadd.f32 %v2082, %v2170
    %2172 = vmatmul.bf16.gmra.mxu0 %v2000
    %v2173 = vpop.f32.mrf.mxu0
    %v2174 = vadd.f32 %v2085, %v2173
    %v2175 = vpop.f32.mrf.mxu0
    %v2176 = vadd.f32 %v2087, %v2175
    %2177 = vmatmul.bf16.gmra.mxu0 %v2003
    %v2178 = vpop.f32.mrf.mxu0
    %v2179 = vadd.f32 %v2090, %v2178
    %v2180 = vpop.f32.mrf.mxu0
    %v2181 = vadd.f32 %v2092, %v2180
    %2182 = vdwg.mxu0
    %v2183 = vmax.f32 %v2104, 0.0
    %v2184 = vmax.f32 %v2106, 0.0
    %v2185 = vmax.f32 %v2109, 0.0
    %v2186 = vmax.f32 %v2111, 0.0
    %v2187 = vmax.f32 %v2114, 0.0
    %v2188 = vmax.f32 %v2116, 0.0
    %v2189 = vmax.f32 %v2119, 0.0
    %v2190 = vmax.f32 %v2121, 0.0
    %v2191 = vmax.f32 %v2124, 0.0
    %v2192 = vmax.f32 %v2126, 0.0
    %v2193 = vmax.f32 %v2129, 0.0
    %v2194 = vmax.f32 %v2131, 0.0
    %v2195 = vmax.f32 %v2134, 0.0
    %v2196 = vmax.f32 %v2136, 0.0
    %v2197 = vmax.f32 %v2139, 0.0
    %v2198 = vmax.f32 %v2141, 0.0
    %v2199 = vmax.f32 %v2144, 0.0
    %v2200 = vmax.f32 %v2146, 0.0
    %v2201 = vmax.f32 %v2149, 0.0
    %v2202 = vmax.f32 %v2151, 0.0
    %v2203 = vmax.f32 %v2154, 0.0
    %v2204 = vmax.f32 %v2156, 0.0
    %v2205 = vmax.f32 %v2159, 0.0
    %v2206 = vmax.f32 %v2161, 0.0
    %v2207 = vmax.f32 %v2164, 0.0
    %v2208 = vmax.f32 %v2166, 0.0
    %v2209 = vmax.f32 %v2169, 0.0
    %v2210 = vmax.f32 %v2171, 0.0
    %v2211 = vmax.f32 %v2174, 0.0
    %v2212 = vmax.f32 %v2176, 0.0
    %v2213 = vmax.f32 %v2179, 0.0
    %v2214 = vmax.f32 %v2181, 0.0
    %v2215 = vrot.slane %v2183, 6
    %v2216 = vrot.slane %v2184, 6
    %v2217 = vrot.slane %v2185, 6
    %v2218 = vrot.slane %v2186, 6
    %v2219 = vrot.slane %v2187, 6
    %v2220 = vrot.slane %v2188, 6
    %v2221 = vrot.slane %v2189, 6
    %v2222 = vrot.slane %v2190, 6
    %v2223 = vrot.slane %v2191, 6
    %v2224 = vrot.slane %v2192, 6
    %v2225 = vrot.slane %v2193, 6
    %v2226 = vrot.slane %v2194, 6
    %v2227 = vrot.slane %v2195, 6
    %v2228 = vrot.slane %v2196, 6
    %v2229 = vrot.slane %v2197, 6
    %v2230 = vrot.slane %v2198, 6
    %v2231 = vrot.slane %v2199, 6
    %v2232 = vrot.slane %v2200, 6
    %v2233 = vrot.slane %v2201, 6
    %v2234 = vrot.slane %v2202, 6
    %v2235 = vrot.slane %v2203, 6
    %v2236 = vrot.slane %v2204, 6
    %v2237 = vrot.slane %v2205, 6
    %v2238 = vrot.slane %v2206, 6
    %v2239 = vrot.slane %v2207, 6
    %v2240 = vrot.slane %v2208, 6
    %v2241 = vrot.slane %v2209, 6
    %v2242 = vrot.slane %v2210, 6
    %v2243 = vrot.slane %v2211, 6
    %v2244 = vrot.slane %v2212, 6
    %v2245 = vrot.slane %v2213, 6
    %v2246 = vrot.slane %v2214, 6
    %vm2247 = vcmp.lt.s32.totalorder %v70, 2
    %v2248 = vsel %vm2247, %v2245, %v2246
    %v2249 = vsel %vm2247, %v2244, %v2245
    %v2250 = vsel %vm2247, %v2243, %v2244
    %v2251 = vsel %vm2247, %v2242, %v2243
    %v2252 = vsel %vm2247, %v2241, %v2242
    %v2253 = vsel %vm2247, %v2240, %v2241
    %v2254 = vsel %vm2247, %v2239, %v2240
    %v2255 = vsel %vm2247, %v2238, %v2239
    %v2256 = vsel %vm2247, %v2237, %v2238
    %v2257 = vsel %vm2247, %v2236, %v2237
    %v2258 = vsel %vm2247, %v2235, %v2236
    %v2259 = vsel %vm2247, %v2234, %v2235
    %v2260 = vsel %vm2247, %v2233, %v2234
    %v2261 = vsel %vm2247, %v2232, %v2233
    %v2262 = vsel %vm2247, %v2231, %v2232
    %v2263 = vsel %vm2247, %v2230, %v2231
    %v2264 = vsel %vm2247, %v2229, %v2230
    %v2265 = vsel %vm2247, %v2228, %v2229
    %v2266 = vsel %vm2247, %v2227, %v2228
    %v2267 = vsel %vm2247, %v2226, %v2227
    %v2268 = vsel %vm2247, %v2225, %v2226
    %v2269 = vsel %vm2247, %v2224, %v2225
    %v2270 = vsel %vm2247, %v2223, %v2224
    %v2271 = vsel %vm2247, %v2222, %v2223
    %v2272 = vsel %vm2247, %v2221, %v2222
    %v2273 = vsel %vm2247, %v2220, %v2221
    %v2274 = vsel %vm2247, %v2219, %v2220
    %v2275 = vsel %vm2247, %v2218, %v2219
    %v2276 = vsel %vm2247, %v2217, %v2218
    %v2277 = vsel %vm2247, %v2216, %v2217
    %v2278 = vsel %vm2247, %v2215, %v2216
    %v2279 = vsel %vm2247, %v2246, %v2215
    %v2280 = vsel %vm550, 1, 0
    %v2281 = vsel %vm551, 1, 0
    %v2282 = vsel %vm552, 1, 0
    %v2283 = vsel %vm553, 1, 0
    %v2284 = vsel %vm554, 1, 0
    %v2285 = vsel %vm555, 1, 0
    %v2286 = vsel %vm556, 1, 0
    %v2287 = vsel %vm557, 1, 0
    %v2288 = vsel %vm558, 1, 0
    %v2289 = vsel %vm559, 1, 0
    %v2290 = vsel %vm560, 1, 0
    %v2291 = vsel %vm561, 1, 0
    %v2292 = vsel %vm562, 1, 0
    %v2293 = vsel %vm563, 1, 0
    %v2294 = vsel %vm564, 1, 0
    %v2295 = vsel %vm565, 1, 0
    %v2296 = vsel %vm566, 1, 0
    %v2297 = vsel %vm567, 1, 0
    %v2298 = vsel %vm568, 1, 0
    %v2299 = vsel %vm569, 1, 0
    %v2300 = vsel %vm570, 1, 0
    %v2301 = vsel %vm571, 1, 0
    %v2302 = vsel %vm572, 1, 0
    %v2303 = vsel %vm573, 1, 0
    %v2304 = vsel %vm574, 1, 0
    %v2305 = vsel %vm575, 1, 0
    %v2306 = vsel %vm576, 1, 0
    %v2307 = vsel %vm577, 1, 0
    %v2308 = vsel %vm578, 1, 0
    %v2309 = vsel %vm579, 1, 0
    %v2310 = vsel %vm580, 1, 0
    %v2311 = vsel %vm581, 1, 0
    %vm2312 = vcmp.eq.s32.totalorder %v2280, 1
    %vm2313 = vcmp.eq.s32.totalorder %v2281, 1
    %vm2314 = vcmp.eq.s32.totalorder %v2282, 1
    %vm2315 = vcmp.eq.s32.totalorder %v2283, 1
    %vm2316 = vcmp.eq.s32.totalorder %v2284, 1
    %vm2317 = vcmp.eq.s32.totalorder %v2285, 1
    %vm2318 = vcmp.eq.s32.totalorder %v2286, 1
    %vm2319 = vcmp.eq.s32.totalorder %v2287, 1
    %vm2320 = vcmp.eq.s32.totalorder %v2288, 1
    %vm2321 = vcmp.eq.s32.totalorder %v2289, 1
    %vm2322 = vcmp.eq.s32.totalorder %v2290, 1
    %vm2323 = vcmp.eq.s32.totalorder %v2291, 1
    %vm2324 = vcmp.eq.s32.totalorder %v2292, 1
    %vm2325 = vcmp.eq.s32.totalorder %v2293, 1
    %vm2326 = vcmp.eq.s32.totalorder %v2294, 1
    %vm2327 = vcmp.eq.s32.totalorder %v2295, 1
    %vm2328 = vcmp.eq.s32.totalorder %v2296, 1
    %vm2329 = vcmp.eq.s32.totalorder %v2297, 1
    %vm2330 = vcmp.eq.s32.totalorder %v2298, 1
    %vm2331 = vcmp.eq.s32.totalorder %v2299, 1
    %vm2332 = vcmp.eq.s32.totalorder %v2300, 1
    %vm2333 = vcmp.eq.s32.totalorder %v2301, 1
    %vm2334 = vcmp.eq.s32.totalorder %v2302, 1
    %vm2335 = vcmp.eq.s32.totalorder %v2303, 1
    %vm2336 = vcmp.eq.s32.totalorder %v2304, 1
    %vm2337 = vcmp.eq.s32.totalorder %v2305, 1
    %vm2338 = vcmp.eq.s32.totalorder %v2306, 1
    %vm2339 = vcmp.eq.s32.totalorder %v2307, 1
    %vm2340 = vcmp.eq.s32.totalorder %v2308, 1
    %vm2341 = vcmp.eq.s32.totalorder %v2309, 1
    %vm2342 = vcmp.eq.s32.totalorder %v2310, 1
    %vm2343 = vcmp.eq.s32.totalorder %v2311, 1
    %v2344 = vsel %vm2312, %v2279, 0.0
    %v2345 = vsel %vm2313, %v2278, 0.0
    %v2346 = vsel %vm2314, %v2277, 0.0
    %v2347 = vsel %vm2315, %v2276, 0.0
    %v2348 = vsel %vm2316, %v2275, 0.0
    %v2349 = vsel %vm2317, %v2274, 0.0
    %v2350 = vsel %vm2318, %v2273, 0.0
    %v2351 = vsel %vm2319, %v2272, 0.0
    %v2352 = vsel %vm2320, %v2271, 0.0
    %v2353 = vsel %vm2321, %v2270, 0.0
    %v2354 = vsel %vm2322, %v2269, 0.0
    %v2355 = vsel %vm2323, %v2268, 0.0
    %v2356 = vsel %vm2324, %v2267, 0.0
    %v2357 = vsel %vm2325, %v2266, 0.0
    %v2358 = vsel %vm2326, %v2265, 0.0
    %v2359 = vsel %vm2327, %v2264, 0.0
    %v2360 = vsel %vm2328, %v2263, 0.0
    %v2361 = vsel %vm2329, %v2262, 0.0
    %v2362 = vsel %vm2330, %v2261, 0.0
    %v2363 = vsel %vm2331, %v2260, 0.0
    %v2364 = vsel %vm2332, %v2259, 0.0
    %v2365 = vsel %vm2333, %v2258, 0.0
    %v2366 = vsel %vm2334, %v2257, 0.0
    %v2367 = vsel %vm2335, %v2256, 0.0
    %v2368 = vsel %vm2336, %v2255, 0.0
    %v2369 = vsel %vm2337, %v2254, 0.0
    %v2370 = vsel %vm2338, %v2253, 0.0
    %v2371 = vsel %vm2339, %v2252, 0.0
    %v2372 = vsel %vm2340, %v2251, 0.0
    %v2373 = vsel %vm2341, %v2250, 0.0
    %v2374 = vsel %vm2342, %v2249, 0.0
    %v2375 = vsel %vm2343, %v2248, 0.0
    %v2376 = vrot.slane %v2183, 2
    %v2377 = vrot.slane %v2184, 2
    %v2378 = vrot.slane %v2185, 2
    %v2379 = vrot.slane %v2186, 2
    %v2380 = vrot.slane %v2187, 2
    %v2381 = vrot.slane %v2188, 2
    %v2382 = vrot.slane %v2189, 2
    %v2383 = vrot.slane %v2190, 2
    %v2384 = vrot.slane %v2191, 2
    %v2385 = vrot.slane %v2192, 2
    %v2386 = vrot.slane %v2193, 2
    %v2387 = vrot.slane %v2194, 2
    %v2388 = vrot.slane %v2195, 2
    %v2389 = vrot.slane %v2196, 2
    %v2390 = vrot.slane %v2197, 2
    %v2391 = vrot.slane %v2198, 2
    %v2392 = vrot.slane %v2199, 2
    %v2393 = vrot.slane %v2200, 2
    %v2394 = vrot.slane %v2201, 2
    %v2395 = vrot.slane %v2202, 2
    %v2396 = vrot.slane %v2203, 2
    %v2397 = vrot.slane %v2204, 2
    %v2398 = vrot.slane %v2205, 2
    %v2399 = vrot.slane %v2206, 2
    %v2400 = vrot.slane %v2207, 2
    %v2401 = vrot.slane %v2208, 2
    %v2402 = vrot.slane %v2209, 2
    %v2403 = vrot.slane %v2210, 2
    %v2404 = vrot.slane %v2211, 2
    %v2405 = vrot.slane %v2212, 2
    %v2406 = vrot.slane %v2213, 2
    %v2407 = vrot.slane %v2214, 2
    %vm2408 = vcmp.lt.s32.totalorder %v70, 6
    %v2409 = vsel %vm2408, %v2406, %v2407
    %v2410 = vsel %vm2408, %v2405, %v2406
    %v2411 = vsel %vm2408, %v2404, %v2405
    %v2412 = vsel %vm2408, %v2403, %v2404
    %v2413 = vsel %vm2408, %v2402, %v2403
    %v2414 = vsel %vm2408, %v2401, %v2402
    %v2415 = vsel %vm2408, %v2400, %v2401
    %v2416 = vsel %vm2408, %v2399, %v2400
    %v2417 = vsel %vm2408, %v2398, %v2399
    %v2418 = vsel %vm2408, %v2397, %v2398
    %v2419 = vsel %vm2408, %v2396, %v2397
    %v2420 = vsel %vm2408, %v2395, %v2396
    %v2421 = vsel %vm2408, %v2394, %v2395
    %v2422 = vsel %vm2408, %v2393, %v2394
    %v2423 = vsel %vm2408, %v2392, %v2393
    %v2424 = vsel %vm2408, %v2391, %v2392
    %v2425 = vsel %vm2408, %v2390, %v2391
    %v2426 = vsel %vm2408, %v2389, %v2390
    %v2427 = vsel %vm2408, %v2388, %v2389
    %v2428 = vsel %vm2408, %v2387, %v2388
    %v2429 = vsel %vm2408, %v2386, %v2387
    %v2430 = vsel %vm2408, %v2385, %v2386
    %v2431 = vsel %vm2408, %v2384, %v2385
    %v2432 = vsel %vm2408, %v2383, %v2384
    %v2433 = vsel %vm2408, %v2382, %v2383
    %v2434 = vsel %vm2408, %v2381, %v2382
    %v2435 = vsel %vm2408, %v2380, %v2381
    %v2436 = vsel %vm2408, %v2379, %v2380
    %v2437 = vsel %vm2408, %v2378, %v2379
    %v2438 = vsel %vm2408, %v2377, %v2378
    %v2439 = vsel %vm2408, %v2376, %v2377
    %v2440 = vsel %vm2408, %v2407, %v2376
    %v2441 = vsel %vm582, 1, 0
    %v2442 = vsel %vm583, 1, 0
    %v2443 = vsel %vm584, 1, 0
    %v2444 = vsel %vm585, 1, 0
    %v2445 = vsel %vm586, 1, 0
    %v2446 = vsel %vm587, 1, 0
    %v2447 = vsel %vm588, 1, 0
    %v2448 = vsel %vm589, 1, 0
    %v2449 = vsel %vm590, 1, 0
    %v2450 = vsel %vm591, 1, 0
    %v2451 = vsel %vm592, 1, 0
    %v2452 = vsel %vm593, 1, 0
    %v2453 = vsel %vm594, 1, 0
    %v2454 = vsel %vm595, 1, 0
    %v2455 = vsel %vm596, 1, 0
    %v2456 = vsel %vm597, 1, 0
    %v2457 = vsel %vm598, 1, 0
    %v2458 = vsel %vm599, 1, 0
    %v2459 = vsel %vm600, 1, 0
    %v2460 = vsel %vm601, 1, 0
    %v2461 = vsel %vm602, 1, 0
    %v2462 = vsel %vm603, 1, 0
    %v2463 = vsel %vm604, 1, 0
    %v2464 = vsel %vm605, 1, 0
    %v2465 = vsel %vm606, 1, 0
    %v2466 = vsel %vm607, 1, 0
    %v2467 = vsel %vm608, 1, 0
    %v2468 = vsel %vm609, 1, 0
    %v2469 = vsel %vm610, 1, 0
    %v2470 = vsel %vm611, 1, 0
    %v2471 = vsel %vm612, 1, 0
    %v2472 = vsel %vm613, 1, 0
    %vm2473 = vcmp.eq.s32.totalorder %v2441, 1
    %vm2474 = vcmp.eq.s32.totalorder %v2442, 1
    %vm2475 = vcmp.eq.s32.totalorder %v2443, 1
    %vm2476 = vcmp.eq.s32.totalorder %v2444, 1
    %vm2477 = vcmp.eq.s32.totalorder %v2445, 1
    %vm2478 = vcmp.eq.s32.totalorder %v2446, 1
    %vm2479 = vcmp.eq.s32.totalorder %v2447, 1
    %vm2480 = vcmp.eq.s32.totalorder %v2448, 1
    %vm2481 = vcmp.eq.s32.totalorder %v2449, 1
    %vm2482 = vcmp.eq.s32.totalorder %v2450, 1
    %vm2483 = vcmp.eq.s32.totalorder %v2451, 1
    %vm2484 = vcmp.eq.s32.totalorder %v2452, 1
    %vm2485 = vcmp.eq.s32.totalorder %v2453, 1
    %vm2486 = vcmp.eq.s32.totalorder %v2454, 1
    %vm2487 = vcmp.eq.s32.totalorder %v2455, 1
    %vm2488 = vcmp.eq.s32.totalorder %v2456, 1
    %vm2489 = vcmp.eq.s32.totalorder %v2457, 1
    %vm2490 = vcmp.eq.s32.totalorder %v2458, 1
    %vm2491 = vcmp.eq.s32.totalorder %v2459, 1
    %vm2492 = vcmp.eq.s32.totalorder %v2460, 1
    %vm2493 = vcmp.eq.s32.totalorder %v2461, 1
    %vm2494 = vcmp.eq.s32.totalorder %v2462, 1
    %vm2495 = vcmp.eq.s32.totalorder %v2463, 1
    %vm2496 = vcmp.eq.s32.totalorder %v2464, 1
    %vm2497 = vcmp.eq.s32.totalorder %v2465, 1
    %vm2498 = vcmp.eq.s32.totalorder %v2466, 1
    %vm2499 = vcmp.eq.s32.totalorder %v2467, 1
    %vm2500 = vcmp.eq.s32.totalorder %v2468, 1
    %vm2501 = vcmp.eq.s32.totalorder %v2469, 1
    %vm2502 = vcmp.eq.s32.totalorder %v2470, 1
    %vm2503 = vcmp.eq.s32.totalorder %v2471, 1
    %vm2504 = vcmp.eq.s32.totalorder %v2472, 1
    %v2505 = vsel %vm2473, %v2439, 0.0
    %v2506 = vsel %vm2474, %v2438, 0.0
    %v2507 = vsel %vm2475, %v2437, 0.0
    %v2508 = vsel %vm2476, %v2436, 0.0
    %v2509 = vsel %vm2477, %v2435, 0.0
    %v2510 = vsel %vm2478, %v2434, 0.0
    %v2511 = vsel %vm2479, %v2433, 0.0
    %v2512 = vsel %vm2480, %v2432, 0.0
    %v2513 = vsel %vm2481, %v2431, 0.0
    %v2514 = vsel %vm2482, %v2430, 0.0
    %v2515 = vsel %vm2483, %v2429, 0.0
    %v2516 = vsel %vm2484, %v2428, 0.0
    %v2517 = vsel %vm2485, %v2427, 0.0
    %v2518 = vsel %vm2486, %v2426, 0.0
    %v2519 = vsel %vm2487, %v2425, 0.0
    %v2520 = vsel %vm2488, %v2424, 0.0
    %v2521 = vsel %vm2489, %v2423, 0.0
    %v2522 = vsel %vm2490, %v2422, 0.0
    %v2523 = vsel %vm2491, %v2421, 0.0
    %v2524 = vsel %vm2492, %v2420, 0.0
    %v2525 = vsel %vm2493, %v2419, 0.0
    %v2526 = vsel %vm2494, %v2418, 0.0
    %v2527 = vsel %vm2495, %v2417, 0.0
    %v2528 = vsel %vm2496, %v2416, 0.0
    %v2529 = vsel %vm2497, %v2415, 0.0
    %v2530 = vsel %vm2498, %v2414, 0.0
    %v2531 = vsel %vm2499, %v2413, 0.0
    %v2532 = vsel %vm2500, %v2412, 0.0
    %v2533 = vsel %vm2501, %v2411, 0.0
    %v2534 = vsel %vm2502, %v2410, 0.0
    %v2535 = vsel %vm2503, %v2409, 0.0
    %v2536 = vsel %vm2504, %v2440, 0.0
    %2569 = vrot.lane.b32.xlu0 %v2183, 64
    %v2570 = vpop.permute.xlu0 %2569
    %2571 = vrot.lane.b32.xlu0 %v2184, 64
    %v2572 = vpop.permute.xlu0 %2571
    %2573 = vrot.lane.b32.xlu0 %v2185, 64
    %v2574 = vpop.permute.xlu0 %2573
    %2575 = vrot.lane.b32.xlu0 %v2186, 64
    %v2576 = vpop.permute.xlu0 %2575
    %2577 = vrot.lane.b32.xlu0 %v2187, 64
    %v2578 = vpop.permute.xlu0 %2577
    %2579 = vrot.lane.b32.xlu0 %v2188, 64
    %v2580 = vpop.permute.xlu0 %2579
    %2581 = vrot.lane.b32.xlu0 %v2189, 64
    %v2582 = vpop.permute.xlu0 %2581
    %2583 = vrot.lane.b32.xlu0 %v2190, 64
    %v2584 = vpop.permute.xlu0 %2583
    %2585 = vrot.lane.b32.xlu0 %v2191, 64
    %v2586 = vpop.permute.xlu0 %2585
    %2587 = vrot.lane.b32.xlu0 %v2192, 64
    %v2588 = vpop.permute.xlu0 %2587
    %2589 = vrot.lane.b32.xlu0 %v2193, 64
    %v2590 = vpop.permute.xlu0 %2589
    %2591 = vrot.lane.b32.xlu0 %v2194, 64
    %v2592 = vpop.permute.xlu0 %2591
    %2593 = vrot.lane.b32.xlu0 %v2195, 64
    %v2594 = vpop.permute.xlu0 %2593
    %2595 = vrot.lane.b32.xlu0 %v2196, 64
    %v2596 = vpop.permute.xlu0 %2595
    %2597 = vrot.lane.b32.xlu0 %v2197, 64
    %v2598 = vpop.permute.xlu0 %2597
    %2599 = vrot.lane.b32.xlu0 %v2198, 64
    %v2600 = vpop.permute.xlu0 %2599
    %2601 = vrot.lane.b32.xlu0 %v2199, 64
    %v2602 = vpop.permute.xlu0 %2601
    %2603 = vrot.lane.b32.xlu0 %v2200, 64
    %v2604 = vpop.permute.xlu0 %2603
    %2605 = vrot.lane.b32.xlu0 %v2201, 64
    %v2606 = vpop.permute.xlu0 %2605
    %2607 = vrot.lane.b32.xlu0 %v2202, 64
    %v2608 = vpop.permute.xlu0 %2607
    %2609 = vrot.lane.b32.xlu0 %v2203, 64
    %v2610 = vpop.permute.xlu0 %2609
    %2611 = vrot.lane.b32.xlu0 %v2204, 64
    %v2612 = vpop.permute.xlu0 %2611
    %2613 = vrot.lane.b32.xlu0 %v2205, 64
    %v2614 = vpop.permute.xlu0 %2613
    %2615 = vrot.lane.b32.xlu0 %v2206, 64
    %v2616 = vpop.permute.xlu0 %2615
    %2617 = vrot.lane.b32.xlu0 %v2207, 64
    %v2618 = vpop.permute.xlu0 %2617
    %2619 = vrot.lane.b32.xlu0 %v2208, 64
    %v2620 = vpop.permute.xlu0 %2619
    %2621 = vrot.lane.b32.xlu0 %v2209, 64
    %v2622 = vpop.permute.xlu0 %2621
    %2623 = vrot.lane.b32.xlu0 %v2210, 64
    %v2624 = vpop.permute.xlu0 %2623
    %2625 = vrot.lane.b32.xlu0 %v2211, 64
    %v2626 = vpop.permute.xlu0 %2625
    %2627 = vrot.lane.b32.xlu0 %v2212, 64
    %v2628 = vpop.permute.xlu0 %2627
    %2629 = vrot.lane.b32.xlu0 %v2213, 64
    %v2630 = vpop.permute.xlu0 %2629
    %2631 = vrot.lane.b32.xlu0 %v2214, 64
    %v2632 = vpop.permute.xlu0 %2631
    %v2665 = vsel %vm1084, %v2344, %v2570
    %v2666 = vsel %vm1084, %v2345, %v2572
    %v2667 = vsel %vm1084, %v2346, %v2574
    %v2668 = vsel %vm1084, %v2347, %v2576
    %v2669 = vsel %vm1084, %v2348, %v2578
    %v2670 = vsel %vm1084, %v2349, %v2580
    %v2671 = vsel %vm1084, %v2350, %v2582
    %v2672 = vsel %vm1084, %v2351, %v2584
    %v2673 = vsel %vm1084, %v2352, %v2586
    %v2674 = vsel %vm1084, %v2353, %v2588
    %v2675 = vsel %vm1084, %v2354, %v2590
    %v2676 = vsel %vm1084, %v2355, %v2592
    %v2677 = vsel %vm1084, %v2356, %v2594
    %v2678 = vsel %vm1084, %v2357, %v2596
    %v2679 = vsel %vm1084, %v2358, %v2598
    %v2680 = vsel %vm1084, %v2359, %v2600
    %v2681 = vsel %vm1084, %v2360, %v2602
    %v2682 = vsel %vm1084, %v2361, %v2604
    %v2683 = vsel %vm1084, %v2362, %v2606
    %v2684 = vsel %vm1084, %v2363, %v2608
    %v2685 = vsel %vm1084, %v2364, %v2610
    %v2686 = vsel %vm1084, %v2365, %v2612
    %v2687 = vsel %vm1084, %v2366, %v2614
    %v2688 = vsel %vm1084, %v2367, %v2616
    %v2689 = vsel %vm1084, %v2368, %v2618
    %v2690 = vsel %vm1084, %v2369, %v2620
    %v2691 = vsel %vm1084, %v2370, %v2622
    %v2692 = vsel %vm1084, %v2371, %v2624
    %v2693 = vsel %vm1084, %v2372, %v2626
    %v2694 = vsel %vm1084, %v2373, %v2628
    %v2695 = vsel %vm1084, %v2374, %v2630
    %v2696 = vsel %vm1084, %v2375, %v2632
    %v2697 = vpack.c.bf16 %v2666, %v2665
    %v2698 = vpack.c.bf16 %v2506, %v2505
    %v2699 = vpack.c.bf16 %v2668, %v2667
    %v2700 = vpack.c.bf16 %v2508, %v2507
    %v2701 = vpack.c.bf16 %v2670, %v2669
    %v2702 = vpack.c.bf16 %v2510, %v2509
    %v2703 = vpack.c.bf16 %v2672, %v2671
    %v2704 = vpack.c.bf16 %v2512, %v2511
    %v2705 = vpack.c.bf16 %v2674, %v2673
    %v2706 = vpack.c.bf16 %v2514, %v2513
    %v2707 = vpack.c.bf16 %v2676, %v2675
    %v2708 = vpack.c.bf16 %v2516, %v2515
    %v2709 = vpack.c.bf16 %v2678, %v2677
    %v2710 = vpack.c.bf16 %v2518, %v2517
    %v2711 = vpack.c.bf16 %v2680, %v2679
    %v2712 = vpack.c.bf16 %v2520, %v2519
    %v2713 = vpack.c.bf16 %v2682, %v2681
    %v2714 = vpack.c.bf16 %v2522, %v2521
    %v2715 = vpack.c.bf16 %v2684, %v2683
    %v2716 = vpack.c.bf16 %v2524, %v2523
    %v2717 = vpack.c.bf16 %v2686, %v2685
    %v2718 = vpack.c.bf16 %v2526, %v2525
    %v2719 = vpack.c.bf16 %v2688, %v2687
    %v2720 = vpack.c.bf16 %v2528, %v2527
    %v2721 = vpack.c.bf16 %v2690, %v2689
    %v2722 = vpack.c.bf16 %v2530, %v2529
    %v2723 = vpack.c.bf16 %v2692, %v2691
    %v2724 = vpack.c.bf16 %v2532, %v2531
    %v2725 = vpack.c.bf16 %v2694, %v2693
    %v2726 = vpack.c.bf16 %v2534, %v2533
    %v2727 = vpack.c.bf16 %v2696, %v2695
    %v2728 = vpack.c.bf16 %v2536, %v2535
    %v2729 = vld [vmem:[%s7] sm:$0xf]
    %v2730 = vld [vmem:[%s7 + $0x4] sm:$0xf]
    %v2731 = vld [vmem:[%s7 + $0x8] sm:$0xf]
    %v2732 = vld [vmem:[%s7 + $0xc] sm:$0xf]
    %v2733 = vld [vmem:[%s7 + $0x10] sm:$0xf]
    %v2734 = vld [vmem:[%s7 + $0x14] sm:$0xf]
    %v2735 = vld [vmem:[%s7 + $0x18] sm:$0xf]
    %v2736 = vld [vmem:[%s7 + $0x1c] sm:$0xf]
    %v2737 = vld [vmem:[%s7 + $0x20] sm:$0xf]
    %v2738 = vld [vmem:[%s7 + $0x24] sm:$0xf]
    %v2739 = vld [vmem:[%s7 + $0x28] sm:$0xf]
    %v2740 = vld [vmem:[%s7 + $0x2c] sm:$0xf]
    %v2741 = vld [vmem:[%s7 + $0x30] sm:$0xf]
    %v2742 = vld [vmem:[%s7 + $0x34] sm:$0xf]
    %v2743 = vld [vmem:[%s7 + $0x38] sm:$0xf]
    %v2744 = vld [vmem:[%s7 + $0x3c] sm:$0xf]
    %v2745 = vld [vmem:[%s7 + $0x40] sm:$0xf]
    %v2746 = vld [vmem:[%s7 + $0x44] sm:$0xf]
    %v2747 = vld [vmem:[%s7 + $0x48] sm:$0xf]
    %v2748 = vld [vmem:[%s7 + $0x4c] sm:$0xf]
    %v2749 = vld [vmem:[%s7 + $0x50] sm:$0xf]
    %v2750 = vld [vmem:[%s7 + $0x54] sm:$0xf]
    %v2751 = vld [vmem:[%s7 + $0x58] sm:$0xf]
    %v2752 = vld [vmem:[%s7 + $0x5c] sm:$0xf]
    %v2753 = vld [vmem:[%s8] sm:$0x1]
    %v2755 = vperm.slane %v2753, 0
    %v2781 = vunpack.c.l.b16 %v2729
    %v2782 = vunpack.c.l.b16 %v2730
    %v2783 = vunpack.c.l.b16 %v2731
    %v2784 = vunpack.c.l.b16 %v2732
    %v2785 = vunpack.c.l.b16 %v2733
    %v2786 = vunpack.c.l.b16 %v2734
    %v2787 = vunpack.c.l.b16 %v2735
    %v2788 = vunpack.c.l.b16 %v2736
    %v2789 = vunpack.c.l.b16 %v2737
    %v2790 = vunpack.c.l.b16 %v2738
    %v2791 = vunpack.c.l.b16 %v2739
    %v2792 = vunpack.c.l.b16 %v2740
    %v2793 = vunpack.c.l.b16 %v2741
    %v2794 = vunpack.c.l.b16 %v2742
    %v2795 = vunpack.c.l.b16 %v2743
    %v2796 = vunpack.c.l.b16 %v2744
    %v2797 = vunpack.c.l.b16 %v2745
    %v2798 = vunpack.c.l.b16 %v2746
    %v2799 = vunpack.c.l.b16 %v2747
    %v2800 = vunpack.c.l.b16 %v2748
    %v2801 = vunpack.c.l.b16 %v2749
    %v2802 = vunpack.c.l.b16 %v2750
    %v2803 = vunpack.c.l.b16 %v2751
    %v2804 = vunpack.c.l.b16 %v2752
    %v2805 = vpack.c.b16 %v2782, %v2781
    %v2806 = vpack.c.b16 %v2784, %v2783
    %v2807 = vpack.c.b16 %v2786, %v2785
    %v2808 = vpack.c.b16 %v2788, %v2787
    %v2809 = vpack.c.b16 %v2790, %v2789
    %v2810 = vpack.c.b16 %v2792, %v2791
    %v2811 = vpack.c.b16 %v2794, %v2793
    %v2812 = vpack.c.b16 %v2796, %v2795
    %v2813 = vpack.c.b16 %v2798, %v2797
    %v2814 = vpack.c.b16 %v2800, %v2799
    %v2815 = vpack.c.b16 %v2802, %v2801
    %v2816 = vpack.c.b16 %v2804, %v2803
    %v2830 = vsel %vm1084, %v2698, 0
    %v2833 = vsel %vm1084, %v2700, 0
    %v2836 = vsel %vm1084, %v2702, 0
    %v2839 = vsel %vm1084, %v2704, 0
    %v2842 = vsel %vm1084, %v2706, 0
    %v2845 = vsel %vm1084, %v2708, 0
    %v2848 = vsel %vm1084, %v2710, 0
    %v2851 = vsel %vm1084, %v2712, 0
    %v2854 = vsel %vm1084, %v2714, 0
    %v2857 = vsel %vm1084, %v2716, 0
    %v2860 = vsel %vm1084, %v2718, 0
    %v2863 = vsel %vm1084, %v2720, 0
    %v2866 = vsel %vm1084, %v2722, 0
    %v2869 = vsel %vm1084, %v2724, 0
    %v2872 = vsel %vm1084, %v2726, 0
    %v2875 = vsel %vm1084, %v2728, 0
    %2877 = vmatpush.bf16.msra.mxu0 %v2812
    %2878 = vmatpush.bf16.msra.mxu0 %v2811
    %2879 = vmatpush.bf16.msra.mxu0 %v2810
    %2880 = vmatpush.bf16.msra.mxu0 %v2809
    %2881 = vmatpush.bf16.msra.mxu0 %v2808
    %2882 = vmatpush.bf16.msra.mxu0 %v2807
    %2883 = vmatpush.bf16.msra.mxu0 %v2806
    %2884 = vmatpush.bf16.msra.mxu0 %v2805
    %2885 = vmatmul.bf16.gmra.mxu0 %v2697
    %v2886 = vpop.f32.mrf.mxu0
    %v2887 = vadd.f32 %v2755, %v2886
    %v2888 = vpop.f32.mrf.mxu0
    %v2889 = vadd.f32 %v2755, %v2888
    %2890 = vmatmul.bf16.gmra.mxu0 %v2699
    %v2891 = vpop.f32.mrf.mxu0
    %v2892 = vadd.f32 %v2755, %v2891
    %v2893 = vpop.f32.mrf.mxu0
    %v2894 = vadd.f32 %v2755, %v2893
    %2895 = vmatmul.bf16.gmra.mxu0 %v2701
    %v2896 = vpop.f32.mrf.mxu0
    %v2897 = vadd.f32 %v2755, %v2896
    %v2898 = vpop.f32.mrf.mxu0
    %v2899 = vadd.f32 %v2755, %v2898
    %2900 = vmatmul.bf16.gmra.mxu0 %v2703
    %v2901 = vpop.f32.mrf.mxu0
    %v2902 = vadd.f32 %v2755, %v2901
    %v2903 = vpop.f32.mrf.mxu0
    %v2904 = vadd.f32 %v2755, %v2903
    %2905 = vmatmul.bf16.gmra.mxu0 %v2705
    %v2906 = vpop.f32.mrf.mxu0
    %v2907 = vadd.f32 %v2755, %v2906
    %v2908 = vpop.f32.mrf.mxu0
    %v2909 = vadd.f32 %v2755, %v2908
    %2910 = vmatmul.bf16.gmra.mxu0 %v2707
    %v2911 = vpop.f32.mrf.mxu0
    %v2912 = vadd.f32 %v2755, %v2911
    %v2913 = vpop.f32.mrf.mxu0
    %v2914 = vadd.f32 %v2755, %v2913
    %2915 = vmatmul.bf16.gmra.mxu0 %v2709
    %v2916 = vpop.f32.mrf.mxu0
    %v2917 = vadd.f32 %v2755, %v2916
    %v2918 = vpop.f32.mrf.mxu0
    %v2919 = vadd.f32 %v2755, %v2918
    %2920 = vmatmul.bf16.gmra.mxu0 %v2711
    %v2921 = vpop.f32.mrf.mxu0
    %v2922 = vadd.f32 %v2755, %v2921
    %v2923 = vpop.f32.mrf.mxu0
    %v2924 = vadd.f32 %v2755, %v2923
    %2925 = vmatmul.bf16.gmra.mxu0 %v2713
    %v2926 = vpop.f32.mrf.mxu0
    %v2927 = vadd.f32 %v2755, %v2926
    %v2928 = vpop.f32.mrf.mxu0
    %v2929 = vadd.f32 %v2755, %v2928
    %2930 = vmatmul.bf16.gmra.mxu0 %v2715
    %v2931 = vpop.f32.mrf.mxu0
    %v2932 = vadd.f32 %v2755, %v2931
    %v2933 = vpop.f32.mrf.mxu0
    %v2934 = vadd.f32 %v2755, %v2933
    %2935 = vmatmul.bf16.gmra.mxu0 %v2717
    %v2936 = vpop.f32.mrf.mxu0
    %v2937 = vadd.f32 %v2755, %v2936
    %v2938 = vpop.f32.mrf.mxu0
    %v2939 = vadd.f32 %v2755, %v2938
    %2940 = vmatmul.bf16.gmra.mxu0 %v2719
    %v2941 = vpop.f32.mrf.mxu0
    %v2942 = vadd.f32 %v2755, %v2941
    %v2943 = vpop.f32.mrf.mxu0
    %v2944 = vadd.f32 %v2755, %v2943
    %2945 = vmatmul.bf16.gmra.mxu0 %v2721
    %v2946 = vpop.f32.mrf.mxu0
    %v2947 = vadd.f32 %v2755, %v2946
    %v2948 = vpop.f32.mrf.mxu0
    %v2949 = vadd.f32 %v2755, %v2948
    %2950 = vmatmul.bf16.gmra.mxu0 %v2723
    %v2951 = vpop.f32.mrf.mxu0
    %v2952 = vadd.f32 %v2755, %v2951
    %v2953 = vpop.f32.mrf.mxu0
    %v2954 = vadd.f32 %v2755, %v2953
    %2955 = vmatmul.bf16.gmra.mxu0 %v2725
    %v2956 = vpop.f32.mrf.mxu0
    %v2957 = vadd.f32 %v2755, %v2956
    %v2958 = vpop.f32.mrf.mxu0
    %v2959 = vadd.f32 %v2755, %v2958
    %2960 = vmatmul.bf16.gmra.mxu0 %v2727
    %v2961 = vpop.f32.mrf.mxu0
    %v2962 = vadd.f32 %v2755, %v2961
    %v2963 = vpop.f32.mrf.mxu0
    %v2964 = vadd.f32 %v2755, %v2963
    %2965 = vdwg.mxu0
    %2966 = vmatpush.bf16.msra.mxu0 0
    %2967 = vmatpush.bf16.msra.mxu0 0
    %2968 = vmatpush.bf16.msra.mxu0 0
    %2969 = vmatpush.bf16.msra.mxu0 0
    %2970 = vmatpush.bf16.msra.mxu0 %v2816
    %2971 = vmatpush.bf16.msra.mxu0 %v2815
    %2972 = vmatpush.bf16.msra.mxu0 %v2814
    %2973 = vmatpush.bf16.msra.mxu0 %v2813
    %2974 = vmatmul.bf16.gmra.mxu0 %v2830
    %v2975 = vpop.f32.mrf.mxu0
    %v2976 = vadd.f32 %v2887, %v2975
    %v2977 = vpop.f32.mrf.mxu0
    %v2978 = vadd.f32 %v2889, %v2977
    %2979 = vmatmul.bf16.gmra.mxu0 %v2833
    %v2980 = vpop.f32.mrf.mxu0
    %v2981 = vadd.f32 %v2892, %v2980
    %v2982 = vpop.f32.mrf.mxu0
    %v2983 = vadd.f32 %v2894, %v2982
    %2984 = vmatmul.bf16.gmra.mxu0 %v2836
    %v2985 = vpop.f32.mrf.mxu0
    %v2986 = vadd.f32 %v2897, %v2985
    %v2987 = vpop.f32.mrf.mxu0
    %v2988 = vadd.f32 %v2899, %v2987
    %2989 = vmatmul.bf16.gmra.mxu0 %v2839
    %v2990 = vpop.f32.mrf.mxu0
    %v2991 = vadd.f32 %v2902, %v2990
    %v2992 = vpop.f32.mrf.mxu0
    %v2993 = vadd.f32 %v2904, %v2992
    %2994 = vmatmul.bf16.gmra.mxu0 %v2842
    %v2995 = vpop.f32.mrf.mxu0
    %v2996 = vadd.f32 %v2907, %v2995
    %v2997 = vpop.f32.mrf.mxu0
    %v2998 = vadd.f32 %v2909, %v2997
    %2999 = vmatmul.bf16.gmra.mxu0 %v2845
    %v3000 = vpop.f32.mrf.mxu0
    %v3001 = vadd.f32 %v2912, %v3000
    %v3002 = vpop.f32.mrf.mxu0
    %v3003 = vadd.f32 %v2914, %v3002
    %3004 = vmatmul.bf16.gmra.mxu0 %v2848
    %v3005 = vpop.f32.mrf.mxu0
    %v3006 = vadd.f32 %v2917, %v3005
    %v3007 = vpop.f32.mrf.mxu0
    %v3008 = vadd.f32 %v2919, %v3007
    %3009 = vmatmul.bf16.gmra.mxu0 %v2851
    %v3010 = vpop.f32.mrf.mxu0
    %v3011 = vadd.f32 %v2922, %v3010
    %v3012 = vpop.f32.mrf.mxu0
    %v3013 = vadd.f32 %v2924, %v3012
    %3014 = vmatmul.bf16.gmra.mxu0 %v2854
    %v3015 = vpop.f32.mrf.mxu0
    %v3016 = vadd.f32 %v2927, %v3015
    %v3017 = vpop.f32.mrf.mxu0
    %v3018 = vadd.f32 %v2929, %v3017
    %3019 = vmatmul.bf16.gmra.mxu0 %v2857
    %v3020 = vpop.f32.mrf.mxu0
    %v3021 = vadd.f32 %v2932, %v3020
    %v3022 = vpop.f32.mrf.mxu0
    %v3023 = vadd.f32 %v2934, %v3022
    %3024 = vmatmul.bf16.gmra.mxu0 %v2860
    %v3025 = vpop.f32.mrf.mxu0
    %v3026 = vadd.f32 %v2937, %v3025
    %v3027 = vpop.f32.mrf.mxu0
    %v3028 = vadd.f32 %v2939, %v3027
    %3029 = vmatmul.bf16.gmra.mxu0 %v2863
    %v3030 = vpop.f32.mrf.mxu0
    %v3031 = vadd.f32 %v2942, %v3030
    %v3032 = vpop.f32.mrf.mxu0
    %v3033 = vadd.f32 %v2944, %v3032
    %3034 = vmatmul.bf16.gmra.mxu0 %v2866
    %v3035 = vpop.f32.mrf.mxu0
    %v3036 = vadd.f32 %v2947, %v3035
    %v3037 = vpop.f32.mrf.mxu0
    %v3038 = vadd.f32 %v2949, %v3037
    %3039 = vmatmul.bf16.gmra.mxu0 %v2869
    %v3040 = vpop.f32.mrf.mxu0
    %v3041 = vadd.f32 %v2952, %v3040
    %v3042 = vpop.f32.mrf.mxu0
    %v3043 = vadd.f32 %v2954, %v3042
    %3044 = vmatmul.bf16.gmra.mxu0 %v2872
    %v3045 = vpop.f32.mrf.mxu0
    %v3046 = vadd.f32 %v2957, %v3045
    %v3047 = vpop.f32.mrf.mxu0
    %v3048 = vadd.f32 %v2959, %v3047
    %3049 = vmatmul.bf16.gmra.mxu0 %v2875
    %v3050 = vpop.f32.mrf.mxu0
    %v3051 = vadd.f32 %v2962, %v3050
    %v3052 = vpop.f32.mrf.mxu0
    %v3053 = vadd.f32 %v2964, %v3052
    %3054 = vdwg.mxu0
    %v3055 = vmax.f32 %v2976, 0.0
    %v3056 = vmax.f32 %v2978, 0.0
    %v3057 = vmax.f32 %v2981, 0.0
    %v3058 = vmax.f32 %v2983, 0.0
    %v3059 = vmax.f32 %v2986, 0.0
    %v3060 = vmax.f32 %v2988, 0.0
    %v3061 = vmax.f32 %v2991, 0.0
    %v3062 = vmax.f32 %v2993, 0.0
    %v3063 = vmax.f32 %v2996, 0.0
    %v3064 = vmax.f32 %v2998, 0.0
    %v3065 = vmax.f32 %v3001, 0.0
    %v3066 = vmax.f32 %v3003, 0.0
    %v3067 = vmax.f32 %v3006, 0.0
    %v3068 = vmax.f32 %v3008, 0.0
    %v3069 = vmax.f32 %v3011, 0.0
    %v3070 = vmax.f32 %v3013, 0.0
    %v3071 = vmax.f32 %v3016, 0.0
    %v3072 = vmax.f32 %v3018, 0.0
    %v3073 = vmax.f32 %v3021, 0.0
    %v3074 = vmax.f32 %v3023, 0.0
    %v3075 = vmax.f32 %v3026, 0.0
    %v3076 = vmax.f32 %v3028, 0.0
    %v3077 = vmax.f32 %v3031, 0.0
    %v3078 = vmax.f32 %v3033, 0.0
    %v3079 = vmax.f32 %v3036, 0.0
    %v3080 = vmax.f32 %v3038, 0.0
    %v3081 = vmax.f32 %v3041, 0.0
    %v3082 = vmax.f32 %v3043, 0.0
    %v3083 = vmax.f32 %v3046, 0.0
    %v3084 = vmax.f32 %v3048, 0.0
    %v3085 = vmax.f32 %v3051, 0.0
    %v3086 = vmax.f32 %v3053, 0.0
    %v3087 = vrot.slane %v3055, 6
    %v3088 = vrot.slane %v3056, 6
    %v3089 = vrot.slane %v3057, 6
    %v3090 = vrot.slane %v3058, 6
    %v3091 = vrot.slane %v3059, 6
    %v3092 = vrot.slane %v3060, 6
    %v3093 = vrot.slane %v3061, 6
    %v3094 = vrot.slane %v3062, 6
    %v3095 = vrot.slane %v3063, 6
    %v3096 = vrot.slane %v3064, 6
    %v3097 = vrot.slane %v3065, 6
    %v3098 = vrot.slane %v3066, 6
    %v3099 = vrot.slane %v3067, 6
    %v3100 = vrot.slane %v3068, 6
    %v3101 = vrot.slane %v3069, 6
    %v3102 = vrot.slane %v3070, 6
    %v3103 = vrot.slane %v3071, 6
    %v3104 = vrot.slane %v3072, 6
    %v3105 = vrot.slane %v3073, 6
    %v3106 = vrot.slane %v3074, 6
    %v3107 = vrot.slane %v3075, 6
    %v3108 = vrot.slane %v3076, 6
    %v3109 = vrot.slane %v3077, 6
    %v3110 = vrot.slane %v3078, 6
    %v3111 = vrot.slane %v3079, 6
    %v3112 = vrot.slane %v3080, 6
    %v3113 = vrot.slane %v3081, 6
    %v3114 = vrot.slane %v3082, 6
    %v3115 = vrot.slane %v3083, 6
    %v3116 = vrot.slane %v3084, 6
    %v3117 = vrot.slane %v3085, 6
    %v3118 = vrot.slane %v3086, 6
    %v3119 = vsel %vm2247, %v3117, %v3118
    %v3120 = vsel %vm2247, %v3116, %v3117
    %v3121 = vsel %vm2247, %v3115, %v3116
    %v3122 = vsel %vm2247, %v3114, %v3115
    %v3123 = vsel %vm2247, %v3113, %v3114
    %v3124 = vsel %vm2247, %v3112, %v3113
    %v3125 = vsel %vm2247, %v3111, %v3112
    %v3126 = vsel %vm2247, %v3110, %v3111
    %v3127 = vsel %vm2247, %v3109, %v3110
    %v3128 = vsel %vm2247, %v3108, %v3109
    %v3129 = vsel %vm2247, %v3107, %v3108
    %v3130 = vsel %vm2247, %v3106, %v3107
    %v3131 = vsel %vm2247, %v3105, %v3106
    %v3132 = vsel %vm2247, %v3104, %v3105
    %v3133 = vsel %vm2247, %v3103, %v3104
    %v3134 = vsel %vm2247, %v3102, %v3103
    %v3135 = vsel %vm2247, %v3101, %v3102
    %v3136 = vsel %vm2247, %v3100, %v3101
    %v3137 = vsel %vm2247, %v3099, %v3100
    %v3138 = vsel %vm2247, %v3098, %v3099
    %v3139 = vsel %vm2247, %v3097, %v3098
    %v3140 = vsel %vm2247, %v3096, %v3097
    %v3141 = vsel %vm2247, %v3095, %v3096
    %v3142 = vsel %vm2247, %v3094, %v3095
    %v3143 = vsel %vm2247, %v3093, %v3094
    %v3144 = vsel %vm2247, %v3092, %v3093
    %v3145 = vsel %vm2247, %v3091, %v3092
    %v3146 = vsel %vm2247, %v3090, %v3091
    %v3147 = vsel %vm2247, %v3089, %v3090
    %v3148 = vsel %vm2247, %v3088, %v3089
    %v3149 = vsel %vm2247, %v3087, %v3088
    %v3150 = vsel %vm2247, %v3118, %v3087
    %v3151 = vsel %vm2312, %v3150, 0.0
    %v3152 = vsel %vm2313, %v3149, 0.0
    %v3153 = vsel %vm2314, %v3148, 0.0
    %v3154 = vsel %vm2315, %v3147, 0.0
    %v3155 = vsel %vm2316, %v3146, 0.0
    %v3156 = vsel %vm2317, %v3145, 0.0
    %v3157 = vsel %vm2318, %v3144, 0.0
    %v3158 = vsel %vm2319, %v3143, 0.0
    %v3159 = vsel %vm2320, %v3142, 0.0
    %v3160 = vsel %vm2321, %v3141, 0.0
    %v3161 = vsel %vm2322, %v3140, 0.0
    %v3162 = vsel %vm2323, %v3139, 0.0
    %v3163 = vsel %vm2324, %v3138, 0.0
    %v3164 = vsel %vm2325, %v3137, 0.0
    %v3165 = vsel %vm2326, %v3136, 0.0
    %v3166 = vsel %vm2327, %v3135, 0.0
    %v3167 = vsel %vm2328, %v3134, 0.0
    %v3168 = vsel %vm2329, %v3133, 0.0
    %v3169 = vsel %vm2330, %v3132, 0.0
    %v3170 = vsel %vm2331, %v3131, 0.0
    %v3171 = vsel %vm2332, %v3130, 0.0
    %v3172 = vsel %vm2333, %v3129, 0.0
    %v3173 = vsel %vm2334, %v3128, 0.0
    %v3174 = vsel %vm2335, %v3127, 0.0
    %v3175 = vsel %vm2336, %v3126, 0.0
    %v3176 = vsel %vm2337, %v3125, 0.0
    %v3177 = vsel %vm2338, %v3124, 0.0
    %v3178 = vsel %vm2339, %v3123, 0.0
    %v3179 = vsel %vm2340, %v3122, 0.0
    %v3180 = vsel %vm2341, %v3121, 0.0
    %v3181 = vsel %vm2342, %v3120, 0.0
    %v3182 = vsel %vm2343, %v3119, 0.0
    %v3183 = vrot.slane %v3055, 2
    %v3184 = vrot.slane %v3056, 2
    %v3185 = vrot.slane %v3057, 2
    %v3186 = vrot.slane %v3058, 2
    %v3187 = vrot.slane %v3059, 2
    %v3188 = vrot.slane %v3060, 2
    %v3189 = vrot.slane %v3061, 2
    %v3190 = vrot.slane %v3062, 2
    %v3191 = vrot.slane %v3063, 2
    %v3192 = vrot.slane %v3064, 2
    %v3193 = vrot.slane %v3065, 2
    %v3194 = vrot.slane %v3066, 2
    %v3195 = vrot.slane %v3067, 2
    %v3196 = vrot.slane %v3068, 2
    %v3197 = vrot.slane %v3069, 2
    %v3198 = vrot.slane %v3070, 2
    %v3199 = vrot.slane %v3071, 2
    %v3200 = vrot.slane %v3072, 2
    %v3201 = vrot.slane %v3073, 2
    %v3202 = vrot.slane %v3074, 2
    %v3203 = vrot.slane %v3075, 2
    %v3204 = vrot.slane %v3076, 2
    %v3205 = vrot.slane %v3077, 2
    %v3206 = vrot.slane %v3078, 2
    %v3207 = vrot.slane %v3079, 2
    %v3208 = vrot.slane %v3080, 2
    %v3209 = vrot.slane %v3081, 2
    %v3210 = vrot.slane %v3082, 2
    %v3211 = vrot.slane %v3083, 2
    %v3212 = vrot.slane %v3084, 2
    %v3213 = vrot.slane %v3085, 2
    %v3214 = vrot.slane %v3086, 2
    %v3215 = vsel %vm2408, %v3213, %v3214
    %v3216 = vsel %vm2408, %v3212, %v3213
    %v3217 = vsel %vm2408, %v3211, %v3212
    %v3218 = vsel %vm2408, %v3210, %v3211
    %v3219 = vsel %vm2408, %v3209, %v3210
    %v3220 = vsel %vm2408, %v3208, %v3209
    %v3221 = vsel %vm2408, %v3207, %v3208
    %v3222 = vsel %vm2408, %v3206, %v3207
    %v3223 = vsel %vm2408, %v3205, %v3206
    %v3224 = vsel %vm2408, %v3204, %v3205
    %v3225 = vsel %vm2408, %v3203, %v3204
    %v3226 = vsel %vm2408, %v3202, %v3203
    %v3227 = vsel %vm2408, %v3201, %v3202
    %v3228 = vsel %vm2408, %v3200, %v3201
    %v3229 = vsel %vm2408, %v3199, %v3200
    %v3230 = vsel %vm2408, %v3198, %v3199
    %v3231 = vsel %vm2408, %v3197, %v3198
    %v3232 = vsel %vm2408, %v3196, %v3197
    %v3233 = vsel %vm2408, %v3195, %v3196
    %v3234 = vsel %vm2408, %v3194, %v3195
    %v3235 = vsel %vm2408, %v3193, %v3194
    %v3236 = vsel %vm2408, %v3192, %v3193
    %v3237 = vsel %vm2408, %v3191, %v3192
    %v3238 = vsel %vm2408, %v3190, %v3191
    %v3239 = vsel %vm2408, %v3189, %v3190
    %v3240 = vsel %vm2408, %v3188, %v3189
    %v3241 = vsel %vm2408, %v3187, %v3188
    %v3242 = vsel %vm2408, %v3186, %v3187
    %v3243 = vsel %vm2408, %v3185, %v3186
    %v3244 = vsel %vm2408, %v3184, %v3185
    %v3245 = vsel %vm2408, %v3183, %v3184
    %v3246 = vsel %vm2408, %v3214, %v3183
    %v3247 = vsel %vm2473, %v3245, 0.0
    %v3248 = vsel %vm2474, %v3244, 0.0
    %v3249 = vsel %vm2475, %v3243, 0.0
    %v3250 = vsel %vm2476, %v3242, 0.0
    %v3251 = vsel %vm2477, %v3241, 0.0
    %v3252 = vsel %vm2478, %v3240, 0.0
    %v3253 = vsel %vm2479, %v3239, 0.0
    %v3254 = vsel %vm2480, %v3238, 0.0
    %v3255 = vsel %vm2481, %v3237, 0.0
    %v3256 = vsel %vm2482, %v3236, 0.0
    %v3257 = vsel %vm2483, %v3235, 0.0
    %v3258 = vsel %vm2484, %v3234, 0.0
    %v3259 = vsel %vm2485, %v3233, 0.0
    %v3260 = vsel %vm2486, %v3232, 0.0
    %v3261 = vsel %vm2487, %v3231, 0.0
    %v3262 = vsel %vm2488, %v3230, 0.0
    %v3263 = vsel %vm2489, %v3229, 0.0
    %v3264 = vsel %vm2490, %v3228, 0.0
    %v3265 = vsel %vm2491, %v3227, 0.0
    %v3266 = vsel %vm2492, %v3226, 0.0
    %v3267 = vsel %vm2493, %v3225, 0.0
    %v3268 = vsel %vm2494, %v3224, 0.0
    %v3269 = vsel %vm2495, %v3223, 0.0
    %v3270 = vsel %vm2496, %v3222, 0.0
    %v3271 = vsel %vm2497, %v3221, 0.0
    %v3272 = vsel %vm2498, %v3220, 0.0
    %v3273 = vsel %vm2499, %v3219, 0.0
    %v3274 = vsel %vm2500, %v3218, 0.0
    %v3275 = vsel %vm2501, %v3217, 0.0
    %v3276 = vsel %vm2502, %v3216, 0.0
    %v3277 = vsel %vm2503, %v3215, 0.0
    %v3278 = vsel %vm2504, %v3246, 0.0
    %3311 = vrot.lane.b32.xlu0 %v3055, 64
    %v3312 = vpop.permute.xlu0 %3311
    %3313 = vrot.lane.b32.xlu0 %v3056, 64
    %v3314 = vpop.permute.xlu0 %3313
    %3315 = vrot.lane.b32.xlu0 %v3057, 64
    %v3316 = vpop.permute.xlu0 %3315
    %3317 = vrot.lane.b32.xlu0 %v3058, 64
    %v3318 = vpop.permute.xlu0 %3317
    %3319 = vrot.lane.b32.xlu0 %v3059, 64
    %v3320 = vpop.permute.xlu0 %3319
    %3321 = vrot.lane.b32.xlu0 %v3060, 64
    %v3322 = vpop.permute.xlu0 %3321
    %3323 = vrot.lane.b32.xlu0 %v3061, 64
    %v3324 = vpop.permute.xlu0 %3323
    %3325 = vrot.lane.b32.xlu0 %v3062, 64
    %v3326 = vpop.permute.xlu0 %3325
    %3327 = vrot.lane.b32.xlu0 %v3063, 64
    %v3328 = vpop.permute.xlu0 %3327
    %3329 = vrot.lane.b32.xlu0 %v3064, 64
    %v3330 = vpop.permute.xlu0 %3329
    %3331 = vrot.lane.b32.xlu0 %v3065, 64
    %v3332 = vpop.permute.xlu0 %3331
    %3333 = vrot.lane.b32.xlu0 %v3066, 64
    %v3334 = vpop.permute.xlu0 %3333
    %3335 = vrot.lane.b32.xlu0 %v3067, 64
    %v3336 = vpop.permute.xlu0 %3335
    %3337 = vrot.lane.b32.xlu0 %v3068, 64
    %v3338 = vpop.permute.xlu0 %3337
    %3339 = vrot.lane.b32.xlu0 %v3069, 64
    %v3340 = vpop.permute.xlu0 %3339
    %3341 = vrot.lane.b32.xlu0 %v3070, 64
    %v3342 = vpop.permute.xlu0 %3341
    %3343 = vrot.lane.b32.xlu0 %v3071, 64
    %v3344 = vpop.permute.xlu0 %3343
    %3345 = vrot.lane.b32.xlu0 %v3072, 64
    %v3346 = vpop.permute.xlu0 %3345
    %3347 = vrot.lane.b32.xlu0 %v3073, 64
    %v3348 = vpop.permute.xlu0 %3347
    %3349 = vrot.lane.b32.xlu0 %v3074, 64
    %v3350 = vpop.permute.xlu0 %3349
    %3351 = vrot.lane.b32.xlu0 %v3075, 64
    %v3352 = vpop.permute.xlu0 %3351
    %3353 = vrot.lane.b32.xlu0 %v3076, 64
    %v3354 = vpop.permute.xlu0 %3353
    %3355 = vrot.lane.b32.xlu0 %v3077, 64
    %v3356 = vpop.permute.xlu0 %3355
    %3357 = vrot.lane.b32.xlu0 %v3078, 64
    %v3358 = vpop.permute.xlu0 %3357
    %3359 = vrot.lane.b32.xlu0 %v3079, 64
    %v3360 = vpop.permute.xlu0 %3359
    %3361 = vrot.lane.b32.xlu0 %v3080, 64
    %v3362 = vpop.permute.xlu0 %3361
    %3363 = vrot.lane.b32.xlu0 %v3081, 64
    %v3364 = vpop.permute.xlu0 %3363
    %3365 = vrot.lane.b32.xlu0 %v3082, 64
    %v3366 = vpop.permute.xlu0 %3365
    %3367 = vrot.lane.b32.xlu0 %v3083, 64
    %v3368 = vpop.permute.xlu0 %3367
    %3369 = vrot.lane.b32.xlu0 %v3084, 64
    %v3370 = vpop.permute.xlu0 %3369
    %3371 = vrot.lane.b32.xlu0 %v3085, 64
    %v3372 = vpop.permute.xlu0 %3371
    %3373 = vrot.lane.b32.xlu0 %v3086, 64
    %v3374 = vpop.permute.xlu0 %3373
    %v3407 = vsel %vm1084, %v3151, %v3312
    %v3408 = vsel %vm1084, %v3152, %v3314
    %v3409 = vsel %vm1084, %v3153, %v3316
    %v3410 = vsel %vm1084, %v3154, %v3318
    %v3411 = vsel %vm1084, %v3155, %v3320
    %v3412 = vsel %vm1084, %v3156, %v3322
    %v3413 = vsel %vm1084, %v3157, %v3324
    %v3414 = vsel %vm1084, %v3158, %v3326
    %v3415 = vsel %vm1084, %v3159, %v3328
    %v3416 = vsel %vm1084, %v3160, %v3330
    %v3417 = vsel %vm1084, %v3161, %v3332
    %v3418 = vsel %vm1084, %v3162, %v3334
    %v3419 = vsel %vm1084, %v3163, %v3336
    %v3420 = vsel %vm1084, %v3164, %v3338
    %v3421 = vsel %vm1084, %v3165, %v3340
    %v3422 = vsel %vm1084, %v3166, %v3342
    %v3423 = vsel %vm1084, %v3167, %v3344
    %v3424 = vsel %vm1084, %v3168, %v3346
    %v3425 = vsel %vm1084, %v3169, %v3348
    %v3426 = vsel %vm1084, %v3170, %v3350
    %v3427 = vsel %vm1084, %v3171, %v3352
    %v3428 = vsel %vm1084, %v3172, %v3354
    %v3429 = vsel %vm1084, %v3173, %v3356
    %v3430 = vsel %vm1084, %v3174, %v3358
    %v3431 = vsel %vm1084, %v3175, %v3360
    %v3432 = vsel %vm1084, %v3176, %v3362
    %v3433 = vsel %vm1084, %v3177, %v3364
    %v3434 = vsel %vm1084, %v3178, %v3366
    %v3435 = vsel %vm1084, %v3179, %v3368
    %v3436 = vsel %vm1084, %v3180, %v3370
    %v3437 = vsel %vm1084, %v3181, %v3372
    %v3438 = vsel %vm1084, %v3182, %v3374
    %v3439 = vpack.c.bf16 %v3408, %v3407
    %v3440 = vpack.c.bf16 %v3248, %v3247
    %v3441 = vpack.c.bf16 %v3410, %v3409
    %v3442 = vpack.c.bf16 %v3250, %v3249
    %v3443 = vpack.c.bf16 %v3412, %v3411
    %v3444 = vpack.c.bf16 %v3252, %v3251
    %v3445 = vpack.c.bf16 %v3414, %v3413
    %v3446 = vpack.c.bf16 %v3254, %v3253
    %v3447 = vpack.c.bf16 %v3416, %v3415
    %v3448 = vpack.c.bf16 %v3256, %v3255
    %v3449 = vpack.c.bf16 %v3418, %v3417
    %v3450 = vpack.c.bf16 %v3258, %v3257
    %v3451 = vpack.c.bf16 %v3420, %v3419
    %v3452 = vpack.c.bf16 %v3260, %v3259
    %v3453 = vpack.c.bf16 %v3422, %v3421
    %v3454 = vpack.c.bf16 %v3262, %v3261
    %v3455 = vpack.c.bf16 %v3424, %v3423
    %v3456 = vpack.c.bf16 %v3264, %v3263
    %v3457 = vpack.c.bf16 %v3426, %v3425
    %v3458 = vpack.c.bf16 %v3266, %v3265
    %v3459 = vpack.c.bf16 %v3428, %v3427
    %v3460 = vpack.c.bf16 %v3268, %v3267
    %v3461 = vpack.c.bf16 %v3430, %v3429
    %v3462 = vpack.c.bf16 %v3270, %v3269
    %v3463 = vpack.c.bf16 %v3432, %v3431
    %v3464 = vpack.c.bf16 %v3272, %v3271
    %v3465 = vpack.c.bf16 %v3434, %v3433
    %v3466 = vpack.c.bf16 %v3274, %v3273
    %v3467 = vpack.c.bf16 %v3436, %v3435
    %v3468 = vpack.c.bf16 %v3276, %v3275
    %v3469 = vpack.c.bf16 %v3438, %v3437
    %v3470 = vpack.c.bf16 %v3278, %v3277
    %v3471 = vld [vmem:[%s9] sm:$0xf]
    %v3472 = vld [vmem:[%s9 + $0x4] sm:$0xf]
    %v3473 = vld [vmem:[%s9 + $0x8] sm:$0xf]
    %v3474 = vld [vmem:[%s9 + $0xc] sm:$0xf]
    %v3475 = vld [vmem:[%s9 + $0x10] sm:$0xf]
    %v3476 = vld [vmem:[%s9 + $0x14] sm:$0xf]
    %v3477 = vld [vmem:[%s9 + $0x18] sm:$0xf]
    %v3478 = vld [vmem:[%s9 + $0x1c] sm:$0xf]
    %v3479 = vld [vmem:[%s9 + $0x20] sm:$0xf]
    %v3480 = vld [vmem:[%s9 + $0x24] sm:$0xf]
    %v3481 = vld [vmem:[%s9 + $0x28] sm:$0xf]
    %v3482 = vld [vmem:[%s9 + $0x2c] sm:$0xf]
    %v3483 = vld [vmem:[%s9 + $0x30] sm:$0xf]
    %v3484 = vld [vmem:[%s9 + $0x34] sm:$0xf]
    %v3485 = vld [vmem:[%s9 + $0x38] sm:$0xf]
    %v3486 = vld [vmem:[%s9 + $0x3c] sm:$0xf]
    %v3487 = vld [vmem:[%s9 + $0x40] sm:$0xf]
    %v3488 = vld [vmem:[%s9 + $0x44] sm:$0xf]
    %v3489 = vld [vmem:[%s9 + $0x48] sm:$0xf]
    %v3490 = vld [vmem:[%s9 + $0x4c] sm:$0xf]
    %v3491 = vld [vmem:[%s9 + $0x50] sm:$0xf]
    %v3492 = vld [vmem:[%s9 + $0x54] sm:$0xf]
    %v3493 = vld [vmem:[%s9 + $0x58] sm:$0xf]
    %v3494 = vld [vmem:[%s9 + $0x5c] sm:$0xf]
    %v3519 = vunpack.c.l.b16 %v3471
    %v3520 = vunpack.c.l.b16 %v3472
    %v3521 = vunpack.c.l.b16 %v3473
    %v3522 = vunpack.c.l.b16 %v3474
    %v3523 = vunpack.c.l.b16 %v3475
    %v3524 = vunpack.c.l.b16 %v3476
    %v3525 = vunpack.c.l.b16 %v3477
    %v3526 = vunpack.c.l.b16 %v3478
    %v3527 = vunpack.c.l.b16 %v3479
    %v3528 = vunpack.c.l.b16 %v3480
    %v3529 = vunpack.c.l.b16 %v3481
    %v3530 = vunpack.c.l.b16 %v3482
    %v3531 = vunpack.c.l.b16 %v3483
    %v3532 = vunpack.c.l.b16 %v3484
    %v3533 = vunpack.c.l.b16 %v3485
    %v3534 = vunpack.c.l.b16 %v3486
    %v3535 = vunpack.c.l.b16 %v3487
    %v3536 = vunpack.c.l.b16 %v3488
    %v3537 = vunpack.c.l.b16 %v3489
    %v3538 = vunpack.c.l.b16 %v3490
    %v3539 = vunpack.c.l.b16 %v3491
    %v3540 = vunpack.c.l.b16 %v3492
    %v3541 = vunpack.c.l.b16 %v3493
    %v3542 = vunpack.c.l.b16 %v3494
    %v3543 = vpack.c.b16 %v3520, %v3519
    %v3544 = vpack.c.b16 %v3522, %v3521
    %v3545 = vpack.c.b16 %v3524, %v3523
    %v3546 = vpack.c.b16 %v3526, %v3525
    %v3547 = vpack.c.b16 %v3528, %v3527
    %v3548 = vpack.c.b16 %v3530, %v3529
    %v3549 = vpack.c.b16 %v3532, %v3531
    %v3550 = vpack.c.b16 %v3534, %v3533
    %v3551 = vpack.c.b16 %v3536, %v3535
    %v3552 = vpack.c.b16 %v3538, %v3537
    %v3553 = vpack.c.b16 %v3540, %v3539
    %v3554 = vpack.c.b16 %v3542, %v3541
    %v3568 = vsel %vm1084, %v3440, 0
    %v3571 = vsel %vm1084, %v3442, 0
    %v3574 = vsel %vm1084, %v3444, 0
    %v3577 = vsel %vm1084, %v3446, 0
    %v3580 = vsel %vm1084, %v3448, 0
    %v3583 = vsel %vm1084, %v3450, 0
    %v3586 = vsel %vm1084, %v3452, 0
    %v3589 = vsel %vm1084, %v3454, 0
    %v3592 = vsel %vm1084, %v3456, 0
    %v3595 = vsel %vm1084, %v3458, 0
    %v3598 = vsel %vm1084, %v3460, 0
    %v3601 = vsel %vm1084, %v3462, 0
    %v3604 = vsel %vm1084, %v3464, 0
    %v3607 = vsel %vm1084, %v3466, 0
    %v3610 = vsel %vm1084, %v3468, 0
    %v3613 = vsel %vm1084, %v3470, 0
    %3615 = vmatpush.bf16.msra.mxu0 %v3550
    %3616 = vmatpush.bf16.msra.mxu0 %v3549
    %3617 = vmatpush.bf16.msra.mxu0 %v3548
    %3618 = vmatpush.bf16.msra.mxu0 %v3547
    %3619 = vmatpush.bf16.msra.mxu0 %v3546
    %3620 = vmatpush.bf16.msra.mxu0 %v3545
    %3621 = vmatpush.bf16.msra.mxu0 %v3544
    %3622 = vmatpush.bf16.msra.mxu0 %v3543
    %3623 = vmatmul.bf16.gmra.mxu0 %v3439
    %v3624 = vpop.f32.mrf.mxu0
    %v3625 = vadd.f32 0.0, %v3624
    %v3626 = vpop.f32.mrf.mxu0
    %v3627 = vadd.f32 0.0, %v3626
    %3628 = vmatmul.bf16.gmra.mxu0 %v3441
    %v3629 = vpop.f32.mrf.mxu0
    %v3630 = vadd.f32 0.0, %v3629
    %v3631 = vpop.f32.mrf.mxu0
    %v3632 = vadd.f32 0.0, %v3631
    %3633 = vmatmul.bf16.gmra.mxu0 %v3443
    %v3634 = vpop.f32.mrf.mxu0
    %v3635 = vadd.f32 0.0, %v3634
    %v3636 = vpop.f32.mrf.mxu0
    %v3637 = vadd.f32 0.0, %v3636
    %3638 = vmatmul.bf16.gmra.mxu0 %v3445
    %v3639 = vpop.f32.mrf.mxu0
    %v3640 = vadd.f32 0.0, %v3639
    %v3641 = vpop.f32.mrf.mxu0
    %v3642 = vadd.f32 0.0, %v3641
    %3643 = vmatmul.bf16.gmra.mxu0 %v3447
    %v3644 = vpop.f32.mrf.mxu0
    %v3645 = vadd.f32 0.0, %v3644
    %v3646 = vpop.f32.mrf.mxu0
    %v3647 = vadd.f32 0.0, %v3646
    %3648 = vmatmul.bf16.gmra.mxu0 %v3449
    %v3649 = vpop.f32.mrf.mxu0
    %v3650 = vadd.f32 0.0, %v3649
    %v3651 = vpop.f32.mrf.mxu0
    %v3652 = vadd.f32 0.0, %v3651
    %3653 = vmatmul.bf16.gmra.mxu0 %v3451
    %v3654 = vpop.f32.mrf.mxu0
    %v3655 = vadd.f32 0.0, %v3654
    %v3656 = vpop.f32.mrf.mxu0
    %v3657 = vadd.f32 0.0, %v3656
    %3658 = vmatmul.bf16.gmra.mxu0 %v3453
    %v3659 = vpop.f32.mrf.mxu0
    %v3660 = vadd.f32 0.0, %v3659
    %v3661 = vpop.f32.mrf.mxu0
    %v3662 = vadd.f32 0.0, %v3661
    %3663 = vmatmul.bf16.gmra.mxu0 %v3455
    %v3664 = vpop.f32.mrf.mxu0
    %v3665 = vadd.f32 0.0, %v3664
    %v3666 = vpop.f32.mrf.mxu0
    %v3667 = vadd.f32 0.0, %v3666
    %3668 = vmatmul.bf16.gmra.mxu0 %v3457
    %v3669 = vpop.f32.mrf.mxu0
    %v3670 = vadd.f32 0.0, %v3669
    %v3671 = vpop.f32.mrf.mxu0
    %v3672 = vadd.f32 0.0, %v3671
    %3673 = vmatmul.bf16.gmra.mxu0 %v3459
    %v3674 = vpop.f32.mrf.mxu0
    %v3675 = vadd.f32 0.0, %v3674
    %v3676 = vpop.f32.mrf.mxu0
    %v3677 = vadd.f32 0.0, %v3676
    %3678 = vmatmul.bf16.gmra.mxu0 %v3461
    %v3679 = vpop.f32.mrf.mxu0
    %v3680 = vadd.f32 0.0, %v3679
    %v3681 = vpop.f32.mrf.mxu0
    %v3682 = vadd.f32 0.0, %v3681
    %3683 = vmatmul.bf16.gmra.mxu0 %v3463
    %v3684 = vpop.f32.mrf.mxu0
    %v3685 = vadd.f32 0.0, %v3684
    %v3686 = vpop.f32.mrf.mxu0
    %v3687 = vadd.f32 0.0, %v3686
    %3688 = vmatmul.bf16.gmra.mxu0 %v3465
    %v3689 = vpop.f32.mrf.mxu0
    %v3690 = vadd.f32 0.0, %v3689
    %v3691 = vpop.f32.mrf.mxu0
    %v3692 = vadd.f32 0.0, %v3691
    %3693 = vmatmul.bf16.gmra.mxu0 %v3467
    %v3694 = vpop.f32.mrf.mxu0
    %v3695 = vadd.f32 0.0, %v3694
    %v3696 = vpop.f32.mrf.mxu0
    %v3697 = vadd.f32 0.0, %v3696
    %3698 = vmatmul.bf16.gmra.mxu0 %v3469
    %v3699 = vpop.f32.mrf.mxu0
    %v3700 = vadd.f32 0.0, %v3699
    %v3701 = vpop.f32.mrf.mxu0
    %v3702 = vadd.f32 0.0, %v3701
    %3703 = vdwg.mxu0
    %3704 = vmatpush.bf16.msra.mxu0 0
    %3705 = vmatpush.bf16.msra.mxu0 0
    %3706 = vmatpush.bf16.msra.mxu0 0
    %3707 = vmatpush.bf16.msra.mxu0 0
    %3708 = vmatpush.bf16.msra.mxu0 %v3554
    %3709 = vmatpush.bf16.msra.mxu0 %v3553
    %3710 = vmatpush.bf16.msra.mxu0 %v3552
    %3711 = vmatpush.bf16.msra.mxu0 %v3551
    %3712 = vmatmul.bf16.gmra.mxu0 %v3568
    %v3713 = vpop.f32.mrf.mxu0
    %v3714 = vadd.f32 %v3625, %v3713
    %v3715 = vpop.f32.mrf.mxu0
    %v3716 = vadd.f32 %v3627, %v3715
    %3717 = vmatmul.bf16.gmra.mxu0 %v3571
    %v3718 = vpop.f32.mrf.mxu0
    %v3719 = vadd.f32 %v3630, %v3718
    %v3720 = vpop.f32.mrf.mxu0
    %v3721 = vadd.f32 %v3632, %v3720
    %3722 = vmatmul.bf16.gmra.mxu0 %v3574
    %v3723 = vpop.f32.mrf.mxu0
    %v3724 = vadd.f32 %v3635, %v3723
    %v3725 = vpop.f32.mrf.mxu0
    %v3726 = vadd.f32 %v3637, %v3725
    %3727 = vmatmul.bf16.gmra.mxu0 %v3577
    %v3728 = vpop.f32.mrf.mxu0
    %v3729 = vadd.f32 %v3640, %v3728
    %v3730 = vpop.f32.mrf.mxu0
    %v3731 = vadd.f32 %v3642, %v3730
    %3732 = vmatmul.bf16.gmra.mxu0 %v3580
    %v3733 = vpop.f32.mrf.mxu0
    %v3734 = vadd.f32 %v3645, %v3733
    %v3735 = vpop.f32.mrf.mxu0
    %v3736 = vadd.f32 %v3647, %v3735
    %3737 = vmatmul.bf16.gmra.mxu0 %v3583
    %v3738 = vpop.f32.mrf.mxu0
    %v3739 = vadd.f32 %v3650, %v3738
    %v3740 = vpop.f32.mrf.mxu0
    %v3741 = vadd.f32 %v3652, %v3740
    %3742 = vmatmul.bf16.gmra.mxu0 %v3586
    %v3743 = vpop.f32.mrf.mxu0
    %v3744 = vadd.f32 %v3655, %v3743
    %v3745 = vpop.f32.mrf.mxu0
    %v3746 = vadd.f32 %v3657, %v3745
    %3747 = vmatmul.bf16.gmra.mxu0 %v3589
    %v3748 = vpop.f32.mrf.mxu0
    %v3749 = vadd.f32 %v3660, %v3748
    %v3750 = vpop.f32.mrf.mxu0
    %v3751 = vadd.f32 %v3662, %v3750
    %3752 = vmatmul.bf16.gmra.mxu0 %v3592
    %v3753 = vpop.f32.mrf.mxu0
    %v3754 = vadd.f32 %v3665, %v3753
    %v3755 = vpop.f32.mrf.mxu0
    %v3756 = vadd.f32 %v3667, %v3755
    %3757 = vmatmul.bf16.gmra.mxu0 %v3595
    %v3758 = vpop.f32.mrf.mxu0
    %v3759 = vadd.f32 %v3670, %v3758
    %v3760 = vpop.f32.mrf.mxu0
    %v3761 = vadd.f32 %v3672, %v3760
    %3762 = vmatmul.bf16.gmra.mxu0 %v3598
    %v3763 = vpop.f32.mrf.mxu0
    %v3764 = vadd.f32 %v3675, %v3763
    %v3765 = vpop.f32.mrf.mxu0
    %v3766 = vadd.f32 %v3677, %v3765
    %3767 = vmatmul.bf16.gmra.mxu0 %v3601
    %v3768 = vpop.f32.mrf.mxu0
    %v3769 = vadd.f32 %v3680, %v3768
    %v3770 = vpop.f32.mrf.mxu0
    %v3771 = vadd.f32 %v3682, %v3770
    %3772 = vmatmul.bf16.gmra.mxu0 %v3604
    %v3773 = vpop.f32.mrf.mxu0
    %v3774 = vadd.f32 %v3685, %v3773
    %v3775 = vpop.f32.mrf.mxu0
    %v3776 = vadd.f32 %v3687, %v3775
    %3777 = vmatmul.bf16.gmra.mxu0 %v3607
    %v3778 = vpop.f32.mrf.mxu0
    %v3779 = vadd.f32 %v3690, %v3778
    %v3780 = vpop.f32.mrf.mxu0
    %v3781 = vadd.f32 %v3692, %v3780
    %3782 = vmatmul.bf16.gmra.mxu0 %v3610
    %v3783 = vpop.f32.mrf.mxu0
    %v3784 = vadd.f32 %v3695, %v3783
    %v3785 = vpop.f32.mrf.mxu0
    %v3786 = vadd.f32 %v3697, %v3785
    %3787 = vmatmul.bf16.gmra.mxu0 %v3613
    %v3788 = vpop.f32.mrf.mxu0
    %v3789 = vadd.f32 %v3700, %v3788
    %v3790 = vpop.f32.mrf.mxu0
    %v3791 = vadd.f32 %v3702, %v3790
    %3792 = vdwg.mxu0
    %v3793 = vpack.c.bf16 %v3714, %v3714
    %v3794 = vpack.c.bf16 %v3716, %v3716
    %v3795 = vpack.c.bf16 %v3719, %v3719
    %v3796 = vpack.c.bf16 %v3721, %v3721
    %v3797 = vpack.c.bf16 %v3724, %v3724
    %v3798 = vpack.c.bf16 %v3726, %v3726
    %v3799 = vpack.c.bf16 %v3729, %v3729
    %v3800 = vpack.c.bf16 %v3731, %v3731
    %v3801 = vpack.c.bf16 %v3734, %v3734
    %v3802 = vpack.c.bf16 %v3736, %v3736
    %v3803 = vpack.c.bf16 %v3739, %v3739
    %v3804 = vpack.c.bf16 %v3741, %v3741
    %v3805 = vpack.c.bf16 %v3744, %v3744
    %v3806 = vpack.c.bf16 %v3746, %v3746
    %v3807 = vpack.c.bf16 %v3749, %v3749
    %v3808 = vpack.c.bf16 %v3751, %v3751
    %v3809 = vpack.c.bf16 %v3754, %v3754
    %v3810 = vpack.c.bf16 %v3756, %v3756
    %v3811 = vpack.c.bf16 %v3759, %v3759
    %v3812 = vpack.c.bf16 %v3761, %v3761
    %v3813 = vpack.c.bf16 %v3764, %v3764
    %v3814 = vpack.c.bf16 %v3766, %v3766
    %v3815 = vpack.c.bf16 %v3769, %v3769
    %v3816 = vpack.c.bf16 %v3771, %v3771
    %v3817 = vpack.c.bf16 %v3774, %v3774
    %v3818 = vpack.c.bf16 %v3776, %v3776
    %v3819 = vpack.c.bf16 %v3779, %v3779
    %v3820 = vpack.c.bf16 %v3781, %v3781
    %v3821 = vpack.c.bf16 %v3784, %v3784
    %v3822 = vpack.c.bf16 %v3786, %v3786
    %v3823 = vpack.c.bf16 %v3789, %v3789
    %v3824 = vpack.c.bf16 %v3791, %v3791
    %3825 = vst [vmem:[#allocation2] sm:$0xf] %v3793
    %3826 = vst [vmem:[#allocation2 + $0x4] sm:$0xf] %v3794
    %3827 = vst [vmem:[#allocation2 + $0x8] sm:$0xf] %v3795
    %3828 = vst [vmem:[#allocation2 + $0xc] sm:$0xf] %v3796
    %3829 = vst [vmem:[#allocation2 + $0x10] sm:$0xf] %v3797
    %3830 = vst [vmem:[#allocation2 + $0x14] sm:$0xf] %v3798
    %3831 = vst [vmem:[#allocation2 + $0x18] sm:$0xf] %v3799
    %3832 = vst [vmem:[#allocation2 + $0x1c] sm:$0xf] %v3800
    %3833 = vst [vmem:[#allocation2 + $0x20] sm:$0xf] %v3801
    %3834 = vst [vmem:[#allocation2 + $0x24] sm:$0xf] %v3802
    %3835 = vst [vmem:[#allocation2 + $0x28] sm:$0xf] %v3803
    %3836 = vst [vmem:[#allocation2 + $0x2c] sm:$0xf] %v3804
    %3837 = vst [vmem:[#allocation2 + $0x30] sm:$0xf] %v3805
    %3838 = vst [vmem:[#allocation2 + $0x34] sm:$0xf] %v3806
    %3839 = vst [vmem:[#allocation2 + $0x38] sm:$0xf] %v3807
    %3840 = vst [vmem:[#allocation2 + $0x3c] sm:$0xf] %v3808
    %3841 = vst [vmem:[#allocation2 + $0x40] sm:$0xf] %v3809
    %3842 = vst [vmem:[#allocation2 + $0x44] sm:$0xf] %v3810
    %3843 = vst [vmem:[#allocation2 + $0x48] sm:$0xf] %v3811
    %3844 = vst [vmem:[#allocation2 + $0x4c] sm:$0xf] %v3812
    %3845 = vst [vmem:[#allocation2 + $0x50] sm:$0xf] %v3813
    %3846 = vst [vmem:[#allocation2 + $0x54] sm:$0xf] %v3814
    %3847 = vst [vmem:[#allocation2 + $0x58] sm:$0xf] %v3815
    %3848 = vst [vmem:[#allocation2 + $0x5c] sm:$0xf] %v3816
    %3849 = vst [vmem:[#allocation2 + $0x60] sm:$0xf] %v3817
    %3850 = vst [vmem:[#allocation2 + $0x64] sm:$0xf] %v3818
    %3851 = vst [vmem:[#allocation2 + $0x68] sm:$0xf] %v3819
    %3852 = vst [vmem:[#allocation2 + $0x6c] sm:$0xf] %v3820
    %3853 = vst [vmem:[#allocation2 + $0x70] sm:$0xf] %v3821
    %3854 = vst [vmem:[#allocation2 + $0x74] sm:$0xf] %v3822
    %3855 = vst [vmem:[#allocation2 + $0x78] sm:$0xf] %v3823
    %3856 = vst [vmem:[#allocation2 + $0x7c] sm:$0xf] %v3824
    // Predicated region
    $region42: #{tpu_custom_call.1} parent=1 // pred_check
      _
    $region43: #{tpu_custom_call.1} parent=1 // pred_check_branch
      %3858 = sbr.rel (0) target = $region45
    $region44: #{tpu_custom_call.1} parent=1 // pred_region
      %3860 = vsyncadd [#allocation3], 0
      %s3861 = sshll.u32 [#allocation2], 4
      %s3862 = int_to_ptr.vmem [resolvable:$true] %s3861
      %s3863 = sshll.u32 %s10, 4
      %s3864 = int_to_ptr.hbm [resolvable:$true] %s3863
      %3869 = dma.vmem_to_hbm [thread:$0]  %s3862, 2048, %s3864, [#allocation3], 64, 64, 4
    $region45: #{tpu_custom_call.1} parent=1 // pred_fallthru
      _
    // Predicated region
    $region46: #{tpu_custom_call.1} parent=1 // pred_check
      _
    $region47: #{tpu_custom_call.1} parent=1 // pred_check_branch
      %3871 = sbr.rel (0) target = $region49
    $region48: #{tpu_custom_call.1} parent=1 // pred_region
      %3873 = dma.done [#allocation3], 2048
    $region49: #{tpu_custom_call.1} parent=1 // pred_fallthru
      _
    %3874 = vsyncpa [#allocation3], 1

</llo_original>
